<compile_context>
chip_gen: v7x
topology: tpu7x:2x2x1
jax: 0.10.0
libtpu: 0.0.40
codegen_flags: <defaults>
</compile_context>

<pallas_src>
import jax
import jax.numpy as jnp
from jax.experimental import pallas as pl
from jax.experimental.pallas import tpu as pltpu

# Logical model dims (match the PyTorch module).
DATA_DIM = 784
Z_DIM = 10
HIDDEN_DIM = 500

# Padded dims used inside the kernel.
HPAD = 512            # hidden 500 -> 512
ZPAD = 128            # fused [mu | log_var] head width (lane-full)
ZHALF = ZPAD // 2     # log_var columns start here (64)
DPAD = 896            # decoder output 784 -> 896 = 7*128 (lane-dense store)


def _round_up(x, m):
    return (x + m - 1) // m * m


def _pick_tile_b(batch):
    # v5e prefers 128-row M tiles (4x128 MXU); v6e/v7x prefer 256-row tiles.
    # At tiny batch the kernel is weight-DMA bound, so just use one small tile.
    if batch >= 256:
        return 256
    if batch >= 128:
        return 128
    return _round_up(max(batch, 1), 16)


def _vae_kernel(x_ref, eps_ref,
                w1_ref, b1_ref,
                wz_ref, bz_ref,
                w3_ref, b3_ref,
                w4_ref, b4_ref,
                recon_ref, head_ref):
    # ---- encode: h1 = relu(x @ W1 + b1) ----------------------------------
    x = x_ref[...]                                                   # (TB, 784) bf16
    h1 = jnp.dot(x, w1_ref[...], preferred_element_type=jnp.float32) + b1_ref[...]
    h1 = jnp.maximum(h1, 0.0)                                        # (TB, 512) f32

    # ---- fused [mu | log_var] head: one lane-dense MXU pass ---------------
    head = jnp.dot(h1.astype(jnp.bfloat16), wz_ref[...],
                   preferred_element_type=jnp.float32) + bz_ref[...]  # (TB, 128)
    head_ref[...] = head                                             # lane-dense store

    # ---- reparameterize: z = mu + eps * exp(0.5 * log_var) ----------------
    # log_var sits at cols [64, 74); one XLU roll (shift 64 on a 128-lane axis;
    # +/-64 are identical) aligns it under mu.  Padded head lanes are zero, so
    # std there is exp(0) = 1 and eps there is zero -> noise is exactly zero
    # on the padding without any masking.
    lv_aligned = pltpu.roll(head, shift=ZHALF, axis=1)
    std = jnp.exp(0.5 * lv_aligned)
    z = head + eps_ref[...] * std           # cols [0,10) valid; rest killed by W3 pad

    # ---- decode: h3 = relu(z @ W3 + b3); recon = sigmoid(h3 @ W4 + b4) ----
    h3 = jnp.dot(z.astype(jnp.bfloat16), w3_ref[...],
                 preferred_element_type=jnp.float32) + b3_ref[...]
    h3 = jnp.maximum(h3, 0.0)                                        # (TB, 512)
    logits = jnp.dot(h3.astype(jnp.bfloat16), w4_ref[...],
                     preferred_element_type=jnp.float32) + b4_ref[...]  # (TB, 896)
    recon_ref[...] = pl.reciprocal(1.0 + jnp.exp(-logits), approx=True)


def pack_params(params):
    """Zero-pad weights/biases to kernel shapes; matmul weights -> bf16, biases f32."""
    f32, bf16 = jnp.float32, jnp.bfloat16

    w1 = jnp.zeros((DATA_DIM, HPAD), f32).at[:, :HIDDEN_DIM].set(params["w1"])
    b1 = jnp.zeros((1, HPAD), f32).at[:, :HIDDEN_DIM].set(params["b1"])

    wz = jnp.zeros((HPAD, ZPAD), f32)
    wz = wz.at[:HIDDEN_DIM, :Z_DIM].set(params["wmu"])
    wz = wz.at[:HIDDEN_DIM, ZHALF:ZHALF + Z_DIM].set(params["wlv"])
    bz = jnp.zeros((1, ZPAD), f32)
    bz = bz.at[:, :Z_DIM].set(params["bmu"])
    bz = bz.at[:, ZHALF:ZHALF + Z_DIM].set(params["blv"])

    w3 = jnp.zeros((ZPAD, HPAD), f32).at[:Z_DIM, :HIDDEN_DIM].set(params["w3"])
    b3 = jnp.zeros((1, HPAD), f32).at[:, :HIDDEN_DIM].set(params["b3"])

    w4 = jnp.zeros((HPAD, DPAD), f32).at[:HIDDEN_DIM, :DATA_DIM].set(params["w4"])
    b4 = jnp.zeros((1, DPAD), f32).at[:, :DATA_DIM].set(params["b4"])

    return (w1.astype(bf16), b1, wz.astype(bf16), bz,
            w3.astype(bf16), b3, w4.astype(bf16), b4)


def vae_forward(x, eps, packed):
    """x: (B, ...) flattened to (B, 784). eps: (B, Z_DIM). -> (recon, mu, log_var)."""
    x2d = x.reshape(-1, DATA_DIM)                           # mirrors x.view(-1, 784)
    B = x2d.shape[0]
    tile_b = _pick_tile_b(B)
    b_pad = _round_up(B, tile_b)

    # x travels as bf16 (identical to the in-kernel cast, half the DMA bytes).
    x_p = jnp.zeros((b_pad, DATA_DIM), jnp.bfloat16).at[:B].set(
        x2d.astype(jnp.bfloat16))
    eps_p = jnp.zeros((b_pad, ZPAD), jnp.float32).at[:B, :Z_DIM].set(
        eps.astype(jnp.float32))

    w1, b1, wz, bz, w3, b3, w4, b4 = packed

    grid = (b_pad // tile_b,)
    row = lambda i: (i, 0)        # activation tiles: blocked over batch
    fixed = lambda i: (0, 0)      # weights/biases: resident across the grid

    in_specs = [
        pl.BlockSpec((tile_b, DATA_DIM), row),     # x (bf16)
        pl.BlockSpec((tile_b, ZPAD), row),         # eps (padded, f32)
        pl.BlockSpec((DATA_DIM, HPAD), fixed),     # W1 (bf16, resident)
        pl.BlockSpec((1, HPAD), fixed),            # b1
        pl.BlockSpec((HPAD, ZPAD), fixed),         # Wz = [Wmu | Wlv] fused
        pl.BlockSpec((1, ZPAD), fixed),            # bz
        pl.BlockSpec((ZPAD, HPAD), fixed),         # W3
        pl.BlockSpec((1, HPAD), fixed),            # b3
        pl.BlockSpec((HPAD, DPAD), fixed),         # W4
        pl.BlockSpec((1, DPAD), fixed),            # b4
    ]
    out_specs = (
        pl.BlockSpec((tile_b, DPAD), row),         # recon (padded, lane-dense)
        pl.BlockSpec((tile_b, ZPAD), row),         # fused [mu | log_var] head
    )

    # Scheduling hints for XLA around the custom call.
    mm = DATA_DIM * HPAD + HPAD * ZPAD + ZPAD * HPAD + HPAD * DPAD
    flops = 2 * b_pad * mm
    transcendentals = b_pad * (ZPAD + 2 * DPAD)            # exp(std), exp+rcp(sigmoid)
    weight_bytes = 2 * mm                                  # bf16 weights
    bias_bytes = 4 * (2 * HPAD + ZPAD + DPAD)
    act_bytes = b_pad * (2 * DATA_DIM + 4 * ZPAD + 4 * DPAD + 4 * ZPAD)
    cost = pl.CostEstimate(flops=flops, transcendentals=transcendentals,
                           bytes_accessed=weight_bytes + bias_bytes + act_bytes)

    # Actual VMEM footprint: ~2 MiB bf16 weights (resident) + double-buffered
    # activation tiles (< 8 MiB even at tile_b=256), so 32 MiB leaves ample
    # headroom on v5e/v6e and on v7x's 64 MiB physical VMEM.
    recon_p, head = pl.pallas_call(
        _vae_kernel,
        out_shape=(jax.ShapeDtypeStruct((b_pad, DPAD), jnp.float32),
                   jax.ShapeDtypeStruct((b_pad, ZPAD), jnp.float32)),
        grid=grid,
        in_specs=in_specs,
        out_specs=out_specs,
        compiler_params=pltpu.CompilerParams(
            dimension_semantics=("parallel",),
            vmem_limit_bytes=32 * 1024 * 1024),
        cost_estimate=cost,
    )(x_p, eps_p, w1, b1, wz, bz, w3, b3, w4, b4)

    recon = recon_p[:B, :DATA_DIM]
    mu = head[:B, :Z_DIM]
    log_var = head[:B, ZHALF:ZHALF + Z_DIM]
    return recon, mu, log_var


def init_params(key):
    """Deterministic synthetic params; shapes follow nn.Linear, stored transposed."""
    def linear(k, fan_in, fan_out):
        kw, kb = jax.random.split(k)
        bound = 1.0 / jnp.sqrt(fan_in)
        w = jax.random.uniform(kw, (fan_in, fan_out), jnp.float32, -bound, bound)
        b = jax.random.uniform(kb, (1, fan_out), jnp.float32, -bound, bound)
        return w, b

    k1, k2, k3, k4, k5 = jax.random.split(key, 5)
    w1, b1 = linear(k1, DATA_DIM, HIDDEN_DIM)     # fc1
    wmu, bmu = linear(k2, HIDDEN_DIM, Z_DIM)      # hidden2mu
    wlv, blv = linear(k3, HIDDEN_DIM, Z_DIM)      # hidden2log_var
    w3, b3 = linear(k4, Z_DIM, HIDDEN_DIM)        # fc3
    w4, b4 = linear(k5, HIDDEN_DIM, DATA_DIM)     # fc4
    return dict(w1=w1, b1=b1, wmu=wmu, bmu=bmu, wlv=wlv, blv=blv,
                w3=w3, b3=b3, w4=w4, b4=b4)


def jax_reference(x, eps, params):
    """Pure-JAX reference using the same bf16 matmul operands / f32 accumulation."""
    c = lambda a: a.astype(jnp.bfloat16)
    x2d = x.reshape(-1, DATA_DIM).astype(jnp.float32)
    h1 = jnp.maximum(
        jnp.dot(c(x2d), c(params["w1"]), preferred_element_type=jnp.float32)
        + params["b1"], 0.0)
    mu = jnp.dot(c(h1), c(params["wmu"]), preferred_element_type=jnp.float32) + params["bmu"]
    lv = jnp.dot(c(h1), c(params["wlv"]), preferred_element_type=jnp.float32) + params["blv"]
    z = mu + eps * jnp.exp(0.5 * lv)
    h3 = jnp.maximum(
        jnp.dot(c(z), c(params["w3"]), preferred_element_type=jnp.float32)
        + params["b3"], 0.0)
    logits = jnp.dot(c(h3), c(params["w4"]), preferred_element_type=jnp.float32) + params["b4"]
    return jax.nn.sigmoid(logits), mu, lv


if __name__ == "__main__":
    key = jax.random.PRNGKey(0)
    kp, kx, ke = jax.random.split(key, 3)

    params = init_params(kp)
    packed = pack_params(params)

    B = 8
    # MNIST-like input; wrapper flattens to (B, 784) like x.view(-1, 784).
    # TODO(synk): torch.randn_like noise is generated outside the kernel with
    # jax.random and passed in (keeps the kernel pure compute / deterministic).
    x = jax.random.normal(kx, (B, 1, 28, 28), jnp.float32)
    eps = jax.random.normal(ke, (B, Z_DIM), jnp.float32)

    recon, mu, log_var = jax.block_until_ready(vae_forward(x, eps, packed))

    # Sanity check vs. a pure-JAX bf16-weight reference (bf16 weights -> loose tol).
    recon_r, mu_r, lv_r = jax_reference(x, eps, params)

    assert recon.shape == (B, DATA_DIM)
    assert mu.shape == (B, Z_DIM) and log_var.shape == (B, Z_DIM)
    assert jnp.allclose(recon, recon_r, atol=2e-2), float(jnp.max(jnp.abs(recon - recon_r)))
    assert jnp.allclose(mu, mu_r, atol=2e-2), float(jnp.max(jnp.abs(mu - mu_r)))
    assert jnp.allclose(log_var, lv_r, atol=2e-2), float(jnp.max(jnp.abs(log_var - lv_r)))

    print("KERNEL_OK")
</pallas_src>

<mosaic_0001>
module attributes {stable_mosaic.version = 11 : i64} {
  func.func @_vae_kernel(%arg0: i32, %arg1: memref<16x784xbf16, #tpu.memory_space<vmem>>, %arg2: memref<16x128xf32, #tpu.memory_space<vmem>>, %arg3: memref<784x512xbf16, #tpu.memory_space<vmem>>, %arg4: memref<1x512xf32, #tpu.memory_space<vmem>>, %arg5: memref<512x128xbf16, #tpu.memory_space<vmem>>, %arg6: memref<1x128xf32, #tpu.memory_space<vmem>>, %arg7: memref<128x512xbf16, #tpu.memory_space<vmem>>, %arg8: memref<1x512xf32, #tpu.memory_space<vmem>>, %arg9: memref<512x896xbf16, #tpu.memory_space<vmem>>, %arg10: memref<1x896xf32, #tpu.memory_space<vmem>>, %arg11: memref<16x896xf32, #tpu.memory_space<vmem>>, %arg12: memref<16x128xf32, #tpu.memory_space<vmem>>) attributes {dimension_semantics = [#tpu.dimension_semantics<parallel>], iteration_bounds = array<i64: 1>, scalar_prefetch = 0 : i64, scratch_operands = 0 : i64, tpu.core_type = #tpu.core_type<tc>, window_params = [{transform_indices = @transform_0, window_bounds = array<i64: 16, 784>}, {transform_indices = @transform_1, window_bounds = array<i64: 16, 128>}, {pipeline_mode = #tpu.pipeline_mode<synchronous>, transform_indices = @transform_2, window_bounds = array<i64: 784, 512>}, {pipeline_mode = #tpu.pipeline_mode<synchronous>, transform_indices = @transform_3, window_bounds = array<i64: 1, 512>}, {pipeline_mode = #tpu.pipeline_mode<synchronous>, transform_indices = @transform_4, window_bounds = array<i64: 512, 128>}, {pipeline_mode = #tpu.pipeline_mode<synchronous>, transform_indices = @transform_5, window_bounds = array<i64: 1, 128>}, {pipeline_mode = #tpu.pipeline_mode<synchronous>, transform_indices = @transform_6, window_bounds = array<i64: 128, 512>}, {pipeline_mode = #tpu.pipeline_mode<synchronous>, transform_indices = @transform_7, window_bounds = array<i64: 1, 512>}, {pipeline_mode = #tpu.pipeline_mode<synchronous>, transform_indices = @transform_8, window_bounds = array<i64: 512, 896>}, {pipeline_mode = #tpu.pipeline_mode<synchronous>, transform_indices = @transform_9, window_bounds = array<i64: 1, 896>}, {transform_indices = @transform_10, window_bounds = array<i64: 16, 896>}, {transform_indices = @transform_11, window_bounds = array<i64: 16, 128>}]} {
    %c0 = arith.constant 0 : index
    %c0_0 = arith.constant 0 : index
    %0 = vector.load %arg1[%c0, %c0_0] : memref<16x784xbf16, #tpu.memory_space<vmem>>, vector<16x784xbf16>
    %c0_1 = arith.constant 0 : index
    %c0_2 = arith.constant 0 : index
    %1 = vector.load %arg3[%c0_1, %c0_2] : memref<784x512xbf16, #tpu.memory_space<vmem>>, vector<784x512xbf16>
    %cst = arith.constant dense<0.000000e+00> : vector<16x512xf32>
    %2 = tpu.matmul %0, %1, %cst {dimension_numbers = #tpu.dot_dimension_numbers<[1], [0], [0], [1], [0, 0, 1, 1], [], []>} : vector<16x784xbf16>, vector<784x512xbf16>, vector<16x512xf32> -> vector<16x512xf32>
    %c0_3 = arith.constant 0 : index
    %c0_4 = arith.constant 0 : index
    %3 = vector.load %arg4[%c0_3, %c0_4] : memref<1x512xf32, #tpu.memory_space<vmem>>, vector<1x512xf32>
    %4 = vector.broadcast %3 : vector<1x512xf32> to vector<16x512xf32>
    %5 = arith.addf %2, %4 : vector<16x512xf32>
    %cst_5 = arith.constant 0.000000e+00 : f32
    %6 = vector.broadcast %cst_5 : f32 to vector<16x512xf32>
    %7 = arith.maximumf %5, %6 : vector<16x512xf32>
    %8 = arith.truncf %7 : vector<16x512xf32> to vector<16x512xbf16>
    %c0_6 = arith.constant 0 : index
    %c0_7 = arith.constant 0 : index
    %9 = vector.load %arg5[%c0_6, %c0_7] : memref<512x128xbf16, #tpu.memory_space<vmem>>, vector<512x128xbf16>
    %cst_8 = arith.constant dense<0.000000e+00> : vector<16x128xf32>
    %10 = tpu.matmul %8, %9, %cst_8 {dimension_numbers = #tpu.dot_dimension_numbers<[1], [0], [0], [1], [0, 0, 1, 1], [], []>} : vector<16x512xbf16>, vector<512x128xbf16>, vector<16x128xf32> -> vector<16x128xf32>
    %c0_9 = arith.constant 0 : index
    %c0_10 = arith.constant 0 : index
    %11 = vector.load %arg6[%c0_9, %c0_10] : memref<1x128xf32, #tpu.memory_space<vmem>>, vector<1x128xf32>
    %12 = vector.broadcast %11 : vector<1x128xf32> to vector<16x128xf32>
    %13 = arith.addf %10, %12 : vector<16x128xf32>
    %c0_11 = arith.constant 0 : index
    %c0_12 = arith.constant 0 : index
    %14 = vector.load %arg12[%c0_11, %c0_12] : memref<16x128xf32, #tpu.memory_space<vmem>>, vector<16x128xf32>
    tpu.vector_store %arg12[%c0_11, %c0_12], %13 {strides = array<i32>} : memref<16x128xf32, #tpu.memory_space<vmem>>, vector<16x128xf32>,
    %c64_i32 = arith.constant 64 : i32
    %15 = tpu.dynamic_rotate %13 by %c64_i32 dim 1 : vector<16x128xf32>, i32 -> vector<16x128xf32>
    %cst_13 = arith.constant 5.000000e-01 : f32
    %16 = vector.broadcast %cst_13 : f32 to vector<16x128xf32>
    %17 = arith.mulf %16, %15 : vector<16x128xf32>
    %18 = math.exp %17 : vector<16x128xf32>
    %c0_14 = arith.constant 0 : index
    %c0_15 = arith.constant 0 : index
    %19 = vector.load %arg2[%c0_14, %c0_15] : memref<16x128xf32, #tpu.memory_space<vmem>>, vector<16x128xf32>
    %20 = arith.mulf %19, %18 : vector<16x128xf32>
    %21 = arith.addf %13, %20 : vector<16x128xf32>
    %22 = arith.truncf %21 : vector<16x128xf32> to vector<16x128xbf16>
    %c0_16 = arith.constant 0 : index
    %c0_17 = arith.constant 0 : index
    %23 = vector.load %arg7[%c0_16, %c0_17] : memref<128x512xbf16, #tpu.memory_space<vmem>>, vector<128x512xbf16>
    %cst_18 = arith.constant dense<0.000000e+00> : vector<16x512xf32>
    %24 = tpu.matmul %22, %23, %cst_18 {dimension_numbers = #tpu.dot_dimension_numbers<[1], [0], [0], [1], [0, 0, 1, 1], [], []>} : vector<16x128xbf16>, vector<128x512xbf16>, vector<16x512xf32> -> vector<16x512xf32>
    %c0_19 = arith.constant 0 : index
    %c0_20 = arith.constant 0 : index
    %25 = vector.load %arg8[%c0_19, %c0_20] : memref<1x512xf32, #tpu.memory_space<vmem>>, vector<1x512xf32>
    %26 = vector.broadcast %25 : vector<1x512xf32> to vector<16x512xf32>
    %27 = arith.addf %24, %26 : vector<16x512xf32>
    %cst_21 = arith.constant 0.000000e+00 : f32
    %28 = vector.broadcast %cst_21 : f32 to vector<16x512xf32>
    %29 = arith.maximumf %27, %28 : vector<16x512xf32>
    %30 = arith.truncf %29 : vector<16x512xf32> to vector<16x512xbf16>
    %c0_22 = arith.constant 0 : index
    %c0_23 = arith.constant 0 : index
    %31 = vector.load %arg9[%c0_22, %c0_23] : memref<512x896xbf16, #tpu.memory_space<vmem>>, vector<512x896xbf16>
    %cst_24 = arith.constant dense<0.000000e+00> : vector<16x896xf32>
    %32 = tpu.matmul %30, %31, %cst_24 {dimension_numbers = #tpu.dot_dimension_numbers<[1], [0], [0], [1], [0, 0, 1, 1], [], []>} : vector<16x512xbf16>, vector<512x896xbf16>, vector<16x896xf32> -> vector<16x896xf32>
    %c0_25 = arith.constant 0 : index
    %c0_26 = arith.constant 0 : index
    %33 = vector.load %arg10[%c0_25, %c0_26] : memref<1x896xf32, #tpu.memory_space<vmem>>, vector<1x896xf32>
    %34 = vector.broadcast %33 : vector<1x896xf32> to vector<16x896xf32>
    %35 = arith.addf %32, %34 : vector<16x896xf32>
    %cst_27 = arith.constant 0.000000e+00 : f32
    %36 = vector.broadcast %cst_27 : f32 to vector<16x896xf32>
    %37 = arith.subf %36, %35 : vector<16x896xf32>
    %38 = math.exp %37 : vector<16x896xf32>
    %cst_28 = arith.constant 1.000000e+00 : f32
    %39 = vector.broadcast %cst_28 : f32 to vector<16x896xf32>
    %40 = arith.addf %39, %38 : vector<16x896xf32>
    %41 = tpu.reciprocal %40 {approx = true} : vector<16x896xf32> -> vector<16x896xf32>
    %c0_29 = arith.constant 0 : index
    %c0_30 = arith.constant 0 : index
    %42 = vector.load %arg11[%c0_29, %c0_30] : memref<16x896xf32, #tpu.memory_space<vmem>>, vector<16x896xf32>
    tpu.vector_store %arg11[%c0_29, %c0_30], %41 {strides = array<i32>} : memref<16x896xf32, #tpu.memory_space<vmem>>, vector<16x896xf32>,
    return
  }
  func.func @transform_0(%arg0: i32) -> (i32, i32) {
    %c0_i32 = arith.constant 0 : i32
    %c0_i32_0 = arith.constant 0 : i32
    return %arg0, %c0_i32 : i32, i32
  }
  func.func @transform_1(%arg0: i32) -> (i32, i32) {
    %c0_i32 = arith.constant 0 : i32
    %c0_i32_0 = arith.constant 0 : i32
    return %arg0, %c0_i32 : i32, i32
  }
  func.func @transform_2(%arg0: i32) -> (i32, i32) {
    %c0_i32 = arith.constant 0 : i32
    %c0_i32_0 = arith.constant 0 : i32
    %c0_i32_1 = arith.constant 0 : i32
    return %c0_i32, %c0_i32_0 : i32, i32
  }
  func.func @transform_3(%arg0: i32) -> (i32, i32) {
    %c0_i32 = arith.constant 0 : i32
    %c0_i32_0 = arith.constant 0 : i32
    %c0_i32_1 = arith.constant 0 : i32
    return %c0_i32, %c0_i32_0 : i32, i32
  }
  func.func @transform_4(%arg0: i32) -> (i32, i32) {
    %c0_i32 = arith.constant 0 : i32
    %c0_i32_0 = arith.constant 0 : i32
    %c0_i32_1 = arith.constant 0 : i32
    return %c0_i32, %c0_i32_0 : i32, i32
  }
  func.func @transform_5(%arg0: i32) -> (i32, i32) {
    %c0_i32 = arith.constant 0 : i32
    %c0_i32_0 = arith.constant 0 : i32
    %c0_i32_1 = arith.constant 0 : i32
    return %c0_i32, %c0_i32_0 : i32, i32
  }
  func.func @transform_6(%arg0: i32) -> (i32, i32) {
    %c0_i32 = arith.constant 0 : i32
    %c0_i32_0 = arith.constant 0 : i32
    %c0_i32_1 = arith.constant 0 : i32
    return %c0_i32, %c0_i32_0 : i32, i32
  }
  func.func @transform_7(%arg0: i32) -> (i32, i32) {
    %c0_i32 = arith.constant 0 : i32
    %c0_i32_0 = arith.constant 0 : i32
    %c0_i32_1 = arith.constant 0 : i32
    return %c0_i32, %c0_i32_0 : i32, i32
  }
  func.func @transform_8(%arg0: i32) -> (i32, i32) {
    %c0_i32 = arith.constant 0 : i32
    %c0_i32_0 = arith.constant 0 : i32
    %c0_i32_1 = arith.constant 0 : i32
    return %c0_i32, %c0_i32_0 : i32, i32
  }
  func.func @transform_9(%arg0: i32) -> (i32, i32) {
    %c0_i32 = arith.constant 0 : i32
    %c0_i32_0 = arith.constant 0 : i32
    %c0_i32_1 = arith.constant 0 : i32
    return %c0_i32, %c0_i32_0 : i32, i32
  }
  func.func @transform_10(%arg0: i32) -> (i32, i32) {
    %c0_i32 = arith.constant 0 : i32
    %c0_i32_0 = arith.constant 0 : i32
    return %arg0, %c0_i32 : i32, i32
  }
  func.func @transform_11(%arg0: i32) -> (i32, i32) {
    %c0_i32 = arith.constant 0 : i32
    %c0_i32_0 = arith.constant 0 : i32
    return %arg0, %c0_i32 : i32, i32
  }
}

</mosaic_0001>

<llo_original>
// kernel: tpu_custom_call.1
$region0: #{tpu_custom_call.1}
  #allocation0 [shape = 'u32[]', space=smem, size = 0x4, offset = 0x4, fixed_abs, tag = 'smem constant byte address 0x4 - core index']
  #allocation1 [shape = 'u32[144,128]{1,0:T(1,128)}', space=vmem, size = 0x12000, scoped, tag = 'internal scratch']
  %s0 = inlined_call_operand.hbm [shape: bf16[16,784], index: 0, kind: input, shape index: {}]
  %s1 = inlined_call_operand.hbm [shape: f32[16,128], index: 1, kind: input, shape index: {}]
  %s2 = inlined_call_operand.hbm [shape: bf16[784,512], index: 2, kind: input, shape index: {}]
  %s3 = inlined_call_operand.vmem [shape: f32[1,512], index: 3, kind: input, shape index: {}]
  %s4 = inlined_call_operand.hbm [shape: bf16[512,128], index: 4, kind: input, shape index: {}]
  %s5 = inlined_call_operand.vmem [shape: f32[1,128], index: 5, kind: input, shape index: {}]
  %s6 = inlined_call_operand.hbm [shape: bf16[128,512], index: 6, kind: input, shape index: {}]
  %s7 = inlined_call_operand.vmem [shape: f32[1,512], index: 7, kind: input, shape index: {}]
  %s8 = inlined_call_operand.hbm [shape: bf16[512,896], index: 8, kind: input, shape index: {}]
  %s9 = inlined_call_operand.vmem [shape: f32[1,896], index: 9, kind: input, shape index: {}]
  %s10 = inlined_call_operand.hbm [shape: f32[16,896], index: 10, kind: output, shape index: {0}]
  %s11 = inlined_call_operand.hbm [shape: f32[16,128], index: 11, kind: output, shape index: {1}]
  %12 = xla_tuple %s10, %s11
  %s13 = sld [smem:[#allocation0]]
  $region82: #{tpu_custom_call.1} parent=0
    _
  %s15 = ssub.s32 1, %s13
  %s16 = scalar_select 0, %s15, %s13
  $region1: #{tpu_custom_call.1} parent=0
    #allocation2 [shape = 'u8[28672]{0}', space=vmem, size = 0x7000, scoped, tag = 'input window, operand 0, single buffered']
    #allocation3 [shape = 's32[1]{0}', space=sflag, size = 0x4, scoped, tag = 'scoped memory for tpu_custom_call.1']
    #allocation4 [shape = 's32[1]{0}', space=sflag, size = 0x4, scoped, tag = 'scoped memory for tpu_custom_call.1']
    #allocation5 [shape = 'u8[8192]{0}', space=vmem, size = 0x2000, scoped, tag = 'input window, operand 1, single buffered']
    #allocation6 [shape = 's32[1]{0}', space=sflag, size = 0x4, scoped, tag = 'scoped memory for tpu_custom_call.1']
    #allocation7 [shape = 'u8[802816]{0}', space=vmem, size = 0xc4000, scoped, tag = 'input window, operand 2, single buffered']
    #allocation8 [shape = 'u8[131072]{0}', space=vmem, size = 0x20000, scoped, tag = 'input window, operand 4, single buffered']
    #allocation9 [shape = 's32[1]{0}', space=sflag, size = 0x4, scoped, tag = 'scoped memory for tpu_custom_call.1']
    #allocation10 [shape = 'u8[131072]{0}', space=vmem, size = 0x20000, scoped, tag = 'input window, operand 6, single buffered']
    #allocation11 [shape = 'u8[917504]{0}', space=vmem, size = 0xe0000, scoped, tag = 'input window, operand 8, single buffered']
    #allocation12 [shape = 's32[1]{0}', space=sflag, size = 0x4, scoped, tag = 'scoped memory for tpu_custom_call.1']
    #allocation13 [shape = 'u8[57344]{0}', space=vmem, size = 0xe000, scoped, tag = 'output window, operand 0, single buffered']
    #allocation14 [shape = 'u8[8192]{0}', space=vmem, size = 0x2000, scoped, tag = 'output window, operand 1, single buffered']
    #allocation15 [shape = 's32[1]{0}', space=sflag, size = 0x4, scoped, tag = 'scoped memory for tpu_custom_call.1']
    %17 = vsyncpa [#allocation3], 0
    %18 = vsyncpa [#allocation6], 0
    %19 = vsyncpa [#allocation9], 0
    %20 = vsyncpa [#allocation12], 0
    %21 = vsyncpa [#allocation4], 0
    %22 = vsyncpa [#allocation15], 0
    // Predicated region
    $region2: #{tpu_custom_call.1} parent=1 // pred_check
      _
    $region3: #{tpu_custom_call.1} parent=1 // pred_check_branch
      %24 = sbr.rel (0) target = $region5
    $region4: #{tpu_custom_call.1} parent=1 // pred_region
      %s26 = ssub.s32 896, 896
      %27 = vsyncadd [#allocation3], %s26
      %s28 = sshll.u32 [#allocation2], 4
      %s29 = int_to_ptr.vmem [resolvable:$true] %s28
      %34 = dma.hbm_to_vmem [thread:$0]  %s0, 896, %s29, [#allocation3], 448, 448, 28
    $region5: #{tpu_custom_call.1} parent=1 // pred_fallthru
      _
    // Predicated region
    $region6: #{tpu_custom_call.1} parent=1 // pred_check
      _
    $region7: #{tpu_custom_call.1} parent=1 // pred_check_branch
      %36 = sbr.rel (0) target = $region9
    $region8: #{tpu_custom_call.1} parent=1 // pred_region
      %s38 = ssub.s32 256, 256
      %39 = vsyncadd [#allocation6], %s38
      %s40 = sshll.u32 [#allocation5], 4
      %s41 = int_to_ptr.vmem [resolvable:$true] %s40
      %46 = dma.hbm_to_vmem [thread:$0]  %s1, 256, %s41, [#allocation6], 128, 128, 8
    $region9: #{tpu_custom_call.1} parent=1 // pred_fallthru
      _
    // Predicated region
    $region10: #{tpu_custom_call.1} parent=1 // pred_check
      _
    $region11: #{tpu_custom_call.1} parent=1 // pred_check_branch
      %48 = sbr.rel (0) target = $region13
    $region12: #{tpu_custom_call.1} parent=1 // pred_region
      %s50 = ssub.s32 25088, 25088
      %51 = vsyncadd [#allocation6], %s50
      %s52 = sshll.u32 [#allocation7], 4
      %s53 = int_to_ptr.vmem [resolvable:$true] %s52
      %58 = dma.hbm_to_vmem [thread:$0]  %s2, 25088, %s53, [#allocation6], 256, 256, 16
    $region13: #{tpu_custom_call.1} parent=1 // pred_fallthru
      _
    // Predicated region
    $region14: #{tpu_custom_call.1} parent=1 // pred_check
      _
    $region15: #{tpu_custom_call.1} parent=1 // pred_check_branch
      %60 = sbr.rel (0) target = $region17
    $region16: #{tpu_custom_call.1} parent=1 // pred_region
      _
    $region17: #{tpu_custom_call.1} parent=1 // pred_fallthru
      _
    // Predicated region
    $region18: #{tpu_custom_call.1} parent=1 // pred_check
      _
    $region19: #{tpu_custom_call.1} parent=1 // pred_check_branch
      %62 = sbr.rel (0) target = $region21
    $region20: #{tpu_custom_call.1} parent=1 // pred_region
      %s64 = ssub.s32 4096, 4096
      %65 = vsyncadd [#allocation9], %s64
      %s66 = sshll.u32 [#allocation8], 4
      %s67 = int_to_ptr.vmem [resolvable:$true] %s66
      %72 = dma.hbm_to_vmem [thread:$0]  %s4, 4096, %s67, [#allocation9], 64, 64, 4
    $region21: #{tpu_custom_call.1} parent=1 // pred_fallthru
      _
    // Predicated region
    $region22: #{tpu_custom_call.1} parent=1 // pred_check
      _
    $region23: #{tpu_custom_call.1} parent=1 // pred_check_branch
      %74 = sbr.rel (0) target = $region25
    $region24: #{tpu_custom_call.1} parent=1 // pred_region
      _
    $region25: #{tpu_custom_call.1} parent=1 // pred_fallthru
      _
    // Predicated region
    $region26: #{tpu_custom_call.1} parent=1 // pred_check
      _
    $region27: #{tpu_custom_call.1} parent=1 // pred_check_branch
      %76 = sbr.rel (0) target = $region29
    $region28: #{tpu_custom_call.1} parent=1 // pred_region
      %s78 = ssub.s32 4096, 4096
      %79 = vsyncadd [#allocation9], %s78
      %s80 = sshll.u32 [#allocation10], 4
      %s81 = int_to_ptr.vmem [resolvable:$true] %s80
      %86 = dma.hbm_to_vmem [thread:$0]  %s6, 4096, %s81, [#allocation9], 256, 256, 16
    $region29: #{tpu_custom_call.1} parent=1 // pred_fallthru
      _
    // Predicated region
    $region30: #{tpu_custom_call.1} parent=1 // pred_check
      _
    $region31: #{tpu_custom_call.1} parent=1 // pred_check_branch
      %88 = sbr.rel (0) target = $region33
    $region32: #{tpu_custom_call.1} parent=1 // pred_region
      _
    $region33: #{tpu_custom_call.1} parent=1 // pred_fallthru
      _
    // Predicated region
    $region34: #{tpu_custom_call.1} parent=1 // pred_check
      _
    $region35: #{tpu_custom_call.1} parent=1 // pred_check_branch
      %90 = sbr.rel (0) target = $region37
    $region36: #{tpu_custom_call.1} parent=1 // pred_region
      %s92 = ssub.s32 28672, 28672
      %93 = vsyncadd [#allocation12], %s92
      %s94 = sshll.u32 [#allocation11], 4
      %s95 = int_to_ptr.vmem [resolvable:$true] %s94
      %100 = dma.hbm_to_vmem [thread:$0]  %s8, 28672, %s95, [#allocation12], 448, 448, 28
    $region37: #{tpu_custom_call.1} parent=1 // pred_fallthru
      _
    // Predicated region
    $region38: #{tpu_custom_call.1} parent=1 // pred_check
      _
    $region39: #{tpu_custom_call.1} parent=1 // pred_check_branch
      %102 = sbr.rel (0) target = $region41
    $region40: #{tpu_custom_call.1} parent=1 // pred_region
      _
    $region41: #{tpu_custom_call.1} parent=1 // pred_fallthru
      _
    // Predicated region
    $region42: #{tpu_custom_call.1} parent=1 // pred_check
      _
    $region43: #{tpu_custom_call.1} parent=1 // pred_check_branch
      %104 = sbr.rel (0) target = $region45
    $region44: #{tpu_custom_call.1} parent=1 // pred_region
      %105 = dma.done [#allocation3], 896
    $region45: #{tpu_custom_call.1} parent=1 // pred_fallthru
      _
    // Predicated region
    $region46: #{tpu_custom_call.1} parent=1 // pred_check
      _
    $region47: #{tpu_custom_call.1} parent=1 // pred_check_branch
      %107 = sbr.rel (0) target = $region49
    $region48: #{tpu_custom_call.1} parent=1 // pred_region
      %108 = dma.done [#allocation6], 256
    $region49: #{tpu_custom_call.1} parent=1 // pred_fallthru
      _
    // Predicated region
    $region50: #{tpu_custom_call.1} parent=1 // pred_check
      _
    $region51: #{tpu_custom_call.1} parent=1 // pred_check_branch
      %110 = sbr.rel (0) target = $region53
    $region52: #{tpu_custom_call.1} parent=1 // pred_region
      %111 = dma.done [#allocation6], 25088
    $region53: #{tpu_custom_call.1} parent=1 // pred_fallthru
      _
    // Predicated region
    $region54: #{tpu_custom_call.1} parent=1 // pred_check
      _
    $region55: #{tpu_custom_call.1} parent=1 // pred_check_branch
      %113 = sbr.rel (0) target = $region57
    $region56: #{tpu_custom_call.1} parent=1 // pred_region
      %114 = dma.done [#allocation9], 4096
    $region57: #{tpu_custom_call.1} parent=1 // pred_fallthru
      _
    // Predicated region
    $region58: #{tpu_custom_call.1} parent=1 // pred_check
      _
    $region59: #{tpu_custom_call.1} parent=1 // pred_check_branch
      %116 = sbr.rel (0) target = $region61
    $region60: #{tpu_custom_call.1} parent=1 // pred_region
      %117 = dma.done [#allocation9], 4096
    $region61: #{tpu_custom_call.1} parent=1 // pred_fallthru
      _
    // Predicated region
    $region62: #{tpu_custom_call.1} parent=1 // pred_check
      _
    $region63: #{tpu_custom_call.1} parent=1 // pred_check_branch
      %119 = sbr.rel (0) target = $region65
    $region64: #{tpu_custom_call.1} parent=1 // pred_region
      %120 = dma.done [#allocation12], 28672
    $region65: #{tpu_custom_call.1} parent=1 // pred_fallthru
      _
    %v122 = vld [vmem:[#allocation2] sm:$0xff]
    %v123 = vld [vmem:[#allocation2 + $0x8] sm:$0xff]
    %v124 = vld [vmem:[#allocation2 + $0x10] sm:$0xff]
    %v125 = vld [vmem:[#allocation2 + $0x18] sm:$0xf]
    %v126 = vld [vmem:[#allocation2 + $0x1c] sm:$0xff]
    %v127 = vld [vmem:[#allocation2 + $0x24] sm:$0xff]
    %v128 = vld [vmem:[#allocation2 + $0x2c] sm:$0xff]
    %v129 = vld [vmem:[#allocation2 + $0x34] sm:$0xf]
    %v130 = vld [vmem:[#allocation7] sm:$0xff]
    %v131 = vld [vmem:[#allocation7 + $0x8] sm:$0xff]
    %v132 = vld [vmem:[#allocation7 + $0x10] sm:$0xff]
    %v133 = vld [vmem:[#allocation7 + $0x18] sm:$0xff]
    %v134 = vld [vmem:[#allocation7 + $0x20] sm:$0xff]
    %v135 = vld [vmem:[#allocation7 + $0x28] sm:$0xff]
    %v136 = vld [vmem:[#allocation7 + $0x30] sm:$0xff]
    %v137 = vld [vmem:[#allocation7 + $0x38] sm:$0xff]
    %v138 = vld [vmem:[#allocation7 + $0x40] sm:$0xff]
    %v139 = vld [vmem:[#allocation7 + $0x48] sm:$0xff]
    %v140 = vld [vmem:[#allocation7 + $0x50] sm:$0xff]
    %v141 = vld [vmem:[#allocation7 + $0x58] sm:$0xff]
    %v142 = vld [vmem:[#allocation7 + $0x60] sm:$0xff]
    %v143 = vld [vmem:[#allocation7 + $0x68] sm:$0xff]
    %v144 = vld [vmem:[#allocation7 + $0x70] sm:$0xff]
    %v145 = vld [vmem:[#allocation7 + $0x78] sm:$0xff]
    %v146 = vld [vmem:[#allocation7 + $0x80] sm:$0xff]
    %v147 = vld [vmem:[#allocation7 + $0x88] sm:$0xff]
    %v148 = vld [vmem:[#allocation7 + $0x90] sm:$0xff]
    %v149 = vld [vmem:[#allocation7 + $0x98] sm:$0xff]
    %v150 = vld [vmem:[#allocation7 + $0xa0] sm:$0xff]
    %v151 = vld [vmem:[#allocation7 + $0xa8] sm:$0xff]
    %v152 = vld [vmem:[#allocation7 + $0xb0] sm:$0xff]
    %v153 = vld [vmem:[#allocation7 + $0xb8] sm:$0xff]
    %v154 = vld [vmem:[#allocation7 + $0xc0] sm:$0xff]
    %v155 = vld [vmem:[#allocation7 + $0xc8] sm:$0xff]
    %v156 = vld [vmem:[#allocation7 + $0xd0] sm:$0xff]
    %v157 = vld [vmem:[#allocation7 + $0xd8] sm:$0xff]
    %v158 = vld [vmem:[#allocation7 + $0xe0] sm:$0xff]
    %v159 = vld [vmem:[#allocation7 + $0xe8] sm:$0xff]
    %v160 = vld [vmem:[#allocation7 + $0xf0] sm:$0xff]
    %v161 = vld [vmem:[#allocation7 + $0xf8] sm:$0xff]
    %v162 = vld [vmem:[#allocation7 + $0x100] sm:$0xff]
    %v163 = vld [vmem:[#allocation7 + $0x108] sm:$0xff]
    %v164 = vld [vmem:[#allocation7 + $0x110] sm:$0xff]
    %v165 = vld [vmem:[#allocation7 + $0x118] sm:$0xff]
    %v166 = vld [vmem:[#allocation7 + $0x120] sm:$0xff]
    %v167 = vld [vmem:[#allocation7 + $0x128] sm:$0xff]
    %v168 = vld [vmem:[#allocation7 + $0x130] sm:$0xff]
    %v169 = vld [vmem:[#allocation7 + $0x138] sm:$0xff]
    %v170 = vld [vmem:[#allocation7 + $0x140] sm:$0xff]
    %v171 = vld [vmem:[#allocation7 + $0x148] sm:$0xff]
    %v172 = vld [vmem:[#allocation7 + $0x150] sm:$0xff]
    %v173 = vld [vmem:[#allocation7 + $0x158] sm:$0xff]
    %v174 = vld [vmem:[#allocation7 + $0x160] sm:$0xff]
    %v175 = vld [vmem:[#allocation7 + $0x168] sm:$0xff]
    %v176 = vld [vmem:[#allocation7 + $0x170] sm:$0xff]
    %v177 = vld [vmem:[#allocation7 + $0x178] sm:$0xff]
    %v178 = vld [vmem:[#allocation7 + $0x180] sm:$0xff]
    %v179 = vld [vmem:[#allocation7 + $0x188] sm:$0xff]
    %v180 = vld [vmem:[#allocation7 + $0x190] sm:$0xff]
    %v181 = vld [vmem:[#allocation7 + $0x198] sm:$0xff]
    %v182 = vld [vmem:[#allocation7 + $0x1a0] sm:$0xff]
    %v183 = vld [vmem:[#allocation7 + $0x1a8] sm:$0xff]
    %v184 = vld [vmem:[#allocation7 + $0x1b0] sm:$0xff]
    %v185 = vld [vmem:[#allocation7 + $0x1b8] sm:$0xff]
    %v186 = vld [vmem:[#allocation7 + $0x1c0] sm:$0xff]
    %v187 = vld [vmem:[#allocation7 + $0x1c8] sm:$0xff]
    %v188 = vld [vmem:[#allocation7 + $0x1d0] sm:$0xff]
    %v189 = vld [vmem:[#allocation7 + $0x1d8] sm:$0xff]
    %v190 = vld [vmem:[#allocation7 + $0x1e0] sm:$0xff]
    %v191 = vld [vmem:[#allocation7 + $0x1e8] sm:$0xff]
    %v192 = vld [vmem:[#allocation7 + $0x1f0] sm:$0xff]
    %v193 = vld [vmem:[#allocation7 + $0x1f8] sm:$0xff]
    %v194 = vld [vmem:[#allocation7 + $0x200] sm:$0xff]
    %v195 = vld [vmem:[#allocation7 + $0x208] sm:$0xff]
    %v196 = vld [vmem:[#allocation7 + $0x210] sm:$0xff]
    %v197 = vld [vmem:[#allocation7 + $0x218] sm:$0xff]
    %v198 = vld [vmem:[#allocation7 + $0x220] sm:$0xff]
    %v199 = vld [vmem:[#allocation7 + $0x228] sm:$0xff]
    %v200 = vld [vmem:[#allocation7 + $0x230] sm:$0xff]
    %v201 = vld [vmem:[#allocation7 + $0x238] sm:$0xff]
    %v202 = vld [vmem:[#allocation7 + $0x240] sm:$0xff]
    %v203 = vld [vmem:[#allocation7 + $0x248] sm:$0xff]
    %v204 = vld [vmem:[#allocation7 + $0x250] sm:$0xff]
    %v205 = vld [vmem:[#allocation7 + $0x258] sm:$0xff]
    %v206 = vld [vmem:[#allocation7 + $0x260] sm:$0xff]
    %v207 = vld [vmem:[#allocation7 + $0x268] sm:$0xff]
    %v208 = vld [vmem:[#allocation7 + $0x270] sm:$0xff]
    %v209 = vld [vmem:[#allocation7 + $0x278] sm:$0xff]
    %v210 = vld [vmem:[#allocation7 + $0x280] sm:$0xff]
    %v211 = vld [vmem:[#allocation7 + $0x288] sm:$0xff]
    %v212 = vld [vmem:[#allocation7 + $0x290] sm:$0xff]
    %v213 = vld [vmem:[#allocation7 + $0x298] sm:$0xff]
    %v214 = vld [vmem:[#allocation7 + $0x2a0] sm:$0xff]
    %v215 = vld [vmem:[#allocation7 + $0x2a8] sm:$0xff]
    %v216 = vld [vmem:[#allocation7 + $0x2b0] sm:$0xff]
    %v217 = vld [vmem:[#allocation7 + $0x2b8] sm:$0xff]
    %v218 = vld [vmem:[#allocation7 + $0x2c0] sm:$0xff]
    %v219 = vld [vmem:[#allocation7 + $0x2c8] sm:$0xff]
    %v220 = vld [vmem:[#allocation7 + $0x2d0] sm:$0xff]
    %v221 = vld [vmem:[#allocation7 + $0x2d8] sm:$0xff]
    %v222 = vld [vmem:[#allocation7 + $0x2e0] sm:$0xff]
    %v223 = vld [vmem:[#allocation7 + $0x2e8] sm:$0xff]
    %v224 = vld [vmem:[#allocation7 + $0x2f0] sm:$0xff]
    %v225 = vld [vmem:[#allocation7 + $0x2f8] sm:$0xff]
    %v226 = vld [vmem:[#allocation7 + $0x300] sm:$0xff]
    %v227 = vld [vmem:[#allocation7 + $0x308] sm:$0xff]
    %v228 = vld [vmem:[#allocation7 + $0x310] sm:$0xff]
    %v229 = vld [vmem:[#allocation7 + $0x318] sm:$0xff]
    %v230 = vld [vmem:[#allocation7 + $0x320] sm:$0xff]
    %v231 = vld [vmem:[#allocation7 + $0x328] sm:$0xff]
    %v232 = vld [vmem:[#allocation7 + $0x330] sm:$0xff]
    %v233 = vld [vmem:[#allocation7 + $0x338] sm:$0xff]
    %v234 = vld [vmem:[#allocation7 + $0x340] sm:$0xff]
    %v235 = vld [vmem:[#allocation7 + $0x348] sm:$0xff]
    %v236 = vld [vmem:[#allocation7 + $0x350] sm:$0xff]
    %v237 = vld [vmem:[#allocation7 + $0x358] sm:$0xff]
    %v238 = vld [vmem:[#allocation7 + $0x360] sm:$0xff]
    %v239 = vld [vmem:[#allocation7 + $0x368] sm:$0xff]
    %v240 = vld [vmem:[#allocation7 + $0x370] sm:$0xff]
    %v241 = vld [vmem:[#allocation7 + $0x378] sm:$0xff]
    %v242 = vld [vmem:[#allocation7 + $0x380] sm:$0xff]
    %v243 = vld [vmem:[#allocation7 + $0x388] sm:$0xff]
    %v244 = vld [vmem:[#allocation7 + $0x390] sm:$0xff]
    %v245 = vld [vmem:[#allocation7 + $0x398] sm:$0xff]
    %v246 = vld [vmem:[#allocation7 + $0x3a0] sm:$0xff]
    %v247 = vld [vmem:[#allocation7 + $0x3a8] sm:$0xff]
    %v248 = vld [vmem:[#allocation7 + $0x3b0] sm:$0xff]
    %v249 = vld [vmem:[#allocation7 + $0x3b8] sm:$0xff]
    %v250 = vld [vmem:[#allocation7 + $0x3c0] sm:$0xff]
    %v251 = vld [vmem:[#allocation7 + $0x3c8] sm:$0xff]
    %v252 = vld [vmem:[#allocation7 + $0x3d0] sm:$0xff]
    %v253 = vld [vmem:[#allocation7 + $0x3d8] sm:$0xff]
    %v254 = vld [vmem:[#allocation7 + $0x3e0] sm:$0xff]
    %v255 = vld [vmem:[#allocation7 + $0x3e8] sm:$0xff]
    %v256 = vld [vmem:[#allocation7 + $0x3f0] sm:$0xff]
    %v257 = vld [vmem:[#allocation7 + $0x3f8] sm:$0xff]
    %v258 = vld [vmem:[#allocation7 + $0x400] sm:$0xff]
    %v259 = vld [vmem:[#allocation7 + $0x408] sm:$0xff]
    %v260 = vld [vmem:[#allocation7 + $0x410] sm:$0xff]
    %v261 = vld [vmem:[#allocation7 + $0x418] sm:$0xff]
    %v262 = vld [vmem:[#allocation7 + $0x420] sm:$0xff]
    %v263 = vld [vmem:[#allocation7 + $0x428] sm:$0xff]
    %v264 = vld [vmem:[#allocation7 + $0x430] sm:$0xff]
    %v265 = vld [vmem:[#allocation7 + $0x438] sm:$0xff]
    %v266 = vld [vmem:[#allocation7 + $0x440] sm:$0xff]
    %v267 = vld [vmem:[#allocation7 + $0x448] sm:$0xff]
    %v268 = vld [vmem:[#allocation7 + $0x450] sm:$0xff]
    %v269 = vld [vmem:[#allocation7 + $0x458] sm:$0xff]
    %v270 = vld [vmem:[#allocation7 + $0x460] sm:$0xff]
    %v271 = vld [vmem:[#allocation7 + $0x468] sm:$0xff]
    %v272 = vld [vmem:[#allocation7 + $0x470] sm:$0xff]
    %v273 = vld [vmem:[#allocation7 + $0x478] sm:$0xff]
    %v274 = vld [vmem:[#allocation7 + $0x480] sm:$0xff]
    %v275 = vld [vmem:[#allocation7 + $0x488] sm:$0xff]
    %v276 = vld [vmem:[#allocation7 + $0x490] sm:$0xff]
    %v277 = vld [vmem:[#allocation7 + $0x498] sm:$0xff]
    %v278 = vld [vmem:[#allocation7 + $0x4a0] sm:$0xff]
    %v279 = vld [vmem:[#allocation7 + $0x4a8] sm:$0xff]
    %v280 = vld [vmem:[#allocation7 + $0x4b0] sm:$0xff]
    %v281 = vld [vmem:[#allocation7 + $0x4b8] sm:$0xff]
    %v282 = vld [vmem:[#allocation7 + $0x4c0] sm:$0xff]
    %v283 = vld [vmem:[#allocation7 + $0x4c8] sm:$0xff]
    %v284 = vld [vmem:[#allocation7 + $0x4d0] sm:$0xff]
    %v285 = vld [vmem:[#allocation7 + $0x4d8] sm:$0xff]
    %v286 = vld [vmem:[#allocation7 + $0x4e0] sm:$0xff]
    %v287 = vld [vmem:[#allocation7 + $0x4e8] sm:$0xff]
    %v288 = vld [vmem:[#allocation7 + $0x4f0] sm:$0xff]
    %v289 = vld [vmem:[#allocation7 + $0x4f8] sm:$0xff]
    %v290 = vld [vmem:[#allocation7 + $0x500] sm:$0xff]
    %v291 = vld [vmem:[#allocation7 + $0x508] sm:$0xff]
    %v292 = vld [vmem:[#allocation7 + $0x510] sm:$0xff]
    %v293 = vld [vmem:[#allocation7 + $0x518] sm:$0xff]
    %v294 = vld [vmem:[#allocation7 + $0x520] sm:$0xff]
    %v295 = vld [vmem:[#allocation7 + $0x528] sm:$0xff]
    %v296 = vld [vmem:[#allocation7 + $0x530] sm:$0xff]
    %v297 = vld [vmem:[#allocation7 + $0x538] sm:$0xff]
    %v298 = vld [vmem:[#allocation7 + $0x540] sm:$0xff]
    %v299 = vld [vmem:[#allocation7 + $0x548] sm:$0xff]
    %v300 = vld [vmem:[#allocation7 + $0x550] sm:$0xff]
    %v301 = vld [vmem:[#allocation7 + $0x558] sm:$0xff]
    %v302 = vld [vmem:[#allocation7 + $0x560] sm:$0xff]
    %v303 = vld [vmem:[#allocation7 + $0x568] sm:$0xff]
    %v304 = vld [vmem:[#allocation7 + $0x570] sm:$0xff]
    %v305 = vld [vmem:[#allocation7 + $0x578] sm:$0xff]
    %v306 = vld [vmem:[#allocation7 + $0x580] sm:$0xff]
    %v307 = vld [vmem:[#allocation7 + $0x588] sm:$0xff]
    %v308 = vld [vmem:[#allocation7 + $0x590] sm:$0xff]
    %v309 = vld [vmem:[#allocation7 + $0x598] sm:$0xff]
    %v310 = vld [vmem:[#allocation7 + $0x5a0] sm:$0xff]
    %v311 = vld [vmem:[#allocation7 + $0x5a8] sm:$0xff]
    %v312 = vld [vmem:[#allocation7 + $0x5b0] sm:$0xff]
    %v313 = vld [vmem:[#allocation7 + $0x5b8] sm:$0xff]
    %v314 = vld [vmem:[#allocation7 + $0x5c0] sm:$0xff]
    %v315 = vld [vmem:[#allocation7 + $0x5c8] sm:$0xff]
    %v316 = vld [vmem:[#allocation7 + $0x5d0] sm:$0xff]
    %v317 = vld [vmem:[#allocation7 + $0x5d8] sm:$0xff]
    %v318 = vld [vmem:[#allocation7 + $0x5e0] sm:$0xff]
    %v319 = vld [vmem:[#allocation7 + $0x5e8] sm:$0xff]
    %v320 = vld [vmem:[#allocation7 + $0x5f0] sm:$0xff]
    %v321 = vld [vmem:[#allocation7 + $0x5f8] sm:$0xff]
    %v322 = vld [vmem:[#allocation7 + $0x600] sm:$0xff]
    %v323 = vld [vmem:[#allocation7 + $0x608] sm:$0xff]
    %v324 = vld [vmem:[#allocation7 + $0x610] sm:$0xff]
    %v325 = vld [vmem:[#allocation7 + $0x618] sm:$0xff]
    %v326 = vld [vmem:[%s3] sm:$0xf]
    %v328 = vlaneseq
    %v329 = vshrl.u32 %v328, 7
    %v330 = vsub.s32 0, %v329
    %v331 = vrot.slane %v326, %v330
    %v332 = vlaneseq
    %v333 = vshrl.u32 %v332, 7
    %v334 = vsub.s32 1, %v333
    %v335 = vrot.slane %v326, %v334
    %v336 = vlaneseq
    %v337 = vshrl.u32 %v336, 7
    %v338 = vsub.s32 2, %v337
    %v339 = vrot.slane %v326, %v338
    %v340 = vlaneseq
    %v341 = vshrl.u32 %v340, 7
    %v342 = vsub.s32 3, %v341
    %v343 = vrot.slane %v326, %v342
    %v356 = vunpack.c.l.b16 %v122
    %v357 = vunpack.c.h.b16 %v122
    %v358 = vunpack.c.l.b16 %v123
    %v359 = vunpack.c.h.b16 %v123
    %v360 = vunpack.c.l.b16 %v124
    %v361 = vunpack.c.h.b16 %v124
    %v362 = vunpack.c.l.b16 %v125
    %v363 = vunpack.c.l.b16 %v126
    %v364 = vunpack.c.h.b16 %v126
    %v365 = vunpack.c.l.b16 %v127
    %v366 = vunpack.c.h.b16 %v127
    %v367 = vunpack.c.l.b16 %v128
    %v368 = vunpack.c.h.b16 %v128
    %v369 = vunpack.c.l.b16 %v129
    %v370 = vpack.c.b16 %v363, %v356
    %v371 = vpack.c.b16 %v364, %v357
    %v372 = vpack.c.b16 %v365, %v358
    %v373 = vpack.c.b16 %v366, %v359
    %v374 = vpack.c.b16 %v367, %v360
    %v375 = vpack.c.b16 %v368, %v361
    %v376 = vpack.c.b16 %v369, %v362
    %v579 = vunpack.c.l.b16 %v130
    %v580 = vunpack.c.h.b16 %v130
    %v581 = vunpack.c.l.b16 %v131
    %v582 = vunpack.c.h.b16 %v131
    %v583 = vunpack.c.l.b16 %v132
    %v584 = vunpack.c.h.b16 %v132
    %v585 = vunpack.c.l.b16 %v133
    %v586 = vunpack.c.h.b16 %v133
    %v587 = vunpack.c.l.b16 %v134
    %v588 = vunpack.c.h.b16 %v134
    %v589 = vunpack.c.l.b16 %v135
    %v590 = vunpack.c.h.b16 %v135
    %v591 = vunpack.c.l.b16 %v136
    %v592 = vunpack.c.h.b16 %v136
    %v593 = vunpack.c.l.b16 %v137
    %v594 = vunpack.c.h.b16 %v137
    %v595 = vunpack.c.l.b16 %v138
    %v596 = vunpack.c.h.b16 %v138
    %v597 = vunpack.c.l.b16 %v139
    %v598 = vunpack.c.h.b16 %v139
    %v599 = vunpack.c.l.b16 %v140
    %v600 = vunpack.c.h.b16 %v140
    %v601 = vunpack.c.l.b16 %v141
    %v602 = vunpack.c.h.b16 %v141
    %v603 = vunpack.c.l.b16 %v142
    %v604 = vunpack.c.h.b16 %v142
    %v605 = vunpack.c.l.b16 %v143
    %v606 = vunpack.c.h.b16 %v143
    %v607 = vunpack.c.l.b16 %v144
    %v608 = vunpack.c.h.b16 %v144
    %v609 = vunpack.c.l.b16 %v145
    %v610 = vunpack.c.h.b16 %v145
    %v611 = vunpack.c.l.b16 %v146
    %v612 = vunpack.c.h.b16 %v146
    %v613 = vunpack.c.l.b16 %v147
    %v614 = vunpack.c.h.b16 %v147
    %v615 = vunpack.c.l.b16 %v148
    %v616 = vunpack.c.h.b16 %v148
    %v617 = vunpack.c.l.b16 %v149
    %v618 = vunpack.c.h.b16 %v149
    %v619 = vunpack.c.l.b16 %v150
    %v620 = vunpack.c.h.b16 %v150
    %v621 = vunpack.c.l.b16 %v151
    %v622 = vunpack.c.h.b16 %v151
    %v623 = vunpack.c.l.b16 %v152
    %v624 = vunpack.c.h.b16 %v152
    %v625 = vunpack.c.l.b16 %v153
    %v626 = vunpack.c.h.b16 %v153
    %v627 = vunpack.c.l.b16 %v154
    %v628 = vunpack.c.h.b16 %v154
    %v629 = vunpack.c.l.b16 %v155
    %v630 = vunpack.c.h.b16 %v155
    %v631 = vunpack.c.l.b16 %v156
    %v632 = vunpack.c.h.b16 %v156
    %v633 = vunpack.c.l.b16 %v157
    %v634 = vunpack.c.h.b16 %v157
    %v635 = vunpack.c.l.b16 %v158
    %v636 = vunpack.c.h.b16 %v158
    %v637 = vunpack.c.l.b16 %v159
    %v638 = vunpack.c.h.b16 %v159
    %v639 = vunpack.c.l.b16 %v160
    %v640 = vunpack.c.h.b16 %v160
    %v641 = vunpack.c.l.b16 %v161
    %v642 = vunpack.c.h.b16 %v161
    %v643 = vunpack.c.l.b16 %v162
    %v644 = vunpack.c.h.b16 %v162
    %v645 = vunpack.c.l.b16 %v163
    %v646 = vunpack.c.h.b16 %v163
    %v647 = vunpack.c.l.b16 %v164
    %v648 = vunpack.c.h.b16 %v164
    %v649 = vunpack.c.l.b16 %v165
    %v650 = vunpack.c.h.b16 %v165
    %v651 = vunpack.c.l.b16 %v166
    %v652 = vunpack.c.h.b16 %v166
    %v653 = vunpack.c.l.b16 %v167
    %v654 = vunpack.c.h.b16 %v167
    %v655 = vunpack.c.l.b16 %v168
    %v656 = vunpack.c.h.b16 %v168
    %v657 = vunpack.c.l.b16 %v169
    %v658 = vunpack.c.h.b16 %v169
    %v659 = vunpack.c.l.b16 %v170
    %v660 = vunpack.c.h.b16 %v170
    %v661 = vunpack.c.l.b16 %v171
    %v662 = vunpack.c.h.b16 %v171
    %v663 = vunpack.c.l.b16 %v172
    %v664 = vunpack.c.h.b16 %v172
    %v665 = vunpack.c.l.b16 %v173
    %v666 = vunpack.c.h.b16 %v173
    %v667 = vunpack.c.l.b16 %v174
    %v668 = vunpack.c.h.b16 %v174
    %v669 = vunpack.c.l.b16 %v175
    %v670 = vunpack.c.h.b16 %v175
    %v671 = vunpack.c.l.b16 %v176
    %v672 = vunpack.c.h.b16 %v176
    %v673 = vunpack.c.l.b16 %v177
    %v674 = vunpack.c.h.b16 %v177
    %v675 = vunpack.c.l.b16 %v178
    %v676 = vunpack.c.h.b16 %v178
    %v677 = vunpack.c.l.b16 %v179
    %v678 = vunpack.c.h.b16 %v179
    %v679 = vunpack.c.l.b16 %v180
    %v680 = vunpack.c.h.b16 %v180
    %v681 = vunpack.c.l.b16 %v181
    %v682 = vunpack.c.h.b16 %v181
    %v683 = vunpack.c.l.b16 %v182
    %v684 = vunpack.c.h.b16 %v182
    %v685 = vunpack.c.l.b16 %v183
    %v686 = vunpack.c.h.b16 %v183
    %v687 = vunpack.c.l.b16 %v184
    %v688 = vunpack.c.h.b16 %v184
    %v689 = vunpack.c.l.b16 %v185
    %v690 = vunpack.c.h.b16 %v185
    %v691 = vunpack.c.l.b16 %v186
    %v692 = vunpack.c.h.b16 %v186
    %v693 = vunpack.c.l.b16 %v187
    %v694 = vunpack.c.h.b16 %v187
    %v695 = vunpack.c.l.b16 %v188
    %v696 = vunpack.c.h.b16 %v188
    %v697 = vunpack.c.l.b16 %v189
    %v698 = vunpack.c.h.b16 %v189
    %v699 = vunpack.c.l.b16 %v190
    %v700 = vunpack.c.h.b16 %v190
    %v701 = vunpack.c.l.b16 %v191
    %v702 = vunpack.c.h.b16 %v191
    %v703 = vunpack.c.l.b16 %v192
    %v704 = vunpack.c.h.b16 %v192
    %v705 = vunpack.c.l.b16 %v193
    %v706 = vunpack.c.h.b16 %v193
    %v707 = vunpack.c.l.b16 %v194
    %v708 = vunpack.c.h.b16 %v194
    %v709 = vunpack.c.l.b16 %v195
    %v710 = vunpack.c.h.b16 %v195
    %v711 = vunpack.c.l.b16 %v196
    %v712 = vunpack.c.h.b16 %v196
    %v713 = vunpack.c.l.b16 %v197
    %v714 = vunpack.c.h.b16 %v197
    %v715 = vunpack.c.l.b16 %v198
    %v716 = vunpack.c.h.b16 %v198
    %v717 = vunpack.c.l.b16 %v199
    %v718 = vunpack.c.h.b16 %v199
    %v719 = vunpack.c.l.b16 %v200
    %v720 = vunpack.c.h.b16 %v200
    %v721 = vunpack.c.l.b16 %v201
    %v722 = vunpack.c.h.b16 %v201
    %v723 = vunpack.c.l.b16 %v202
    %v724 = vunpack.c.h.b16 %v202
    %v725 = vunpack.c.l.b16 %v203
    %v726 = vunpack.c.h.b16 %v203
    %v727 = vunpack.c.l.b16 %v204
    %v728 = vunpack.c.h.b16 %v204
    %v729 = vunpack.c.l.b16 %v205
    %v730 = vunpack.c.h.b16 %v205
    %v731 = vunpack.c.l.b16 %v206
    %v732 = vunpack.c.h.b16 %v206
    %v733 = vunpack.c.l.b16 %v207
    %v734 = vunpack.c.h.b16 %v207
    %v735 = vunpack.c.l.b16 %v208
    %v736 = vunpack.c.h.b16 %v208
    %v737 = vunpack.c.l.b16 %v209
    %v738 = vunpack.c.h.b16 %v209
    %v739 = vunpack.c.l.b16 %v210
    %v740 = vunpack.c.h.b16 %v210
    %v741 = vunpack.c.l.b16 %v211
    %v742 = vunpack.c.h.b16 %v211
    %v743 = vunpack.c.l.b16 %v212
    %v744 = vunpack.c.h.b16 %v212
    %v745 = vunpack.c.l.b16 %v213
    %v746 = vunpack.c.h.b16 %v213
    %v747 = vunpack.c.l.b16 %v214
    %v748 = vunpack.c.h.b16 %v214
    %v749 = vunpack.c.l.b16 %v215
    %v750 = vunpack.c.h.b16 %v215
    %v751 = vunpack.c.l.b16 %v216
    %v752 = vunpack.c.h.b16 %v216
    %v753 = vunpack.c.l.b16 %v217
    %v754 = vunpack.c.h.b16 %v217
    %v755 = vunpack.c.l.b16 %v218
    %v756 = vunpack.c.h.b16 %v218
    %v757 = vunpack.c.l.b16 %v219
    %v758 = vunpack.c.h.b16 %v219
    %v759 = vunpack.c.l.b16 %v220
    %v760 = vunpack.c.h.b16 %v220
    %v761 = vunpack.c.l.b16 %v221
    %v762 = vunpack.c.h.b16 %v221
    %v763 = vunpack.c.l.b16 %v222
    %v764 = vunpack.c.h.b16 %v222
    %v765 = vunpack.c.l.b16 %v223
    %v766 = vunpack.c.h.b16 %v223
    %v767 = vunpack.c.l.b16 %v224
    %v768 = vunpack.c.h.b16 %v224
    %v769 = vunpack.c.l.b16 %v225
    %v770 = vunpack.c.h.b16 %v225
    %v771 = vunpack.c.l.b16 %v226
    %v772 = vunpack.c.h.b16 %v226
    %v773 = vunpack.c.l.b16 %v227
    %v774 = vunpack.c.h.b16 %v227
    %v775 = vunpack.c.l.b16 %v228
    %v776 = vunpack.c.h.b16 %v228
    %v777 = vunpack.c.l.b16 %v229
    %v778 = vunpack.c.h.b16 %v229
    %v779 = vunpack.c.l.b16 %v230
    %v780 = vunpack.c.h.b16 %v230
    %v781 = vunpack.c.l.b16 %v231
    %v782 = vunpack.c.h.b16 %v231
    %v783 = vunpack.c.l.b16 %v232
    %v784 = vunpack.c.h.b16 %v232
    %v785 = vunpack.c.l.b16 %v233
    %v786 = vunpack.c.h.b16 %v233
    %v787 = vunpack.c.l.b16 %v234
    %v788 = vunpack.c.h.b16 %v234
    %v789 = vunpack.c.l.b16 %v235
    %v790 = vunpack.c.h.b16 %v235
    %v791 = vunpack.c.l.b16 %v236
    %v792 = vunpack.c.h.b16 %v236
    %v793 = vunpack.c.l.b16 %v237
    %v794 = vunpack.c.h.b16 %v237
    %v795 = vunpack.c.l.b16 %v238
    %v796 = vunpack.c.h.b16 %v238
    %v797 = vunpack.c.l.b16 %v239
    %v798 = vunpack.c.h.b16 %v239
    %v799 = vunpack.c.l.b16 %v240
    %v800 = vunpack.c.h.b16 %v240
    %v801 = vunpack.c.l.b16 %v241
    %v802 = vunpack.c.h.b16 %v241
    %v803 = vunpack.c.l.b16 %v242
    %v804 = vunpack.c.h.b16 %v242
    %v805 = vunpack.c.l.b16 %v243
    %v806 = vunpack.c.h.b16 %v243
    %v807 = vunpack.c.l.b16 %v244
    %v808 = vunpack.c.h.b16 %v244
    %v809 = vunpack.c.l.b16 %v245
    %v810 = vunpack.c.h.b16 %v245
    %v811 = vunpack.c.l.b16 %v246
    %v812 = vunpack.c.h.b16 %v246
    %v813 = vunpack.c.l.b16 %v247
    %v814 = vunpack.c.h.b16 %v247
    %v815 = vunpack.c.l.b16 %v248
    %v816 = vunpack.c.h.b16 %v248
    %v817 = vunpack.c.l.b16 %v249
    %v818 = vunpack.c.h.b16 %v249
    %v819 = vunpack.c.l.b16 %v250
    %v820 = vunpack.c.h.b16 %v250
    %v821 = vunpack.c.l.b16 %v251
    %v822 = vunpack.c.h.b16 %v251
    %v823 = vunpack.c.l.b16 %v252
    %v824 = vunpack.c.h.b16 %v252
    %v825 = vunpack.c.l.b16 %v253
    %v826 = vunpack.c.h.b16 %v253
    %v827 = vunpack.c.l.b16 %v254
    %v828 = vunpack.c.h.b16 %v254
    %v829 = vunpack.c.l.b16 %v255
    %v830 = vunpack.c.h.b16 %v255
    %v831 = vunpack.c.l.b16 %v256
    %v832 = vunpack.c.h.b16 %v256
    %v833 = vunpack.c.l.b16 %v257
    %v834 = vunpack.c.h.b16 %v257
    %v835 = vunpack.c.l.b16 %v258
    %v836 = vunpack.c.h.b16 %v258
    %v837 = vunpack.c.l.b16 %v259
    %v838 = vunpack.c.h.b16 %v259
    %v839 = vunpack.c.l.b16 %v260
    %v840 = vunpack.c.h.b16 %v260
    %v841 = vunpack.c.l.b16 %v261
    %v842 = vunpack.c.h.b16 %v261
    %v843 = vunpack.c.l.b16 %v262
    %v844 = vunpack.c.h.b16 %v262
    %v845 = vunpack.c.l.b16 %v263
    %v846 = vunpack.c.h.b16 %v263
    %v847 = vunpack.c.l.b16 %v264
    %v848 = vunpack.c.h.b16 %v264
    %v849 = vunpack.c.l.b16 %v265
    %v850 = vunpack.c.h.b16 %v265
    %v851 = vunpack.c.l.b16 %v266
    %v852 = vunpack.c.h.b16 %v266
    %v853 = vunpack.c.l.b16 %v267
    %v854 = vunpack.c.h.b16 %v267
    %v855 = vunpack.c.l.b16 %v268
    %v856 = vunpack.c.h.b16 %v268
    %v857 = vunpack.c.l.b16 %v269
    %v858 = vunpack.c.h.b16 %v269
    %v859 = vunpack.c.l.b16 %v270
    %v860 = vunpack.c.h.b16 %v270
    %v861 = vunpack.c.l.b16 %v271
    %v862 = vunpack.c.h.b16 %v271
    %v863 = vunpack.c.l.b16 %v272
    %v864 = vunpack.c.h.b16 %v272
    %v865 = vunpack.c.l.b16 %v273
    %v866 = vunpack.c.h.b16 %v273
    %v867 = vunpack.c.l.b16 %v274
    %v868 = vunpack.c.h.b16 %v274
    %v869 = vunpack.c.l.b16 %v275
    %v870 = vunpack.c.h.b16 %v275
    %v871 = vunpack.c.l.b16 %v276
    %v872 = vunpack.c.h.b16 %v276
    %v873 = vunpack.c.l.b16 %v277
    %v874 = vunpack.c.h.b16 %v277
    %v875 = vunpack.c.l.b16 %v278
    %v876 = vunpack.c.h.b16 %v278
    %v877 = vunpack.c.l.b16 %v279
    %v878 = vunpack.c.h.b16 %v279
    %v879 = vunpack.c.l.b16 %v280
    %v880 = vunpack.c.h.b16 %v280
    %v881 = vunpack.c.l.b16 %v281
    %v882 = vunpack.c.h.b16 %v281
    %v883 = vunpack.c.l.b16 %v282
    %v884 = vunpack.c.h.b16 %v282
    %v885 = vunpack.c.l.b16 %v283
    %v886 = vunpack.c.h.b16 %v283
    %v887 = vunpack.c.l.b16 %v284
    %v888 = vunpack.c.h.b16 %v284
    %v889 = vunpack.c.l.b16 %v285
    %v890 = vunpack.c.h.b16 %v285
    %v891 = vunpack.c.l.b16 %v286
    %v892 = vunpack.c.h.b16 %v286
    %v893 = vunpack.c.l.b16 %v287
    %v894 = vunpack.c.h.b16 %v287
    %v895 = vunpack.c.l.b16 %v288
    %v896 = vunpack.c.h.b16 %v288
    %v897 = vunpack.c.l.b16 %v289
    %v898 = vunpack.c.h.b16 %v289
    %v899 = vunpack.c.l.b16 %v290
    %v900 = vunpack.c.h.b16 %v290
    %v901 = vunpack.c.l.b16 %v291
    %v902 = vunpack.c.h.b16 %v291
    %v903 = vunpack.c.l.b16 %v292
    %v904 = vunpack.c.h.b16 %v292
    %v905 = vunpack.c.l.b16 %v293
    %v906 = vunpack.c.h.b16 %v293
    %v907 = vunpack.c.l.b16 %v294
    %v908 = vunpack.c.h.b16 %v294
    %v909 = vunpack.c.l.b16 %v295
    %v910 = vunpack.c.h.b16 %v295
    %v911 = vunpack.c.l.b16 %v296
    %v912 = vunpack.c.h.b16 %v296
    %v913 = vunpack.c.l.b16 %v297
    %v914 = vunpack.c.h.b16 %v297
    %v915 = vunpack.c.l.b16 %v298
    %v916 = vunpack.c.h.b16 %v298
    %v917 = vunpack.c.l.b16 %v299
    %v918 = vunpack.c.h.b16 %v299
    %v919 = vunpack.c.l.b16 %v300
    %v920 = vunpack.c.h.b16 %v300
    %v921 = vunpack.c.l.b16 %v301
    %v922 = vunpack.c.h.b16 %v301
    %v923 = vunpack.c.l.b16 %v302
    %v924 = vunpack.c.h.b16 %v302
    %v925 = vunpack.c.l.b16 %v303
    %v926 = vunpack.c.h.b16 %v303
    %v927 = vunpack.c.l.b16 %v304
    %v928 = vunpack.c.h.b16 %v304
    %v929 = vunpack.c.l.b16 %v305
    %v930 = vunpack.c.h.b16 %v305
    %v931 = vunpack.c.l.b16 %v306
    %v932 = vunpack.c.h.b16 %v306
    %v933 = vunpack.c.l.b16 %v307
    %v934 = vunpack.c.h.b16 %v307
    %v935 = vunpack.c.l.b16 %v308
    %v936 = vunpack.c.h.b16 %v308
    %v937 = vunpack.c.l.b16 %v309
    %v938 = vunpack.c.h.b16 %v309
    %v939 = vunpack.c.l.b16 %v310
    %v940 = vunpack.c.h.b16 %v310
    %v941 = vunpack.c.l.b16 %v311
    %v942 = vunpack.c.h.b16 %v311
    %v943 = vunpack.c.l.b16 %v312
    %v944 = vunpack.c.h.b16 %v312
    %v945 = vunpack.c.l.b16 %v313
    %v946 = vunpack.c.h.b16 %v313
    %v947 = vunpack.c.l.b16 %v314
    %v948 = vunpack.c.h.b16 %v314
    %v949 = vunpack.c.l.b16 %v315
    %v950 = vunpack.c.h.b16 %v315
    %v951 = vunpack.c.l.b16 %v316
    %v952 = vunpack.c.h.b16 %v316
    %v953 = vunpack.c.l.b16 %v317
    %v954 = vunpack.c.h.b16 %v317
    %v955 = vunpack.c.l.b16 %v318
    %v956 = vunpack.c.h.b16 %v318
    %v957 = vunpack.c.l.b16 %v319
    %v958 = vunpack.c.h.b16 %v319
    %v959 = vunpack.c.l.b16 %v320
    %v960 = vunpack.c.h.b16 %v320
    %v961 = vunpack.c.l.b16 %v321
    %v962 = vunpack.c.h.b16 %v321
    %v963 = vunpack.c.l.b16 %v322
    %v964 = vunpack.c.h.b16 %v322
    %v965 = vunpack.c.l.b16 %v323
    %v966 = vunpack.c.h.b16 %v323
    %v967 = vunpack.c.l.b16 %v324
    %v968 = vunpack.c.h.b16 %v324
    %v969 = vunpack.c.l.b16 %v325
    %v970 = vunpack.c.h.b16 %v325
    %v971 = vpack.c.b16 %v583, %v579
    %v972 = vpack.c.b16 %v584, %v580
    %v973 = vpack.c.b16 %v585, %v581
    %v974 = vpack.c.b16 %v586, %v582
    %v975 = vpack.c.b16 %v591, %v587
    %v976 = vpack.c.b16 %v592, %v588
    %v977 = vpack.c.b16 %v593, %v589
    %v978 = vpack.c.b16 %v594, %v590
    %v979 = vpack.c.b16 %v599, %v595
    %v980 = vpack.c.b16 %v600, %v596
    %v981 = vpack.c.b16 %v601, %v597
    %v982 = vpack.c.b16 %v602, %v598
    %v983 = vpack.c.b16 %v607, %v603
    %v984 = vpack.c.b16 %v608, %v604
    %v985 = vpack.c.b16 %v609, %v605
    %v986 = vpack.c.b16 %v610, %v606
    %v987 = vpack.c.b16 %v615, %v611
    %v988 = vpack.c.b16 %v616, %v612
    %v989 = vpack.c.b16 %v617, %v613
    %v990 = vpack.c.b16 %v618, %v614
    %v991 = vpack.c.b16 %v623, %v619
    %v992 = vpack.c.b16 %v624, %v620
    %v993 = vpack.c.b16 %v625, %v621
    %v994 = vpack.c.b16 %v626, %v622
    %v995 = vpack.c.b16 %v631, %v627
    %v996 = vpack.c.b16 %v632, %v628
    %v997 = vpack.c.b16 %v633, %v629
    %v998 = vpack.c.b16 %v634, %v630
    %v999 = vpack.c.b16 %v639, %v635
    %v1000 = vpack.c.b16 %v640, %v636
    %v1001 = vpack.c.b16 %v641, %v637
    %v1002 = vpack.c.b16 %v642, %v638
    %v1003 = vpack.c.b16 %v647, %v643
    %v1004 = vpack.c.b16 %v648, %v644
    %v1005 = vpack.c.b16 %v649, %v645
    %v1006 = vpack.c.b16 %v650, %v646
    %v1007 = vpack.c.b16 %v655, %v651
    %v1008 = vpack.c.b16 %v656, %v652
    %v1009 = vpack.c.b16 %v657, %v653
    %v1010 = vpack.c.b16 %v658, %v654
    %v1011 = vpack.c.b16 %v663, %v659
    %v1012 = vpack.c.b16 %v664, %v660
    %v1013 = vpack.c.b16 %v665, %v661
    %v1014 = vpack.c.b16 %v666, %v662
    %v1015 = vpack.c.b16 %v671, %v667
    %v1016 = vpack.c.b16 %v672, %v668
    %v1017 = vpack.c.b16 %v673, %v669
    %v1018 = vpack.c.b16 %v674, %v670
    %v1019 = vpack.c.b16 %v679, %v675
    %v1020 = vpack.c.b16 %v680, %v676
    %v1021 = vpack.c.b16 %v681, %v677
    %v1022 = vpack.c.b16 %v682, %v678
    %v1023 = vpack.c.b16 %v687, %v683
    %v1024 = vpack.c.b16 %v688, %v684
    %v1025 = vpack.c.b16 %v689, %v685
    %v1026 = vpack.c.b16 %v690, %v686
    %v1027 = vpack.c.b16 %v695, %v691
    %v1028 = vpack.c.b16 %v696, %v692
    %v1029 = vpack.c.b16 %v697, %v693
    %v1030 = vpack.c.b16 %v698, %v694
    %v1031 = vpack.c.b16 %v703, %v699
    %v1032 = vpack.c.b16 %v704, %v700
    %v1033 = vpack.c.b16 %v705, %v701
    %v1034 = vpack.c.b16 %v706, %v702
    %v1035 = vpack.c.b16 %v711, %v707
    %v1036 = vpack.c.b16 %v712, %v708
    %v1037 = vpack.c.b16 %v713, %v709
    %v1038 = vpack.c.b16 %v714, %v710
    %v1039 = vpack.c.b16 %v719, %v715
    %v1040 = vpack.c.b16 %v720, %v716
    %v1041 = vpack.c.b16 %v721, %v717
    %v1042 = vpack.c.b16 %v722, %v718
    %v1043 = vpack.c.b16 %v727, %v723
    %v1044 = vpack.c.b16 %v728, %v724
    %v1045 = vpack.c.b16 %v729, %v725
    %v1046 = vpack.c.b16 %v730, %v726
    %v1047 = vpack.c.b16 %v735, %v731
    %v1048 = vpack.c.b16 %v736, %v732
    %v1049 = vpack.c.b16 %v737, %v733
    %v1050 = vpack.c.b16 %v738, %v734
    %v1051 = vpack.c.b16 %v743, %v739
    %v1052 = vpack.c.b16 %v744, %v740
    %v1053 = vpack.c.b16 %v745, %v741
    %v1054 = vpack.c.b16 %v746, %v742
    %v1055 = vpack.c.b16 %v751, %v747
    %v1056 = vpack.c.b16 %v752, %v748
    %v1057 = vpack.c.b16 %v753, %v749
    %v1058 = vpack.c.b16 %v754, %v750
    %v1059 = vpack.c.b16 %v759, %v755
    %v1060 = vpack.c.b16 %v760, %v756
    %v1061 = vpack.c.b16 %v761, %v757
    %v1062 = vpack.c.b16 %v762, %v758
    %v1063 = vpack.c.b16 %v767, %v763
    %v1064 = vpack.c.b16 %v768, %v764
    %v1065 = vpack.c.b16 %v769, %v765
    %v1066 = vpack.c.b16 %v770, %v766
    %v1067 = vpack.c.b16 %v775, %v771
    %v1068 = vpack.c.b16 %v776, %v772
    %v1069 = vpack.c.b16 %v777, %v773
    %v1070 = vpack.c.b16 %v778, %v774
    %v1071 = vpack.c.b16 %v783, %v779
    %v1072 = vpack.c.b16 %v784, %v780
    %v1073 = vpack.c.b16 %v785, %v781
    %v1074 = vpack.c.b16 %v786, %v782
    %v1075 = vpack.c.b16 %v791, %v787
    %v1076 = vpack.c.b16 %v792, %v788
    %v1077 = vpack.c.b16 %v793, %v789
    %v1078 = vpack.c.b16 %v794, %v790
    %v1079 = vpack.c.b16 %v799, %v795
    %v1080 = vpack.c.b16 %v800, %v796
    %v1081 = vpack.c.b16 %v801, %v797
    %v1082 = vpack.c.b16 %v802, %v798
    %v1083 = vpack.c.b16 %v807, %v803
    %v1084 = vpack.c.b16 %v808, %v804
    %v1085 = vpack.c.b16 %v809, %v805
    %v1086 = vpack.c.b16 %v810, %v806
    %v1087 = vpack.c.b16 %v815, %v811
    %v1088 = vpack.c.b16 %v816, %v812
    %v1089 = vpack.c.b16 %v817, %v813
    %v1090 = vpack.c.b16 %v818, %v814
    %v1091 = vpack.c.b16 %v823, %v819
    %v1092 = vpack.c.b16 %v824, %v820
    %v1093 = vpack.c.b16 %v825, %v821
    %v1094 = vpack.c.b16 %v826, %v822
    %v1095 = vpack.c.b16 %v831, %v827
    %v1096 = vpack.c.b16 %v832, %v828
    %v1097 = vpack.c.b16 %v833, %v829
    %v1098 = vpack.c.b16 %v834, %v830
    %v1099 = vpack.c.b16 %v839, %v835
    %v1100 = vpack.c.b16 %v840, %v836
    %v1101 = vpack.c.b16 %v841, %v837
    %v1102 = vpack.c.b16 %v842, %v838
    %v1103 = vpack.c.b16 %v847, %v843
    %v1104 = vpack.c.b16 %v848, %v844
    %v1105 = vpack.c.b16 %v849, %v845
    %v1106 = vpack.c.b16 %v850, %v846
    %v1107 = vpack.c.b16 %v855, %v851
    %v1108 = vpack.c.b16 %v856, %v852
    %v1109 = vpack.c.b16 %v857, %v853
    %v1110 = vpack.c.b16 %v858, %v854
    %v1111 = vpack.c.b16 %v863, %v859
    %v1112 = vpack.c.b16 %v864, %v860
    %v1113 = vpack.c.b16 %v865, %v861
    %v1114 = vpack.c.b16 %v866, %v862
    %v1115 = vpack.c.b16 %v871, %v867
    %v1116 = vpack.c.b16 %v872, %v868
    %v1117 = vpack.c.b16 %v873, %v869
    %v1118 = vpack.c.b16 %v874, %v870
    %v1119 = vpack.c.b16 %v879, %v875
    %v1120 = vpack.c.b16 %v880, %v876
    %v1121 = vpack.c.b16 %v881, %v877
    %v1122 = vpack.c.b16 %v882, %v878
    %v1123 = vpack.c.b16 %v887, %v883
    %v1124 = vpack.c.b16 %v888, %v884
    %v1125 = vpack.c.b16 %v889, %v885
    %v1126 = vpack.c.b16 %v890, %v886
    %v1127 = vpack.c.b16 %v895, %v891
    %v1128 = vpack.c.b16 %v896, %v892
    %v1129 = vpack.c.b16 %v897, %v893
    %v1130 = vpack.c.b16 %v898, %v894
    %v1131 = vpack.c.b16 %v903, %v899
    %v1132 = vpack.c.b16 %v904, %v900
    %v1133 = vpack.c.b16 %v905, %v901
    %v1134 = vpack.c.b16 %v906, %v902
    %v1135 = vpack.c.b16 %v911, %v907
    %v1136 = vpack.c.b16 %v912, %v908
    %v1137 = vpack.c.b16 %v913, %v909
    %v1138 = vpack.c.b16 %v914, %v910
    %v1139 = vpack.c.b16 %v919, %v915
    %v1140 = vpack.c.b16 %v920, %v916
    %v1141 = vpack.c.b16 %v921, %v917
    %v1142 = vpack.c.b16 %v922, %v918
    %v1143 = vpack.c.b16 %v927, %v923
    %v1144 = vpack.c.b16 %v928, %v924
    %v1145 = vpack.c.b16 %v929, %v925
    %v1146 = vpack.c.b16 %v930, %v926
    %v1147 = vpack.c.b16 %v935, %v931
    %v1148 = vpack.c.b16 %v936, %v932
    %v1149 = vpack.c.b16 %v937, %v933
    %v1150 = vpack.c.b16 %v938, %v934
    %v1151 = vpack.c.b16 %v943, %v939
    %v1152 = vpack.c.b16 %v944, %v940
    %v1153 = vpack.c.b16 %v945, %v941
    %v1154 = vpack.c.b16 %v946, %v942
    %v1155 = vpack.c.b16 %v951, %v947
    %v1156 = vpack.c.b16 %v952, %v948
    %v1157 = vpack.c.b16 %v953, %v949
    %v1158 = vpack.c.b16 %v954, %v950
    %v1159 = vpack.c.b16 %v959, %v955
    %v1160 = vpack.c.b16 %v960, %v956
    %v1161 = vpack.c.b16 %v961, %v957
    %v1162 = vpack.c.b16 %v962, %v958
    %v1163 = vpack.c.b16 %v967, %v963
    %v1164 = vpack.c.b16 %v968, %v964
    %v1165 = vpack.c.b16 %v969, %v965
    %v1166 = vpack.c.b16 %v970, %v966
    %vm1363 = vcmask 130048
    %v1365 = vsel %vm1363, %v376, 0
    %1367 = vmatprep.subr.bf16.mxu0 %v972
    %1368 = vmatpush1.bf16.msra.mxu0 %v971
    %1369 = vmatprep.subr.bf16.mxu0 %v976
    %1370 = vmatpush1.bf16.msra.mxu0 %v975
    %1371 = vmatprep.subr.bf16.mxu0 %v980
    %1372 = vmatpush1.bf16.msra.mxu0 %v979
    %1373 = vmatprep.subr.bf16.mxu0 %v984
    %1374 = vmatpush1.bf16.msra.mxu0 %v983
    %1375 = vmatprep.subr.bf16.mxu0 %v988
    %1376 = vmatpush1.bf16.msra.mxu0 %v987
    %1377 = vmatprep.subr.bf16.mxu0 %v992
    %1378 = vmatpush1.bf16.msra.mxu0 %v991
    %1379 = vmatprep.subr.bf16.mxu0 %v996
    %1380 = vmatpush1.bf16.msra.mxu0 %v995
    %1381 = vmatprep.subr.bf16.mxu0 %v1000
    %1382 = vmatpush1.bf16.msra.mxu0 %v999
    %1383 = vmatprep.subr.bf16.mxu0 %v1004
    %1384 = vmatpush1.bf16.msra.mxu0 %v1003
    %1385 = vmatprep.subr.bf16.mxu0 %v1008
    %1386 = vmatpush1.bf16.msra.mxu0 %v1007
    %1387 = vmatprep.subr.bf16.mxu0 %v1012
    %1388 = vmatpush1.bf16.msra.mxu0 %v1011
    %1389 = vmatprep.subr.bf16.mxu0 %v1016
    %1390 = vmatpush1.bf16.msra.mxu0 %v1015
    %1391 = vmatprep.subr.bf16.mxu0 %v1020
    %1392 = vmatpush1.bf16.msra.mxu0 %v1019
    %1393 = vmatprep.subr.bf16.mxu0 %v1024
    %1394 = vmatpush1.bf16.msra.mxu0 %v1023
    %1395 = vmatprep.subr.bf16.mxu0 %v1028
    %1396 = vmatpush1.bf16.msra.mxu0 %v1027
    %1397 = vmatprep.subr.bf16.mxu0 %v1032
    %1398 = vmatpush1.bf16.msra.mxu0 %v1031
    %1399 = vmatprep.mubr.bf16.mxu0 %v371
    %1400 = vmatmul.mubr.bf16.gmra.mrb[0].mxu0 %v370
    %v1401 = vpop.f32.mrb[0].mxu0
    %v1402 = vadd.f32 %v331, %v1401
    %v1403 = vpop.f32.mrb[0].mxu0
    %v1404 = vadd.f32 %v335, %v1403
    %v1405 = vpop.f32.mrb[0].mxu0
    %v1406 = vadd.f32 %v331, %v1405
    %v1407 = vpop.f32.mrb[0].mxu0
    %v1408 = vadd.f32 %v335, %v1407
    %1409 = vdwg.mxu0
    %1410 = vmatprep.subr.bf16.mxu0 %v1036
    %1411 = vmatpush1.bf16.msra.mxu0 %v1035
    %1412 = vmatprep.subr.bf16.mxu0 %v1040
    %1413 = vmatpush1.bf16.msra.mxu0 %v1039
    %1414 = vmatprep.subr.bf16.mxu0 %v1044
    %1415 = vmatpush1.bf16.msra.mxu0 %v1043
    %1416 = vmatprep.subr.bf16.mxu0 %v1048
    %1417 = vmatpush1.bf16.msra.mxu0 %v1047
    %1418 = vmatprep.subr.bf16.mxu0 %v1052
    %1419 = vmatpush1.bf16.msra.mxu0 %v1051
    %1420 = vmatprep.subr.bf16.mxu0 %v1056
    %1421 = vmatpush1.bf16.msra.mxu0 %v1055
    %1422 = vmatprep.subr.bf16.mxu0 %v1060
    %1423 = vmatpush1.bf16.msra.mxu0 %v1059
    %1424 = vmatprep.subr.bf16.mxu0 %v1064
    %1425 = vmatpush1.bf16.msra.mxu0 %v1063
    %1426 = vmatprep.subr.bf16.mxu0 %v1068
    %1427 = vmatpush1.bf16.msra.mxu0 %v1067
    %1428 = vmatprep.subr.bf16.mxu0 %v1072
    %1429 = vmatpush1.bf16.msra.mxu0 %v1071
    %1430 = vmatprep.subr.bf16.mxu0 %v1076
    %1431 = vmatpush1.bf16.msra.mxu0 %v1075
    %1432 = vmatprep.subr.bf16.mxu0 %v1080
    %1433 = vmatpush1.bf16.msra.mxu0 %v1079
    %1434 = vmatprep.subr.bf16.mxu0 %v1084
    %1435 = vmatpush1.bf16.msra.mxu0 %v1083
    %1436 = vmatprep.subr.bf16.mxu0 %v1088
    %1437 = vmatpush1.bf16.msra.mxu0 %v1087
    %1438 = vmatprep.subr.bf16.mxu0 %v1092
    %1439 = vmatpush1.bf16.msra.mxu0 %v1091
    %1440 = vmatprep.subr.bf16.mxu0 %v1096
    %1441 = vmatpush1.bf16.msra.mxu0 %v1095
    %1442 = vmatprep.mubr.bf16.mxu0 %v373
    %1443 = vmatmul.mubr.bf16.gmra.mrb[0].mxu0 %v372
    %v1444 = vpop.f32.mrb[0].mxu0
    %v1445 = vadd.f32 %v1402, %v1444
    %v1446 = vpop.f32.mrb[0].mxu0
    %v1447 = vadd.f32 %v1404, %v1446
    %v1448 = vpop.f32.mrb[0].mxu0
    %v1449 = vadd.f32 %v1406, %v1448
    %v1450 = vpop.f32.mrb[0].mxu0
    %v1451 = vadd.f32 %v1408, %v1450
    %1452 = vdwg.mxu0
    %1453 = vmatprep.subr.bf16.mxu0 %v1100
    %1454 = vmatpush1.bf16.msra.mxu0 %v1099
    %1455 = vmatprep.subr.bf16.mxu0 %v1104
    %1456 = vmatpush1.bf16.msra.mxu0 %v1103
    %1457 = vmatprep.subr.bf16.mxu0 %v1108
    %1458 = vmatpush1.bf16.msra.mxu0 %v1107
    %1459 = vmatprep.subr.bf16.mxu0 %v1112
    %1460 = vmatpush1.bf16.msra.mxu0 %v1111
    %1461 = vmatprep.subr.bf16.mxu0 %v1116
    %1462 = vmatpush1.bf16.msra.mxu0 %v1115
    %1463 = vmatprep.subr.bf16.mxu0 %v1120
    %1464 = vmatpush1.bf16.msra.mxu0 %v1119
    %1465 = vmatprep.subr.bf16.mxu0 %v1124
    %1466 = vmatpush1.bf16.msra.mxu0 %v1123
    %1467 = vmatprep.subr.bf16.mxu0 %v1128
    %1468 = vmatpush1.bf16.msra.mxu0 %v1127
    %1469 = vmatprep.subr.bf16.mxu0 %v1132
    %1470 = vmatpush1.bf16.msra.mxu0 %v1131
    %1471 = vmatprep.subr.bf16.mxu0 %v1136
    %1472 = vmatpush1.bf16.msra.mxu0 %v1135
    %1473 = vmatprep.subr.bf16.mxu0 %v1140
    %1474 = vmatpush1.bf16.msra.mxu0 %v1139
    %1475 = vmatprep.subr.bf16.mxu0 %v1144
    %1476 = vmatpush1.bf16.msra.mxu0 %v1143
    %1477 = vmatprep.subr.bf16.mxu0 %v1148
    %1478 = vmatpush1.bf16.msra.mxu0 %v1147
    %1479 = vmatprep.subr.bf16.mxu0 %v1152
    %1480 = vmatpush1.bf16.msra.mxu0 %v1151
    %1481 = vmatprep.subr.bf16.mxu0 %v1156
    %1482 = vmatpush1.bf16.msra.mxu0 %v1155
    %1483 = vmatprep.subr.bf16.mxu0 %v1160
    %1484 = vmatpush1.bf16.msra.mxu0 %v1159
    %1485 = vmatprep.mubr.bf16.mxu0 %v375
    %1486 = vmatmul.mubr.bf16.gmra.mrb[0].mxu0 %v374
    %v1487 = vpop.f32.mrb[0].mxu0
    %v1488 = vadd.f32 %v1445, %v1487
    %v1489 = vpop.f32.mrb[0].mxu0
    %v1490 = vadd.f32 %v1447, %v1489
    %v1491 = vpop.f32.mrb[0].mxu0
    %v1492 = vadd.f32 %v1449, %v1491
    %v1493 = vpop.f32.mrb[0].mxu0
    %v1494 = vadd.f32 %v1451, %v1493
    %1495 = vdwg.mxu0
    %1496 = vmatprep.subr.bf16.mxu0 %v1164
    %1497 = vmatpush1.bf16.msra.mxu0 %v1163
    %1498 = vmatprep.subr.bf16.mxu0 0
    %1499 = vmatpush1.bf16.msra.mxu0 0
    %1500 = vmatprep.subr.bf16.mxu0 0
    %1501 = vmatpush1.bf16.msra.mxu0 0
    %1502 = vmatprep.subr.bf16.mxu0 0
    %1503 = vmatpush1.bf16.msra.mxu0 0
    %1504 = vmatprep.subr.bf16.mxu0 0
    %1505 = vmatpush1.bf16.msra.mxu0 0
    %1506 = vmatprep.subr.bf16.mxu0 0
    %1507 = vmatpush1.bf16.msra.mxu0 0
    %1508 = vmatprep.subr.bf16.mxu0 0
    %1509 = vmatpush1.bf16.msra.mxu0 0
    %1510 = vmatprep.subr.bf16.mxu0 0
    %1511 = vmatpush1.bf16.msra.mxu0 0
    %1512 = vmatprep.subr.bf16.mxu0 0
    %1513 = vmatpush1.bf16.msra.mxu0 0
    %1514 = vmatprep.subr.bf16.mxu0 0
    %1515 = vmatpush1.bf16.msra.mxu0 0
    %1516 = vmatprep.subr.bf16.mxu0 0
    %1517 = vmatpush1.bf16.msra.mxu0 0
    %1518 = vmatprep.subr.bf16.mxu0 0
    %1519 = vmatpush1.bf16.msra.mxu0 0
    %1520 = vmatprep.subr.bf16.mxu0 0
    %1521 = vmatpush1.bf16.msra.mxu0 0
    %1522 = vmatprep.subr.bf16.mxu0 0
    %1523 = vmatpush1.bf16.msra.mxu0 0
    %1524 = vmatprep.subr.bf16.mxu0 0
    %1525 = vmatpush1.bf16.msra.mxu0 0
    %1526 = vmatprep.subr.bf16.mxu0 0
    %1527 = vmatpush1.bf16.msra.mxu0 0
    %1528 = vmatprep.mubr.bf16.mxu0 0
    %1529 = vmatmul.mubr.bf16.gmra.mrb[0].mxu0 %v1365
    %v1530 = vpop.f32.mrb[0].mxu0
    %v1531 = vadd.f32 %v1488, %v1530
    %v1532 = vpop.f32.mrb[0].mxu0
    %v1533 = vadd.f32 %v1490, %v1532
    %v1534 = vpop.f32.mrb[0].mxu0
    %v1535 = vadd.f32 %v1492, %v1534
    %v1536 = vpop.f32.mrb[0].mxu0
    %v1537 = vadd.f32 %v1494, %v1536
    %1538 = vdwg.mxu0
    %1539 = vmatprep.subr.bf16.mxu0 %v974
    %1540 = vmatpush1.bf16.msra.mxu0 %v973
    %1541 = vmatprep.subr.bf16.mxu0 %v978
    %1542 = vmatpush1.bf16.msra.mxu0 %v977
    %1543 = vmatprep.subr.bf16.mxu0 %v982
    %1544 = vmatpush1.bf16.msra.mxu0 %v981
    %1545 = vmatprep.subr.bf16.mxu0 %v986
    %1546 = vmatpush1.bf16.msra.mxu0 %v985
    %1547 = vmatprep.subr.bf16.mxu0 %v990
    %1548 = vmatpush1.bf16.msra.mxu0 %v989
    %1549 = vmatprep.subr.bf16.mxu0 %v994
    %1550 = vmatpush1.bf16.msra.mxu0 %v993
    %1551 = vmatprep.subr.bf16.mxu0 %v998
    %1552 = vmatpush1.bf16.msra.mxu0 %v997
    %1553 = vmatprep.subr.bf16.mxu0 %v1002
    %1554 = vmatpush1.bf16.msra.mxu0 %v1001
    %1555 = vmatprep.subr.bf16.mxu0 %v1006
    %1556 = vmatpush1.bf16.msra.mxu0 %v1005
    %1557 = vmatprep.subr.bf16.mxu0 %v1010
    %1558 = vmatpush1.bf16.msra.mxu0 %v1009
    %1559 = vmatprep.subr.bf16.mxu0 %v1014
    %1560 = vmatpush1.bf16.msra.mxu0 %v1013
    %1561 = vmatprep.subr.bf16.mxu0 %v1018
    %1562 = vmatpush1.bf16.msra.mxu0 %v1017
    %1563 = vmatprep.subr.bf16.mxu0 %v1022
    %1564 = vmatpush1.bf16.msra.mxu0 %v1021
    %1565 = vmatprep.subr.bf16.mxu0 %v1026
    %1566 = vmatpush1.bf16.msra.mxu0 %v1025
    %1567 = vmatprep.subr.bf16.mxu0 %v1030
    %1568 = vmatpush1.bf16.msra.mxu0 %v1029
    %1569 = vmatprep.subr.bf16.mxu0 %v1034
    %1570 = vmatpush1.bf16.msra.mxu0 %v1033
    %1571 = vmatprep.mubr.bf16.mxu0 %v371
    %1572 = vmatmul.mubr.bf16.gmra.mrb[0].mxu0 %v370
    %v1573 = vpop.f32.mrb[0].mxu0
    %v1574 = vadd.f32 %v339, %v1573
    %v1575 = vpop.f32.mrb[0].mxu0
    %v1576 = vadd.f32 %v343, %v1575
    %v1577 = vpop.f32.mrb[0].mxu0
    %v1578 = vadd.f32 %v339, %v1577
    %v1579 = vpop.f32.mrb[0].mxu0
    %v1580 = vadd.f32 %v343, %v1579
    %1581 = vdwg.mxu0
    %1582 = vmatprep.subr.bf16.mxu0 %v1038
    %1583 = vmatpush1.bf16.msra.mxu0 %v1037
    %1584 = vmatprep.subr.bf16.mxu0 %v1042
    %1585 = vmatpush1.bf16.msra.mxu0 %v1041
    %1586 = vmatprep.subr.bf16.mxu0 %v1046
    %1587 = vmatpush1.bf16.msra.mxu0 %v1045
    %1588 = vmatprep.subr.bf16.mxu0 %v1050
    %1589 = vmatpush1.bf16.msra.mxu0 %v1049
    %1590 = vmatprep.subr.bf16.mxu0 %v1054
    %1591 = vmatpush1.bf16.msra.mxu0 %v1053
    %1592 = vmatprep.subr.bf16.mxu0 %v1058
    %1593 = vmatpush1.bf16.msra.mxu0 %v1057
    %1594 = vmatprep.subr.bf16.mxu0 %v1062
    %1595 = vmatpush1.bf16.msra.mxu0 %v1061
    %1596 = vmatprep.subr.bf16.mxu0 %v1066
    %1597 = vmatpush1.bf16.msra.mxu0 %v1065
    %1598 = vmatprep.subr.bf16.mxu0 %v1070
    %1599 = vmatpush1.bf16.msra.mxu0 %v1069
    %1600 = vmatprep.subr.bf16.mxu0 %v1074
    %1601 = vmatpush1.bf16.msra.mxu0 %v1073
    %1602 = vmatprep.subr.bf16.mxu0 %v1078
    %1603 = vmatpush1.bf16.msra.mxu0 %v1077
    %1604 = vmatprep.subr.bf16.mxu0 %v1082
    %1605 = vmatpush1.bf16.msra.mxu0 %v1081
    %1606 = vmatprep.subr.bf16.mxu0 %v1086
    %1607 = vmatpush1.bf16.msra.mxu0 %v1085
    %1608 = vmatprep.subr.bf16.mxu0 %v1090
    %1609 = vmatpush1.bf16.msra.mxu0 %v1089
    %1610 = vmatprep.subr.bf16.mxu0 %v1094
    %1611 = vmatpush1.bf16.msra.mxu0 %v1093
    %1612 = vmatprep.subr.bf16.mxu0 %v1098
    %1613 = vmatpush1.bf16.msra.mxu0 %v1097
    %1614 = vmatprep.mubr.bf16.mxu0 %v373
    %1615 = vmatmul.mubr.bf16.gmra.mrb[0].mxu0 %v372
    %v1616 = vpop.f32.mrb[0].mxu0
    %v1617 = vadd.f32 %v1574, %v1616
    %v1618 = vpop.f32.mrb[0].mxu0
    %v1619 = vadd.f32 %v1576, %v1618
    %v1620 = vpop.f32.mrb[0].mxu0
    %v1621 = vadd.f32 %v1578, %v1620
    %v1622 = vpop.f32.mrb[0].mxu0
    %v1623 = vadd.f32 %v1580, %v1622
    %1624 = vdwg.mxu0
    %1625 = vmatprep.subr.bf16.mxu0 %v1102
    %1626 = vmatpush1.bf16.msra.mxu0 %v1101
    %1627 = vmatprep.subr.bf16.mxu0 %v1106
    %1628 = vmatpush1.bf16.msra.mxu0 %v1105
    %1629 = vmatprep.subr.bf16.mxu0 %v1110
    %1630 = vmatpush1.bf16.msra.mxu0 %v1109
    %1631 = vmatprep.subr.bf16.mxu0 %v1114
    %1632 = vmatpush1.bf16.msra.mxu0 %v1113
    %1633 = vmatprep.subr.bf16.mxu0 %v1118
    %1634 = vmatpush1.bf16.msra.mxu0 %v1117
    %1635 = vmatprep.subr.bf16.mxu0 %v1122
    %1636 = vmatpush1.bf16.msra.mxu0 %v1121
    %1637 = vmatprep.subr.bf16.mxu0 %v1126
    %1638 = vmatpush1.bf16.msra.mxu0 %v1125
    %1639 = vmatprep.subr.bf16.mxu0 %v1130
    %1640 = vmatpush1.bf16.msra.mxu0 %v1129
    %1641 = vmatprep.subr.bf16.mxu0 %v1134
    %1642 = vmatpush1.bf16.msra.mxu0 %v1133
    %1643 = vmatprep.subr.bf16.mxu0 %v1138
    %1644 = vmatpush1.bf16.msra.mxu0 %v1137
    %1645 = vmatprep.subr.bf16.mxu0 %v1142
    %1646 = vmatpush1.bf16.msra.mxu0 %v1141
    %1647 = vmatprep.subr.bf16.mxu0 %v1146
    %1648 = vmatpush1.bf16.msra.mxu0 %v1145
    %1649 = vmatprep.subr.bf16.mxu0 %v1150
    %1650 = vmatpush1.bf16.msra.mxu0 %v1149
    %1651 = vmatprep.subr.bf16.mxu0 %v1154
    %1652 = vmatpush1.bf16.msra.mxu0 %v1153
    %1653 = vmatprep.subr.bf16.mxu0 %v1158
    %1654 = vmatpush1.bf16.msra.mxu0 %v1157
    %1655 = vmatprep.subr.bf16.mxu0 %v1162
    %1656 = vmatpush1.bf16.msra.mxu0 %v1161
    %1657 = vmatprep.mubr.bf16.mxu0 %v375
    %1658 = vmatmul.mubr.bf16.gmra.mrb[0].mxu0 %v374
    %v1659 = vpop.f32.mrb[0].mxu0
    %v1660 = vadd.f32 %v1617, %v1659
    %v1661 = vpop.f32.mrb[0].mxu0
    %v1662 = vadd.f32 %v1619, %v1661
    %v1663 = vpop.f32.mrb[0].mxu0
    %v1664 = vadd.f32 %v1621, %v1663
    %v1665 = vpop.f32.mrb[0].mxu0
    %v1666 = vadd.f32 %v1623, %v1665
    %1667 = vdwg.mxu0
    %1668 = vmatprep.subr.bf16.mxu0 %v1166
    %1669 = vmatpush1.bf16.msra.mxu0 %v1165
    %1670 = vmatprep.subr.bf16.mxu0 0
    %1671 = vmatpush1.bf16.msra.mxu0 0
    %1672 = vmatprep.subr.bf16.mxu0 0
    %1673 = vmatpush1.bf16.msra.mxu0 0
    %1674 = vmatprep.subr.bf16.mxu0 0
    %1675 = vmatpush1.bf16.msra.mxu0 0
    %1676 = vmatprep.subr.bf16.mxu0 0
    %1677 = vmatpush1.bf16.msra.mxu0 0
    %1678 = vmatprep.subr.bf16.mxu0 0
    %1679 = vmatpush1.bf16.msra.mxu0 0
    %1680 = vmatprep.subr.bf16.mxu0 0
    %1681 = vmatpush1.bf16.msra.mxu0 0
    %1682 = vmatprep.subr.bf16.mxu0 0
    %1683 = vmatpush1.bf16.msra.mxu0 0
    %1684 = vmatprep.subr.bf16.mxu0 0
    %1685 = vmatpush1.bf16.msra.mxu0 0
    %1686 = vmatprep.subr.bf16.mxu0 0
    %1687 = vmatpush1.bf16.msra.mxu0 0
    %1688 = vmatprep.subr.bf16.mxu0 0
    %1689 = vmatpush1.bf16.msra.mxu0 0
    %1690 = vmatprep.subr.bf16.mxu0 0
    %1691 = vmatpush1.bf16.msra.mxu0 0
    %1692 = vmatprep.subr.bf16.mxu0 0
    %1693 = vmatpush1.bf16.msra.mxu0 0
    %1694 = vmatprep.subr.bf16.mxu0 0
    %1695 = vmatpush1.bf16.msra.mxu0 0
    %1696 = vmatprep.subr.bf16.mxu0 0
    %1697 = vmatpush1.bf16.msra.mxu0 0
    %1698 = vmatprep.subr.bf16.mxu0 0
    %1699 = vmatpush1.bf16.msra.mxu0 0
    %1700 = vmatprep.mubr.bf16.mxu0 0
    %1701 = vmatmul.mubr.bf16.gmra.mrb[0].mxu0 %v1365
    %v1702 = vpop.f32.mrb[0].mxu0
    %v1703 = vadd.f32 %v1660, %v1702
    %v1704 = vpop.f32.mrb[0].mxu0
    %v1705 = vadd.f32 %v1662, %v1704
    %v1706 = vpop.f32.mrb[0].mxu0
    %v1707 = vadd.f32 %v1664, %v1706
    %v1708 = vpop.f32.mrb[0].mxu0
    %v1709 = vadd.f32 %v1666, %v1708
    %1710 = vdwg.mxu0
    %v1711 = vmax.f32 %v1531, 0.0
    %v1712 = vmax.f32 %v1533, 0.0
    %v1713 = vmax.f32 %v1703, 0.0
    %v1714 = vmax.f32 %v1705, 0.0
    %v1715 = vmax.f32 %v1535, 0.0
    %v1716 = vmax.f32 %v1537, 0.0
    %v1717 = vmax.f32 %v1707, 0.0
    %v1718 = vmax.f32 %v1709, 0.0
    %v1719 = vpack.c.bf16 %v1715, %v1711
    %v1720 = vpack.c.bf16 %v1716, %v1712
    %v1721 = vpack.c.bf16 %v1717, %v1713
    %v1722 = vpack.c.bf16 %v1718, %v1714
    %v1723 = vld [vmem:[#allocation8] sm:$0xf]
    %v1724 = vld [vmem:[#allocation8 + $0x4] sm:$0xf]
    %v1725 = vld [vmem:[#allocation8 + $0x8] sm:$0xf]
    %v1726 = vld [vmem:[#allocation8 + $0xc] sm:$0xf]
    %v1727 = vld [vmem:[#allocation8 + $0x10] sm:$0xf]
    %v1728 = vld [vmem:[#allocation8 + $0x14] sm:$0xf]
    %v1729 = vld [vmem:[#allocation8 + $0x18] sm:$0xf]
    %v1730 = vld [vmem:[#allocation8 + $0x1c] sm:$0xf]
    %v1731 = vld [vmem:[#allocation8 + $0x20] sm:$0xf]
    %v1732 = vld [vmem:[#allocation8 + $0x24] sm:$0xf]
    %v1733 = vld [vmem:[#allocation8 + $0x28] sm:$0xf]
    %v1734 = vld [vmem:[#allocation8 + $0x2c] sm:$0xf]
    %v1735 = vld [vmem:[#allocation8 + $0x30] sm:$0xf]
    %v1736 = vld [vmem:[#allocation8 + $0x34] sm:$0xf]
    %v1737 = vld [vmem:[#allocation8 + $0x38] sm:$0xf]
    %v1738 = vld [vmem:[#allocation8 + $0x3c] sm:$0xf]
    %v1739 = vld [vmem:[#allocation8 + $0x40] sm:$0xf]
    %v1740 = vld [vmem:[#allocation8 + $0x44] sm:$0xf]
    %v1741 = vld [vmem:[#allocation8 + $0x48] sm:$0xf]
    %v1742 = vld [vmem:[#allocation8 + $0x4c] sm:$0xf]
    %v1743 = vld [vmem:[#allocation8 + $0x50] sm:$0xf]
    %v1744 = vld [vmem:[#allocation8 + $0x54] sm:$0xf]
    %v1745 = vld [vmem:[#allocation8 + $0x58] sm:$0xf]
    %v1746 = vld [vmem:[#allocation8 + $0x5c] sm:$0xf]
    %v1747 = vld [vmem:[#allocation8 + $0x60] sm:$0xf]
    %v1748 = vld [vmem:[#allocation8 + $0x64] sm:$0xf]
    %v1749 = vld [vmem:[#allocation8 + $0x68] sm:$0xf]
    %v1750 = vld [vmem:[#allocation8 + $0x6c] sm:$0xf]
    %v1751 = vld [vmem:[#allocation8 + $0x70] sm:$0xf]
    %v1752 = vld [vmem:[#allocation8 + $0x74] sm:$0xf]
    %v1753 = vld [vmem:[#allocation8 + $0x78] sm:$0xf]
    %v1754 = vld [vmem:[#allocation8 + $0x7c] sm:$0xf]
    %v1755 = vld [vmem:[#allocation8 + $0x80] sm:$0xf]
    %v1756 = vld [vmem:[#allocation8 + $0x84] sm:$0xf]
    %v1757 = vld [vmem:[#allocation8 + $0x88] sm:$0xf]
    %v1758 = vld [vmem:[#allocation8 + $0x8c] sm:$0xf]
    %v1759 = vld [vmem:[#allocation8 + $0x90] sm:$0xf]
    %v1760 = vld [vmem:[#allocation8 + $0x94] sm:$0xf]
    %v1761 = vld [vmem:[#allocation8 + $0x98] sm:$0xf]
    %v1762 = vld [vmem:[#allocation8 + $0x9c] sm:$0xf]
    %v1763 = vld [vmem:[#allocation8 + $0xa0] sm:$0xf]
    %v1764 = vld [vmem:[#allocation8 + $0xa4] sm:$0xf]
    %v1765 = vld [vmem:[#allocation8 + $0xa8] sm:$0xf]
    %v1766 = vld [vmem:[#allocation8 + $0xac] sm:$0xf]
    %v1767 = vld [vmem:[#allocation8 + $0xb0] sm:$0xf]
    %v1768 = vld [vmem:[#allocation8 + $0xb4] sm:$0xf]
    %v1769 = vld [vmem:[#allocation8 + $0xb8] sm:$0xf]
    %v1770 = vld [vmem:[#allocation8 + $0xbc] sm:$0xf]
    %v1771 = vld [vmem:[#allocation8 + $0xc0] sm:$0xf]
    %v1772 = vld [vmem:[#allocation8 + $0xc4] sm:$0xf]
    %v1773 = vld [vmem:[#allocation8 + $0xc8] sm:$0xf]
    %v1774 = vld [vmem:[#allocation8 + $0xcc] sm:$0xf]
    %v1775 = vld [vmem:[#allocation8 + $0xd0] sm:$0xf]
    %v1776 = vld [vmem:[#allocation8 + $0xd4] sm:$0xf]
    %v1777 = vld [vmem:[#allocation8 + $0xd8] sm:$0xf]
    %v1778 = vld [vmem:[#allocation8 + $0xdc] sm:$0xf]
    %v1779 = vld [vmem:[#allocation8 + $0xe0] sm:$0xf]
    %v1780 = vld [vmem:[#allocation8 + $0xe4] sm:$0xf]
    %v1781 = vld [vmem:[#allocation8 + $0xe8] sm:$0xf]
    %v1782 = vld [vmem:[#allocation8 + $0xec] sm:$0xf]
    %v1783 = vld [vmem:[#allocation8 + $0xf0] sm:$0xf]
    %v1784 = vld [vmem:[#allocation8 + $0xf4] sm:$0xf]
    %v1785 = vld [vmem:[#allocation8 + $0xf8] sm:$0xf]
    %v1786 = vld [vmem:[#allocation8 + $0xfc] sm:$0xf]
    %v1787 = vld [vmem:[%s5] sm:$0x1]
    %v1789 = vlaneseq
    %v1790 = vshrl.u32 %v1789, 7
    %v1791 = vsub.s32 0, %v1790
    %v1792 = vrot.slane %v1787, %v1791
    %v1858 = vunpack.c.l.b16 %v1723
    %v1859 = vunpack.c.l.b16 %v1724
    %v1860 = vunpack.c.l.b16 %v1725
    %v1861 = vunpack.c.l.b16 %v1726
    %v1862 = vunpack.c.l.b16 %v1727
    %v1863 = vunpack.c.l.b16 %v1728
    %v1864 = vunpack.c.l.b16 %v1729
    %v1865 = vunpack.c.l.b16 %v1730
    %v1866 = vunpack.c.l.b16 %v1731
    %v1867 = vunpack.c.l.b16 %v1732
    %v1868 = vunpack.c.l.b16 %v1733
    %v1869 = vunpack.c.l.b16 %v1734
    %v1870 = vunpack.c.l.b16 %v1735
    %v1871 = vunpack.c.l.b16 %v1736
    %v1872 = vunpack.c.l.b16 %v1737
    %v1873 = vunpack.c.l.b16 %v1738
    %v1874 = vunpack.c.l.b16 %v1739
    %v1875 = vunpack.c.l.b16 %v1740
    %v1876 = vunpack.c.l.b16 %v1741
    %v1877 = vunpack.c.l.b16 %v1742
    %v1878 = vunpack.c.l.b16 %v1743
    %v1879 = vunpack.c.l.b16 %v1744
    %v1880 = vunpack.c.l.b16 %v1745
    %v1881 = vunpack.c.l.b16 %v1746
    %v1882 = vunpack.c.l.b16 %v1747
    %v1883 = vunpack.c.l.b16 %v1748
    %v1884 = vunpack.c.l.b16 %v1749
    %v1885 = vunpack.c.l.b16 %v1750
    %v1886 = vunpack.c.l.b16 %v1751
    %v1887 = vunpack.c.l.b16 %v1752
    %v1888 = vunpack.c.l.b16 %v1753
    %v1889 = vunpack.c.l.b16 %v1754
    %v1890 = vunpack.c.l.b16 %v1755
    %v1891 = vunpack.c.l.b16 %v1756
    %v1892 = vunpack.c.l.b16 %v1757
    %v1893 = vunpack.c.l.b16 %v1758
    %v1894 = vunpack.c.l.b16 %v1759
    %v1895 = vunpack.c.l.b16 %v1760
    %v1896 = vunpack.c.l.b16 %v1761
    %v1897 = vunpack.c.l.b16 %v1762
    %v1898 = vunpack.c.l.b16 %v1763
    %v1899 = vunpack.c.l.b16 %v1764
    %v1900 = vunpack.c.l.b16 %v1765
    %v1901 = vunpack.c.l.b16 %v1766
    %v1902 = vunpack.c.l.b16 %v1767
    %v1903 = vunpack.c.l.b16 %v1768
    %v1904 = vunpack.c.l.b16 %v1769
    %v1905 = vunpack.c.l.b16 %v1770
    %v1906 = vunpack.c.l.b16 %v1771
    %v1907 = vunpack.c.l.b16 %v1772
    %v1908 = vunpack.c.l.b16 %v1773
    %v1909 = vunpack.c.l.b16 %v1774
    %v1910 = vunpack.c.l.b16 %v1775
    %v1911 = vunpack.c.l.b16 %v1776
    %v1912 = vunpack.c.l.b16 %v1777
    %v1913 = vunpack.c.l.b16 %v1778
    %v1914 = vunpack.c.l.b16 %v1779
    %v1915 = vunpack.c.l.b16 %v1780
    %v1916 = vunpack.c.l.b16 %v1781
    %v1917 = vunpack.c.l.b16 %v1782
    %v1918 = vunpack.c.l.b16 %v1783
    %v1919 = vunpack.c.l.b16 %v1784
    %v1920 = vunpack.c.l.b16 %v1785
    %v1921 = vunpack.c.l.b16 %v1786
    %v1922 = vpack.c.b16 %v1859, %v1858
    %v1923 = vpack.c.b16 %v1861, %v1860
    %v1924 = vpack.c.b16 %v1863, %v1862
    %v1925 = vpack.c.b16 %v1865, %v1864
    %v1926 = vpack.c.b16 %v1867, %v1866
    %v1927 = vpack.c.b16 %v1869, %v1868
    %v1928 = vpack.c.b16 %v1871, %v1870
    %v1929 = vpack.c.b16 %v1873, %v1872
    %v1930 = vpack.c.b16 %v1875, %v1874
    %v1931 = vpack.c.b16 %v1877, %v1876
    %v1932 = vpack.c.b16 %v1879, %v1878
    %v1933 = vpack.c.b16 %v1881, %v1880
    %v1934 = vpack.c.b16 %v1883, %v1882
    %v1935 = vpack.c.b16 %v1885, %v1884
    %v1936 = vpack.c.b16 %v1887, %v1886
    %v1937 = vpack.c.b16 %v1889, %v1888
    %v1938 = vpack.c.b16 %v1891, %v1890
    %v1939 = vpack.c.b16 %v1893, %v1892
    %v1940 = vpack.c.b16 %v1895, %v1894
    %v1941 = vpack.c.b16 %v1897, %v1896
    %v1942 = vpack.c.b16 %v1899, %v1898
    %v1943 = vpack.c.b16 %v1901, %v1900
    %v1944 = vpack.c.b16 %v1903, %v1902
    %v1945 = vpack.c.b16 %v1905, %v1904
    %v1946 = vpack.c.b16 %v1907, %v1906
    %v1947 = vpack.c.b16 %v1909, %v1908
    %v1948 = vpack.c.b16 %v1911, %v1910
    %v1949 = vpack.c.b16 %v1913, %v1912
    %v1950 = vpack.c.b16 %v1915, %v1914
    %v1951 = vpack.c.b16 %v1917, %v1916
    %v1952 = vpack.c.b16 %v1919, %v1918
    %v1953 = vpack.c.b16 %v1921, %v1920
    %1986 = vmatprep.subr.bf16.mxu0 0
    %1987 = vmatpush1.bf16.msra.mxu0 %v1922
    %1988 = vmatprep.subr.bf16.mxu0 0
    %1989 = vmatpush1.bf16.msra.mxu0 %v1923
    %1990 = vmatprep.subr.bf16.mxu0 0
    %1991 = vmatpush1.bf16.msra.mxu0 %v1924
    %1992 = vmatprep.subr.bf16.mxu0 0
    %1993 = vmatpush1.bf16.msra.mxu0 %v1925
    %1994 = vmatprep.subr.bf16.mxu0 0
    %1995 = vmatpush1.bf16.msra.mxu0 %v1926
    %1996 = vmatprep.subr.bf16.mxu0 0
    %1997 = vmatpush1.bf16.msra.mxu0 %v1927
    %1998 = vmatprep.subr.bf16.mxu0 0
    %1999 = vmatpush1.bf16.msra.mxu0 %v1928
    %2000 = vmatprep.subr.bf16.mxu0 0
    %2001 = vmatpush1.bf16.msra.mxu0 %v1929
    %2002 = vmatprep.subr.bf16.mxu0 0
    %2003 = vmatpush1.bf16.msra.mxu0 %v1930
    %2004 = vmatprep.subr.bf16.mxu0 0
    %2005 = vmatpush1.bf16.msra.mxu0 %v1931
    %2006 = vmatprep.subr.bf16.mxu0 0
    %2007 = vmatpush1.bf16.msra.mxu0 %v1932
    %2008 = vmatprep.subr.bf16.mxu0 0
    %2009 = vmatpush1.bf16.msra.mxu0 %v1933
    %2010 = vmatprep.subr.bf16.mxu0 0
    %2011 = vmatpush1.bf16.msra.mxu0 %v1934
    %2012 = vmatprep.subr.bf16.mxu0 0
    %2013 = vmatpush1.bf16.msra.mxu0 %v1935
    %2014 = vmatprep.subr.bf16.mxu0 0
    %2015 = vmatpush1.bf16.msra.mxu0 %v1936
    %2016 = vmatprep.subr.bf16.mxu0 0
    %2017 = vmatpush1.bf16.msra.mxu0 %v1937
    %2018 = vmatprep.mubr.bf16.mxu0 %v1720
    %2019 = vmatmul.mubr.bf16.gmra.mrb[0].mxu0 %v1719
    %v2020 = vpop.f32.mrb[0].mxu0
    %v2021 = vadd.f32 %v1792, %v2020
    %v2022 = vpop.f32.mrb[0].mxu0
    %v2023 = vpop.f32.mrb[0].mxu0
    %v2024 = vadd.f32 %v1792, %v2023
    %v2025 = vpop.f32.mrb[0].mxu0
    %2026 = vdwg.mxu0
    %2027 = vmatprep.subr.bf16.mxu0 0
    %2028 = vmatpush1.bf16.msra.mxu0 %v1938
    %2029 = vmatprep.subr.bf16.mxu0 0
    %2030 = vmatpush1.bf16.msra.mxu0 %v1939
    %2031 = vmatprep.subr.bf16.mxu0 0
    %2032 = vmatpush1.bf16.msra.mxu0 %v1940
    %2033 = vmatprep.subr.bf16.mxu0 0
    %2034 = vmatpush1.bf16.msra.mxu0 %v1941
    %2035 = vmatprep.subr.bf16.mxu0 0
    %2036 = vmatpush1.bf16.msra.mxu0 %v1942
    %2037 = vmatprep.subr.bf16.mxu0 0
    %2038 = vmatpush1.bf16.msra.mxu0 %v1943
    %2039 = vmatprep.subr.bf16.mxu0 0
    %2040 = vmatpush1.bf16.msra.mxu0 %v1944
    %2041 = vmatprep.subr.bf16.mxu0 0
    %2042 = vmatpush1.bf16.msra.mxu0 %v1945
    %2043 = vmatprep.subr.bf16.mxu0 0
    %2044 = vmatpush1.bf16.msra.mxu0 %v1946
    %2045 = vmatprep.subr.bf16.mxu0 0
    %2046 = vmatpush1.bf16.msra.mxu0 %v1947
    %2047 = vmatprep.subr.bf16.mxu0 0
    %2048 = vmatpush1.bf16.msra.mxu0 %v1948
    %2049 = vmatprep.subr.bf16.mxu0 0
    %2050 = vmatpush1.bf16.msra.mxu0 %v1949
    %2051 = vmatprep.subr.bf16.mxu0 0
    %2052 = vmatpush1.bf16.msra.mxu0 %v1950
    %2053 = vmatprep.subr.bf16.mxu0 0
    %2054 = vmatpush1.bf16.msra.mxu0 %v1951
    %2055 = vmatprep.subr.bf16.mxu0 0
    %2056 = vmatpush1.bf16.msra.mxu0 %v1952
    %2057 = vmatprep.subr.bf16.mxu0 0
    %2058 = vmatpush1.bf16.msra.mxu0 %v1953
    %2059 = vmatprep.mubr.bf16.mxu0 %v1722
    %2060 = vmatmul.mubr.bf16.gmra.mrb[0].mxu0 %v1721
    %v2061 = vpop.f32.mrb[0].mxu0
    %v2062 = vadd.f32 %v2021, %v2061
    %v2063 = vpop.f32.mrb[0].mxu0
    %v2064 = vpop.f32.mrb[0].mxu0
    %v2065 = vadd.f32 %v2024, %v2064
    %v2066 = vpop.f32.mrb[0].mxu0
    %2067 = vdwg.mxu0
    %2068 = vst [vmem:[#allocation14] sm:$0xff] %v2062
    %2069 = vst [vmem:[#allocation14 + $0x8] sm:$0xff] %v2065
    %2070 = vrot.lane.b32.xlu0 %v2062, 64
    %v2071 = vpop.permute.xlu0 %2070
    %2072 = vrot.lane.b32.xlu0 %v2065, 64
    %v2073 = vpop.permute.xlu0 %2072
    %v2074 = vmul.f32 %v2071, 0.5
    %v2075 = vmul.f32 %v2073, 0.5
    %v2076 = vmul.f32 %v2074, 1.442695
    %v2077 = vpow.pop %v2076
    %v2078 = vmul.f32 %v2075, 1.442695
    %v2079 = vpow.pop %v2078
    %v2080 = vld [vmem:[#allocation5] sm:$0xff]
    %v2081 = vld [vmem:[#allocation5 + $0x8] sm:$0xff]
    %v2082 = vmul.f32 %v2080, %v2077
    %v2083 = vmul.f32 %v2081, %v2079
    %v2084 = vadd.f32 %v2062, %v2082
    %v2085 = vadd.f32 %v2065, %v2083
    %v2086 = vpack.c.bf16 %v2085, %v2084
    %v2087 = vld [vmem:[#allocation10] sm:$0xff]
    %v2088 = vld [vmem:[#allocation10 + $0x8] sm:$0xff]
    %v2089 = vld [vmem:[#allocation10 + $0x10] sm:$0xff]
    %v2090 = vld [vmem:[#allocation10 + $0x18] sm:$0xff]
    %v2091 = vld [vmem:[#allocation10 + $0x20] sm:$0xff]
    %v2092 = vld [vmem:[#allocation10 + $0x28] sm:$0xff]
    %v2093 = vld [vmem:[#allocation10 + $0x30] sm:$0xff]
    %v2094 = vld [vmem:[#allocation10 + $0x38] sm:$0xff]
    %v2095 = vld [vmem:[#allocation10 + $0x40] sm:$0xff]
    %v2096 = vld [vmem:[#allocation10 + $0x48] sm:$0xff]
    %v2097 = vld [vmem:[#allocation10 + $0x50] sm:$0xff]
    %v2098 = vld [vmem:[#allocation10 + $0x58] sm:$0xff]
    %v2099 = vld [vmem:[#allocation10 + $0x60] sm:$0xff]
    %v2100 = vld [vmem:[#allocation10 + $0x68] sm:$0xff]
    %v2101 = vld [vmem:[#allocation10 + $0x70] sm:$0xff]
    %v2102 = vld [vmem:[#allocation10 + $0x78] sm:$0xff]
    %v2103 = vld [vmem:[#allocation10 + $0x80] sm:$0xff]
    %v2104 = vld [vmem:[#allocation10 + $0x88] sm:$0xff]
    %v2105 = vld [vmem:[#allocation10 + $0x90] sm:$0xff]
    %v2106 = vld [vmem:[#allocation10 + $0x98] sm:$0xff]
    %v2107 = vld [vmem:[#allocation10 + $0xa0] sm:$0xff]
    %v2108 = vld [vmem:[#allocation10 + $0xa8] sm:$0xff]
    %v2109 = vld [vmem:[#allocation10 + $0xb0] sm:$0xff]
    %v2110 = vld [vmem:[#allocation10 + $0xb8] sm:$0xff]
    %v2111 = vld [vmem:[#allocation10 + $0xc0] sm:$0xff]
    %v2112 = vld [vmem:[#allocation10 + $0xc8] sm:$0xff]
    %v2113 = vld [vmem:[#allocation10 + $0xd0] sm:$0xff]
    %v2114 = vld [vmem:[#allocation10 + $0xd8] sm:$0xff]
    %v2115 = vld [vmem:[#allocation10 + $0xe0] sm:$0xff]
    %v2116 = vld [vmem:[#allocation10 + $0xe8] sm:$0xff]
    %v2117 = vld [vmem:[#allocation10 + $0xf0] sm:$0xff]
    %v2118 = vld [vmem:[#allocation10 + $0xf8] sm:$0xff]
    %v2119 = vld [vmem:[%s7] sm:$0xf]
    %v2121 = vlaneseq
    %v2122 = vshrl.u32 %v2121, 7
    %v2123 = vsub.s32 0, %v2122
    %v2124 = vrot.slane %v2119, %v2123
    %v2125 = vlaneseq
    %v2126 = vshrl.u32 %v2125, 7
    %v2127 = vsub.s32 1, %v2126
    %v2128 = vrot.slane %v2119, %v2127
    %v2129 = vlaneseq
    %v2130 = vshrl.u32 %v2129, 7
    %v2131 = vsub.s32 2, %v2130
    %v2132 = vrot.slane %v2119, %v2131
    %v2133 = vlaneseq
    %v2134 = vshrl.u32 %v2133, 7
    %v2135 = vsub.s32 3, %v2134
    %v2136 = vrot.slane %v2119, %v2135
    %v2173 = vunpack.c.l.b16 %v2087
    %v2174 = vunpack.c.h.b16 %v2087
    %v2175 = vunpack.c.l.b16 %v2088
    %v2176 = vunpack.c.h.b16 %v2088
    %v2177 = vunpack.c.l.b16 %v2089
    %v2178 = vunpack.c.h.b16 %v2089
    %v2179 = vunpack.c.l.b16 %v2090
    %v2180 = vunpack.c.h.b16 %v2090
    %v2181 = vunpack.c.l.b16 %v2091
    %v2182 = vunpack.c.h.b16 %v2091
    %v2183 = vunpack.c.l.b16 %v2092
    %v2184 = vunpack.c.h.b16 %v2092
    %v2185 = vunpack.c.l.b16 %v2093
    %v2186 = vunpack.c.h.b16 %v2093
    %v2187 = vunpack.c.l.b16 %v2094
    %v2188 = vunpack.c.h.b16 %v2094
    %v2189 = vunpack.c.l.b16 %v2095
    %v2190 = vunpack.c.h.b16 %v2095
    %v2191 = vunpack.c.l.b16 %v2096
    %v2192 = vunpack.c.h.b16 %v2096
    %v2193 = vunpack.c.l.b16 %v2097
    %v2194 = vunpack.c.h.b16 %v2097
    %v2195 = vunpack.c.l.b16 %v2098
    %v2196 = vunpack.c.h.b16 %v2098
    %v2197 = vunpack.c.l.b16 %v2099
    %v2198 = vunpack.c.h.b16 %v2099
    %v2199 = vunpack.c.l.b16 %v2100
    %v2200 = vunpack.c.h.b16 %v2100
    %v2201 = vunpack.c.l.b16 %v2101
    %v2202 = vunpack.c.h.b16 %v2101
    %v2203 = vunpack.c.l.b16 %v2102
    %v2204 = vunpack.c.h.b16 %v2102
    %v2205 = vunpack.c.l.b16 %v2103
    %v2206 = vunpack.c.h.b16 %v2103
    %v2207 = vunpack.c.l.b16 %v2104
    %v2208 = vunpack.c.h.b16 %v2104
    %v2209 = vunpack.c.l.b16 %v2105
    %v2210 = vunpack.c.h.b16 %v2105
    %v2211 = vunpack.c.l.b16 %v2106
    %v2212 = vunpack.c.h.b16 %v2106
    %v2213 = vunpack.c.l.b16 %v2107
    %v2214 = vunpack.c.h.b16 %v2107
    %v2215 = vunpack.c.l.b16 %v2108
    %v2216 = vunpack.c.h.b16 %v2108
    %v2217 = vunpack.c.l.b16 %v2109
    %v2218 = vunpack.c.h.b16 %v2109
    %v2219 = vunpack.c.l.b16 %v2110
    %v2220 = vunpack.c.h.b16 %v2110
    %v2221 = vunpack.c.l.b16 %v2111
    %v2222 = vunpack.c.h.b16 %v2111
    %v2223 = vunpack.c.l.b16 %v2112
    %v2224 = vunpack.c.h.b16 %v2112
    %v2225 = vunpack.c.l.b16 %v2113
    %v2226 = vunpack.c.h.b16 %v2113
    %v2227 = vunpack.c.l.b16 %v2114
    %v2228 = vunpack.c.h.b16 %v2114
    %v2229 = vunpack.c.l.b16 %v2115
    %v2230 = vunpack.c.h.b16 %v2115
    %v2231 = vunpack.c.l.b16 %v2116
    %v2232 = vunpack.c.h.b16 %v2116
    %v2233 = vunpack.c.l.b16 %v2117
    %v2234 = vunpack.c.h.b16 %v2117
    %v2235 = vunpack.c.l.b16 %v2118
    %v2236 = vunpack.c.h.b16 %v2118
    %v2237 = vpack.c.b16 %v2177, %v2173
    %v2238 = vpack.c.b16 %v2178, %v2174
    %v2239 = vpack.c.b16 %v2179, %v2175
    %v2240 = vpack.c.b16 %v2180, %v2176
    %v2241 = vpack.c.b16 %v2185, %v2181
    %v2242 = vpack.c.b16 %v2186, %v2182
    %v2243 = vpack.c.b16 %v2187, %v2183
    %v2244 = vpack.c.b16 %v2188, %v2184
    %v2245 = vpack.c.b16 %v2193, %v2189
    %v2246 = vpack.c.b16 %v2194, %v2190
    %v2247 = vpack.c.b16 %v2195, %v2191
    %v2248 = vpack.c.b16 %v2196, %v2192
    %v2249 = vpack.c.b16 %v2201, %v2197
    %v2250 = vpack.c.b16 %v2202, %v2198
    %v2251 = vpack.c.b16 %v2203, %v2199
    %v2252 = vpack.c.b16 %v2204, %v2200
    %v2253 = vpack.c.b16 %v2209, %v2205
    %v2254 = vpack.c.b16 %v2210, %v2206
    %v2255 = vpack.c.b16 %v2211, %v2207
    %v2256 = vpack.c.b16 %v2212, %v2208
    %v2257 = vpack.c.b16 %v2217, %v2213
    %v2258 = vpack.c.b16 %v2218, %v2214
    %v2259 = vpack.c.b16 %v2219, %v2215
    %v2260 = vpack.c.b16 %v2220, %v2216
    %v2261 = vpack.c.b16 %v2225, %v2221
    %v2262 = vpack.c.b16 %v2226, %v2222
    %v2263 = vpack.c.b16 %v2227, %v2223
    %v2264 = vpack.c.b16 %v2228, %v2224
    %v2265 = vpack.c.b16 %v2233, %v2229
    %v2266 = vpack.c.b16 %v2234, %v2230
    %v2267 = vpack.c.b16 %v2235, %v2231
    %v2268 = vpack.c.b16 %v2236, %v2232
    %2301 = vmatprep.subr.bf16.mxu0 %v2238
    %2302 = vmatpush1.bf16.msra.mxu0 %v2237
    %2303 = vmatprep.subr.bf16.mxu0 %v2242
    %2304 = vmatpush1.bf16.msra.mxu0 %v2241
    %2305 = vmatprep.subr.bf16.mxu0 %v2246
    %2306 = vmatpush1.bf16.msra.mxu0 %v2245
    %2307 = vmatprep.subr.bf16.mxu0 %v2250
    %2308 = vmatpush1.bf16.msra.mxu0 %v2249
    %2309 = vmatprep.subr.bf16.mxu0 %v2254
    %2310 = vmatpush1.bf16.msra.mxu0 %v2253
    %2311 = vmatprep.subr.bf16.mxu0 %v2258
    %2312 = vmatpush1.bf16.msra.mxu0 %v2257
    %2313 = vmatprep.subr.bf16.mxu0 %v2262
    %2314 = vmatpush1.bf16.msra.mxu0 %v2261
    %2315 = vmatprep.subr.bf16.mxu0 %v2266
    %2316 = vmatpush1.bf16.msra.mxu0 %v2265
    %2317 = vmatprep.subr.bf16.mxu0 0
    %2318 = vmatpush1.bf16.msra.mxu0 0
    %2319 = vmatprep.subr.bf16.mxu0 0
    %2320 = vmatpush1.bf16.msra.mxu0 0
    %2321 = vmatprep.subr.bf16.mxu0 0
    %2322 = vmatpush1.bf16.msra.mxu0 0
    %2323 = vmatprep.subr.bf16.mxu0 0
    %2324 = vmatpush1.bf16.msra.mxu0 0
    %2325 = vmatprep.subr.bf16.mxu0 0
    %2326 = vmatpush1.bf16.msra.mxu0 0
    %2327 = vmatprep.subr.bf16.mxu0 0
    %2328 = vmatpush1.bf16.msra.mxu0 0
    %2329 = vmatprep.subr.bf16.mxu0 0
    %2330 = vmatpush1.bf16.msra.mxu0 0
    %2331 = vmatprep.subr.bf16.mxu0 0
    %2332 = vmatpush1.bf16.msra.mxu0 0
    %2333 = vmatprep.mubr.bf16.mxu0 0
    %2334 = vmatmul.mubr.bf16.gmra.mrb[0].mxu0 %v2086
    %v2335 = vpop.f32.mrb[0].mxu0
    %v2336 = vadd.f32 %v2124, %v2335
    %v2337 = vpop.f32.mrb[0].mxu0
    %v2338 = vadd.f32 %v2128, %v2337
    %v2339 = vpop.f32.mrb[0].mxu0
    %v2340 = vadd.f32 %v2124, %v2339
    %v2341 = vpop.f32.mrb[0].mxu0
    %v2342 = vadd.f32 %v2128, %v2341
    %2343 = vdwg.mxu0
    %2344 = vmatprep.subr.bf16.mxu0 %v2240
    %2345 = vmatpush1.bf16.msra.mxu0 %v2239
    %2346 = vmatprep.subr.bf16.mxu0 %v2244
    %2347 = vmatpush1.bf16.msra.mxu0 %v2243
    %2348 = vmatprep.subr.bf16.mxu0 %v2248
    %2349 = vmatpush1.bf16.msra.mxu0 %v2247
    %2350 = vmatprep.subr.bf16.mxu0 %v2252
    %2351 = vmatpush1.bf16.msra.mxu0 %v2251
    %2352 = vmatprep.subr.bf16.mxu0 %v2256
    %2353 = vmatpush1.bf16.msra.mxu0 %v2255
    %2354 = vmatprep.subr.bf16.mxu0 %v2260
    %2355 = vmatpush1.bf16.msra.mxu0 %v2259
    %2356 = vmatprep.subr.bf16.mxu0 %v2264
    %2357 = vmatpush1.bf16.msra.mxu0 %v2263
    %2358 = vmatprep.subr.bf16.mxu0 %v2268
    %2359 = vmatpush1.bf16.msra.mxu0 %v2267
    %2360 = vmatprep.subr.bf16.mxu0 0
    %2361 = vmatpush1.bf16.msra.mxu0 0
    %2362 = vmatprep.subr.bf16.mxu0 0
    %2363 = vmatpush1.bf16.msra.mxu0 0
    %2364 = vmatprep.subr.bf16.mxu0 0
    %2365 = vmatpush1.bf16.msra.mxu0 0
    %2366 = vmatprep.subr.bf16.mxu0 0
    %2367 = vmatpush1.bf16.msra.mxu0 0
    %2368 = vmatprep.subr.bf16.mxu0 0
    %2369 = vmatpush1.bf16.msra.mxu0 0
    %2370 = vmatprep.subr.bf16.mxu0 0
    %2371 = vmatpush1.bf16.msra.mxu0 0
    %2372 = vmatprep.subr.bf16.mxu0 0
    %2373 = vmatpush1.bf16.msra.mxu0 0
    %2374 = vmatprep.subr.bf16.mxu0 0
    %2375 = vmatpush1.bf16.msra.mxu0 0
    %2376 = vmatprep.mubr.bf16.mxu0 0
    %2377 = vmatmul.mubr.bf16.gmra.mrb[0].mxu0 %v2086
    %v2378 = vpop.f32.mrb[0].mxu0
    %v2379 = vadd.f32 %v2132, %v2378
    %v2380 = vpop.f32.mrb[0].mxu0
    %v2381 = vadd.f32 %v2136, %v2380
    %v2382 = vpop.f32.mrb[0].mxu0
    %v2383 = vadd.f32 %v2132, %v2382
    %v2384 = vpop.f32.mrb[0].mxu0
    %v2385 = vadd.f32 %v2136, %v2384
    %2386 = vdwg.mxu0
    %v2387 = vmax.f32 %v2336, 0.0
    %v2388 = vmax.f32 %v2338, 0.0
    %v2389 = vmax.f32 %v2379, 0.0
    %v2390 = vmax.f32 %v2381, 0.0
    %v2391 = vmax.f32 %v2340, 0.0
    %v2392 = vmax.f32 %v2342, 0.0
    %v2393 = vmax.f32 %v2383, 0.0
    %v2394 = vmax.f32 %v2385, 0.0
    %v2395 = vpack.c.bf16 %v2391, %v2387
    %v2396 = vpack.c.bf16 %v2392, %v2388
    %v2397 = vpack.c.bf16 %v2393, %v2389
    %v2398 = vpack.c.bf16 %v2394, %v2390
    %v2399 = vld [vmem:[#allocation11] sm:$0xff]
    %v2400 = vld [vmem:[#allocation11 + $0x8] sm:$0xff]
    %v2401 = vld [vmem:[#allocation11 + $0x10] sm:$0xff]
    %v2402 = vld [vmem:[#allocation11 + $0x18] sm:$0xf]
    %v2403 = vld [vmem:[#allocation11 + $0x1c] sm:$0xff]
    %v2404 = vld [vmem:[#allocation11 + $0x24] sm:$0xff]
    %v2405 = vld [vmem:[#allocation11 + $0x2c] sm:$0xff]
    %v2406 = vld [vmem:[#allocation11 + $0x34] sm:$0xf]
    %v2407 = vld [vmem:[#allocation11 + $0x38] sm:$0xff]
    %v2408 = vld [vmem:[#allocation11 + $0x40] sm:$0xff]
    %v2409 = vld [vmem:[#allocation11 + $0x48] sm:$0xff]
    %v2410 = vld [vmem:[#allocation11 + $0x50] sm:$0xf]
    %v2411 = vld [vmem:[#allocation11 + $0x54] sm:$0xff]
    %v2412 = vld [vmem:[#allocation11 + $0x5c] sm:$0xff]
    %v2413 = vld [vmem:[#allocation11 + $0x64] sm:$0xff]
    %v2414 = vld [vmem:[#allocation11 + $0x6c] sm:$0xf]
    %v2415 = vld [vmem:[#allocation11 + $0x70] sm:$0xff]
    %v2416 = vld [vmem:[#allocation11 + $0x78] sm:$0xff]
    %v2417 = vld [vmem:[#allocation11 + $0x80] sm:$0xff]
    %v2418 = vld [vmem:[#allocation11 + $0x88] sm:$0xf]
    %v2419 = vld [vmem:[#allocation11 + $0x8c] sm:$0xff]
    %v2420 = vld [vmem:[#allocation11 + $0x94] sm:$0xff]
    %v2421 = vld [vmem:[#allocation11 + $0x9c] sm:$0xff]
    %v2422 = vld [vmem:[#allocation11 + $0xa4] sm:$0xf]
    %v2423 = vld [vmem:[#allocation11 + $0xa8] sm:$0xff]
    %v2424 = vld [vmem:[#allocation11 + $0xb0] sm:$0xff]
    %v2425 = vld [vmem:[#allocation11 + $0xb8] sm:$0xff]
    %v2426 = vld [vmem:[#allocation11 + $0xc0] sm:$0xf]
    %v2427 = vld [vmem:[#allocation11 + $0xc4] sm:$0xff]
    %v2428 = vld [vmem:[#allocation11 + $0xcc] sm:$0xff]
    %v2429 = vld [vmem:[#allocation11 + $0xd4] sm:$0xff]
    %v2430 = vld [vmem:[#allocation11 + $0xdc] sm:$0xf]
    %v2431 = vld [vmem:[#allocation11 + $0xe0] sm:$0xff]
    %v2432 = vld [vmem:[#allocation11 + $0xe8] sm:$0xff]
    %v2433 = vld [vmem:[#allocation11 + $0xf0] sm:$0xff]
    %v2434 = vld [vmem:[#allocation11 + $0xf8] sm:$0xf]
    %v2435 = vld [vmem:[#allocation11 + $0xfc] sm:$0xff]
    %v2436 = vld [vmem:[#allocation11 + $0x104] sm:$0xff]
    %v2437 = vld [vmem:[#allocation11 + $0x10c] sm:$0xff]
    %v2438 = vld [vmem:[#allocation11 + $0x114] sm:$0xf]
    %v2439 = vld [vmem:[#allocation11 + $0x118] sm:$0xff]
    %v2440 = vld [vmem:[#allocation11 + $0x120] sm:$0xff]
    %v2441 = vld [vmem:[#allocation11 + $0x128] sm:$0xff]
    %v2442 = vld [vmem:[#allocation11 + $0x130] sm:$0xf]
    %v2443 = vld [vmem:[#allocation11 + $0x134] sm:$0xff]
    %v2444 = vld [vmem:[#allocation11 + $0x13c] sm:$0xff]
    %v2445 = vld [vmem:[#allocation11 + $0x144] sm:$0xff]
    %v2446 = vld [vmem:[#allocation11 + $0x14c] sm:$0xf]
    %v2447 = vld [vmem:[#allocation11 + $0x150] sm:$0xff]
    %v2448 = vld [vmem:[#allocation11 + $0x158] sm:$0xff]
    %v2449 = vld [vmem:[#allocation11 + $0x160] sm:$0xff]
    %v2450 = vld [vmem:[#allocation11 + $0x168] sm:$0xf]
    %v2451 = vld [vmem:[#allocation11 + $0x16c] sm:$0xff]
    %v2452 = vld [vmem:[#allocation11 + $0x174] sm:$0xff]
    %v2453 = vld [vmem:[#allocation11 + $0x17c] sm:$0xff]
    %v2454 = vld [vmem:[#allocation11 + $0x184] sm:$0xf]
    %v2455 = vld [vmem:[#allocation11 + $0x188] sm:$0xff]
    %v2456 = vld [vmem:[#allocation11 + $0x190] sm:$0xff]
    %v2457 = vld [vmem:[#allocation11 + $0x198] sm:$0xff]
    %v2458 = vld [vmem:[#allocation11 + $0x1a0] sm:$0xf]
    %v2459 = vld [vmem:[#allocation11 + $0x1a4] sm:$0xff]
    %v2460 = vld [vmem:[#allocation11 + $0x1ac] sm:$0xff]
    %v2461 = vld [vmem:[#allocation11 + $0x1b4] sm:$0xff]
    %v2462 = vld [vmem:[#allocation11 + $0x1bc] sm:$0xf]
    %v2463 = vld [vmem:[#allocation11 + $0x1c0] sm:$0xff]
    %v2464 = vld [vmem:[#allocation11 + $0x1c8] sm:$0xff]
    %v2465 = vld [vmem:[#allocation11 + $0x1d0] sm:$0xff]
    %v2466 = vld [vmem:[#allocation11 + $0x1d8] sm:$0xf]
    %v2467 = vld [vmem:[#allocation11 + $0x1dc] sm:$0xff]
    %v2468 = vld [vmem:[#allocation11 + $0x1e4] sm:$0xff]
    %v2469 = vld [vmem:[#allocation11 + $0x1ec] sm:$0xff]
    %v2470 = vld [vmem:[#allocation11 + $0x1f4] sm:$0xf]
    %v2471 = vld [vmem:[#allocation11 + $0x1f8] sm:$0xff]
    %v2472 = vld [vmem:[#allocation11 + $0x200] sm:$0xff]
    %v2473 = vld [vmem:[#allocation11 + $0x208] sm:$0xff]
    %v2474 = vld [vmem:[#allocation11 + $0x210] sm:$0xf]
    %v2475 = vld [vmem:[#allocation11 + $0x214] sm:$0xff]
    %v2476 = vld [vmem:[#allocation11 + $0x21c] sm:$0xff]
    %v2477 = vld [vmem:[#allocation11 + $0x224] sm:$0xff]
    %v2478 = vld [vmem:[#allocation11 + $0x22c] sm:$0xf]
    %v2479 = vld [vmem:[#allocation11 + $0x230] sm:$0xff]
    %v2480 = vld [vmem:[#allocation11 + $0x238] sm:$0xff]
    %v2481 = vld [vmem:[#allocation11 + $0x240] sm:$0xff]
    %v2482 = vld [vmem:[#allocation11 + $0x248] sm:$0xf]
    %v2483 = vld [vmem:[#allocation11 + $0x24c] sm:$0xff]
    %v2484 = vld [vmem:[#allocation11 + $0x254] sm:$0xff]
    %v2485 = vld [vmem:[#allocation11 + $0x25c] sm:$0xff]
    %v2486 = vld [vmem:[#allocation11 + $0x264] sm:$0xf]
    %v2487 = vld [vmem:[#allocation11 + $0x268] sm:$0xff]
    %v2488 = vld [vmem:[#allocation11 + $0x270] sm:$0xff]
    %v2489 = vld [vmem:[#allocation11 + $0x278] sm:$0xff]
    %v2490 = vld [vmem:[#allocation11 + $0x280] sm:$0xf]
    %v2491 = vld [vmem:[#allocation11 + $0x284] sm:$0xff]
    %v2492 = vld [vmem:[#allocation11 + $0x28c] sm:$0xff]
    %v2493 = vld [vmem:[#allocation11 + $0x294] sm:$0xff]
    %v2494 = vld [vmem:[#allocation11 + $0x29c] sm:$0xf]
    %v2495 = vld [vmem:[#allocation11 + $0x2a0] sm:$0xff]
    %v2496 = vld [vmem:[#allocation11 + $0x2a8] sm:$0xff]
    %v2497 = vld [vmem:[#allocation11 + $0x2b0] sm:$0xff]
    %v2498 = vld [vmem:[#allocation11 + $0x2b8] sm:$0xf]
    %v2499 = vld [vmem:[#allocation11 + $0x2bc] sm:$0xff]
    %v2500 = vld [vmem:[#allocation11 + $0x2c4] sm:$0xff]
    %v2501 = vld [vmem:[#allocation11 + $0x2cc] sm:$0xff]
    %v2502 = vld [vmem:[#allocation11 + $0x2d4] sm:$0xf]
    %v2503 = vld [vmem:[#allocation11 + $0x2d8] sm:$0xff]
    %v2504 = vld [vmem:[#allocation11 + $0x2e0] sm:$0xff]
    %v2505 = vld [vmem:[#allocation11 + $0x2e8] sm:$0xff]
    %v2506 = vld [vmem:[#allocation11 + $0x2f0] sm:$0xf]
    %v2507 = vld [vmem:[#allocation11 + $0x2f4] sm:$0xff]
    %v2508 = vld [vmem:[#allocation11 + $0x2fc] sm:$0xff]
    %v2509 = vld [vmem:[#allocation11 + $0x304] sm:$0xff]
    %v2510 = vld [vmem:[#allocation11 + $0x30c] sm:$0xf]
    %v2511 = vld [vmem:[#allocation11 + $0x310] sm:$0xff]
    %v2512 = vld [vmem:[#allocation11 + $0x318] sm:$0xff]
    %v2513 = vld [vmem:[#allocation11 + $0x320] sm:$0xff]
    %v2514 = vld [vmem:[#allocation11 + $0x328] sm:$0xf]
    %v2515 = vld [vmem:[#allocation11 + $0x32c] sm:$0xff]
    %v2516 = vld [vmem:[#allocation11 + $0x334] sm:$0xff]
    %v2517 = vld [vmem:[#allocation11 + $0x33c] sm:$0xff]
    %v2518 = vld [vmem:[#allocation11 + $0x344] sm:$0xf]
    %v2519 = vld [vmem:[#allocation11 + $0x348] sm:$0xff]
    %v2520 = vld [vmem:[#allocation11 + $0x350] sm:$0xff]
    %v2521 = vld [vmem:[#allocation11 + $0x358] sm:$0xff]
    %v2522 = vld [vmem:[#allocation11 + $0x360] sm:$0xf]
    %v2523 = vld [vmem:[#allocation11 + $0x364] sm:$0xff]
    %v2524 = vld [vmem:[#allocation11 + $0x36c] sm:$0xff]
    %v2525 = vld [vmem:[#allocation11 + $0x374] sm:$0xff]
    %v2526 = vld [vmem:[#allocation11 + $0x37c] sm:$0xf]
    %v2527 = vld [vmem:[#allocation11 + $0x380] sm:$0xff]
    %v2528 = vld [vmem:[#allocation11 + $0x388] sm:$0xff]
    %v2529 = vld [vmem:[#allocation11 + $0x390] sm:$0xff]
    %v2530 = vld [vmem:[#allocation11 + $0x398] sm:$0xf]
    %v2531 = vld [vmem:[#allocation11 + $0x39c] sm:$0xff]
    %v2532 = vld [vmem:[#allocation11 + $0x3a4] sm:$0xff]
    %v2533 = vld [vmem:[#allocation11 + $0x3ac] sm:$0xff]
    %v2534 = vld [vmem:[#allocation11 + $0x3b4] sm:$0xf]
    %v2535 = vld [vmem:[#allocation11 + $0x3b8] sm:$0xff]
    %v2536 = vld [vmem:[#allocation11 + $0x3c0] sm:$0xff]
    %v2537 = vld [vmem:[#allocation11 + $0x3c8] sm:$0xff]
    %v2538 = vld [vmem:[#allocation11 + $0x3d0] sm:$0xf]
    %v2539 = vld [vmem:[#allocation11 + $0x3d4] sm:$0xff]
    %v2540 = vld [vmem:[#allocation11 + $0x3dc] sm:$0xff]
    %v2541 = vld [vmem:[#allocation11 + $0x3e4] sm:$0xff]
    %v2542 = vld [vmem:[#allocation11 + $0x3ec] sm:$0xf]
    %v2543 = vld [vmem:[#allocation11 + $0x3f0] sm:$0xff]
    %v2544 = vld [vmem:[#allocation11 + $0x3f8] sm:$0xff]
    %v2545 = vld [vmem:[#allocation11 + $0x400] sm:$0xff]
    %v2546 = vld [vmem:[#allocation11 + $0x408] sm:$0xf]
    %v2547 = vld [vmem:[#allocation11 + $0x40c] sm:$0xff]
    %v2548 = vld [vmem:[#allocation11 + $0x414] sm:$0xff]
    %v2549 = vld [vmem:[#allocation11 + $0x41c] sm:$0xff]
    %v2550 = vld [vmem:[#allocation11 + $0x424] sm:$0xf]
    %v2551 = vld [vmem:[#allocation11 + $0x428] sm:$0xff]
    %v2552 = vld [vmem:[#allocation11 + $0x430] sm:$0xff]
    %v2553 = vld [vmem:[#allocation11 + $0x438] sm:$0xff]
    %v2554 = vld [vmem:[#allocation11 + $0x440] sm:$0xf]
    %v2555 = vld [vmem:[#allocation11 + $0x444] sm:$0xff]
    %v2556 = vld [vmem:[#allocation11 + $0x44c] sm:$0xff]
    %v2557 = vld [vmem:[#allocation11 + $0x454] sm:$0xff]
    %v2558 = vld [vmem:[#allocation11 + $0x45c] sm:$0xf]
    %v2559 = vld [vmem:[#allocation11 + $0x460] sm:$0xff]
    %v2560 = vld [vmem:[#allocation11 + $0x468] sm:$0xff]
    %v2561 = vld [vmem:[#allocation11 + $0x470] sm:$0xff]
    %v2562 = vld [vmem:[#allocation11 + $0x478] sm:$0xf]
    %v2563 = vld [vmem:[#allocation11 + $0x47c] sm:$0xff]
    %v2564 = vld [vmem:[#allocation11 + $0x484] sm:$0xff]
    %v2565 = vld [vmem:[#allocation11 + $0x48c] sm:$0xff]
    %v2566 = vld [vmem:[#allocation11 + $0x494] sm:$0xf]
    %v2567 = vld [vmem:[#allocation11 + $0x498] sm:$0xff]
    %v2568 = vld [vmem:[#allocation11 + $0x4a0] sm:$0xff]
    %v2569 = vld [vmem:[#allocation11 + $0x4a8] sm:$0xff]
    %v2570 = vld [vmem:[#allocation11 + $0x4b0] sm:$0xf]
    %v2571 = vld [vmem:[#allocation11 + $0x4b4] sm:$0xff]
    %v2572 = vld [vmem:[#allocation11 + $0x4bc] sm:$0xff]
    %v2573 = vld [vmem:[#allocation11 + $0x4c4] sm:$0xff]
    %v2574 = vld [vmem:[#allocation11 + $0x4cc] sm:$0xf]
    %v2575 = vld [vmem:[#allocation11 + $0x4d0] sm:$0xff]
    %v2576 = vld [vmem:[#allocation11 + $0x4d8] sm:$0xff]
    %v2577 = vld [vmem:[#allocation11 + $0x4e0] sm:$0xff]
    %v2578 = vld [vmem:[#allocation11 + $0x4e8] sm:$0xf]
    %v2579 = vld [vmem:[#allocation11 + $0x4ec] sm:$0xff]
    %v2580 = vld [vmem:[#allocation11 + $0x4f4] sm:$0xff]
    %v2581 = vld [vmem:[#allocation11 + $0x4fc] sm:$0xff]
    %v2582 = vld [vmem:[#allocation11 + $0x504] sm:$0xf]
    %v2583 = vld [vmem:[#allocation11 + $0x508] sm:$0xff]
    %v2584 = vld [vmem:[#allocation11 + $0x510] sm:$0xff]
    %v2585 = vld [vmem:[#allocation11 + $0x518] sm:$0xff]
    %v2586 = vld [vmem:[#allocation11 + $0x520] sm:$0xf]
    %v2587 = vld [vmem:[#allocation11 + $0x524] sm:$0xff]
    %v2588 = vld [vmem:[#allocation11 + $0x52c] sm:$0xff]
    %v2589 = vld [vmem:[#allocation11 + $0x534] sm:$0xff]
    %v2590 = vld [vmem:[#allocation11 + $0x53c] sm:$0xf]
    %v2591 = vld [vmem:[#allocation11 + $0x540] sm:$0xff]
    %v2592 = vld [vmem:[#allocation11 + $0x548] sm:$0xff]
    %v2593 = vld [vmem:[#allocation11 + $0x550] sm:$0xff]
    %v2594 = vld [vmem:[#allocation11 + $0x558] sm:$0xf]
    %v2595 = vld [vmem:[#allocation11 + $0x55c] sm:$0xff]
    %v2596 = vld [vmem:[#allocation11 + $0x564] sm:$0xff]
    %v2597 = vld [vmem:[#allocation11 + $0x56c] sm:$0xff]
    %v2598 = vld [vmem:[#allocation11 + $0x574] sm:$0xf]
    %v2599 = vld [vmem:[#allocation11 + $0x578] sm:$0xff]
    %v2600 = vld [vmem:[#allocation11 + $0x580] sm:$0xff]
    %v2601 = vld [vmem:[#allocation11 + $0x588] sm:$0xff]
    %v2602 = vld [vmem:[#allocation11 + $0x590] sm:$0xf]
    %v2603 = vld [vmem:[#allocation11 + $0x594] sm:$0xff]
    %v2604 = vld [vmem:[#allocation11 + $0x59c] sm:$0xff]
    %v2605 = vld [vmem:[#allocation11 + $0x5a4] sm:$0xff]
    %v2606 = vld [vmem:[#allocation11 + $0x5ac] sm:$0xf]
    %v2607 = vld [vmem:[#allocation11 + $0x5b0] sm:$0xff]
    %v2608 = vld [vmem:[#allocation11 + $0x5b8] sm:$0xff]
    %v2609 = vld [vmem:[#allocation11 + $0x5c0] sm:$0xff]
    %v2610 = vld [vmem:[#allocation11 + $0x5c8] sm:$0xf]
    %v2611 = vld [vmem:[#allocation11 + $0x5cc] sm:$0xff]
    %v2612 = vld [vmem:[#allocation11 + $0x5d4] sm:$0xff]
    %v2613 = vld [vmem:[#allocation11 + $0x5dc] sm:$0xff]
    %v2614 = vld [vmem:[#allocation11 + $0x5e4] sm:$0xf]
    %v2615 = vld [vmem:[#allocation11 + $0x5e8] sm:$0xff]
    %v2616 = vld [vmem:[#allocation11 + $0x5f0] sm:$0xff]
    %v2617 = vld [vmem:[#allocation11 + $0x5f8] sm:$0xff]
    %v2618 = vld [vmem:[#allocation11 + $0x600] sm:$0xf]
    %v2619 = vld [vmem:[#allocation11 + $0x604] sm:$0xff]
    %v2620 = vld [vmem:[#allocation11 + $0x60c] sm:$0xff]
    %v2621 = vld [vmem:[#allocation11 + $0x614] sm:$0xff]
    %v2622 = vld [vmem:[#allocation11 + $0x61c] sm:$0xf]
    %v2623 = vld [vmem:[#allocation11 + $0x620] sm:$0xff]
    %v2624 = vld [vmem:[#allocation11 + $0x628] sm:$0xff]
    %v2625 = vld [vmem:[#allocation11 + $0x630] sm:$0xff]
    %v2626 = vld [vmem:[#allocation11 + $0x638] sm:$0xf]
    %v2627 = vld [vmem:[#allocation11 + $0x63c] sm:$0xff]
    %v2628 = vld [vmem:[#allocation11 + $0x644] sm:$0xff]
    %v2629 = vld [vmem:[#allocation11 + $0x64c] sm:$0xff]
    %v2630 = vld [vmem:[#allocation11 + $0x654] sm:$0xf]
    %v2631 = vld [vmem:[#allocation11 + $0x658] sm:$0xff]
    %v2632 = vld [vmem:[#allocation11 + $0x660] sm:$0xff]
    %v2633 = vld [vmem:[#allocation11 + $0x668] sm:$0xff]
    %v2634 = vld [vmem:[#allocation11 + $0x670] sm:$0xf]
    %v2635 = vld [vmem:[#allocation11 + $0x674] sm:$0xff]
    %v2636 = vld [vmem:[#allocation11 + $0x67c] sm:$0xff]
    %v2637 = vld [vmem:[#allocation11 + $0x684] sm:$0xff]
    %v2638 = vld [vmem:[#allocation11 + $0x68c] sm:$0xf]
    %v2639 = vld [vmem:[#allocation11 + $0x690] sm:$0xff]
    %v2640 = vld [vmem:[#allocation11 + $0x698] sm:$0xff]
    %v2641 = vld [vmem:[#allocation11 + $0x6a0] sm:$0xff]
    %v2642 = vld [vmem:[#allocation11 + $0x6a8] sm:$0xf]
    %v2643 = vld [vmem:[#allocation11 + $0x6ac] sm:$0xff]
    %v2644 = vld [vmem:[#allocation11 + $0x6b4] sm:$0xff]
    %v2645 = vld [vmem:[#allocation11 + $0x6bc] sm:$0xff]
    %v2646 = vld [vmem:[#allocation11 + $0x6c4] sm:$0xf]
    %v2647 = vld [vmem:[#allocation11 + $0x6c8] sm:$0xff]
    %v2648 = vld [vmem:[#allocation11 + $0x6d0] sm:$0xff]
    %v2649 = vld [vmem:[#allocation11 + $0x6d8] sm:$0xff]
    %v2650 = vld [vmem:[#allocation11 + $0x6e0] sm:$0xf]
    %v2651 = vld [vmem:[#allocation11 + $0x6e4] sm:$0xff]
    %v2652 = vld [vmem:[#allocation11 + $0x6ec] sm:$0xff]
    %v2653 = vld [vmem:[#allocation11 + $0x6f4] sm:$0xff]
    %v2654 = vld [vmem:[#allocation11 + $0x6fc] sm:$0xf]
    %v2655 = vld [vmem:[%s9] sm:$0xff]
    %v2657 = vlaneseq
    %v2658 = vshrl.u32 %v2657, 7
    %v2659 = vsub.s32 0, %v2658
    %v2660 = vrot.slane %v2655, %v2659
    %v2661 = vlaneseq
    %v2662 = vshrl.u32 %v2661, 7
    %v2663 = vsub.s32 1, %v2662
    %v2664 = vrot.slane %v2655, %v2663
    %v2665 = vlaneseq
    %v2666 = vshrl.u32 %v2665, 7
    %v2667 = vsub.s32 2, %v2666
    %v2668 = vrot.slane %v2655, %v2667
    %v2669 = vlaneseq
    %v2670 = vshrl.u32 %v2669, 7
    %v2671 = vsub.s32 3, %v2670
    %v2672 = vrot.slane %v2655, %v2671
    %v2673 = vlaneseq
    %v2674 = vshrl.u32 %v2673, 7
    %v2675 = vsub.s32 4, %v2674
    %v2676 = vrot.slane %v2655, %v2675
    %v2677 = vlaneseq
    %v2678 = vshrl.u32 %v2677, 7
    %v2679 = vsub.s32 5, %v2678
    %v2680 = vrot.slane %v2655, %v2679
    %v2681 = vlaneseq
    %v2682 = vshrl.u32 %v2681, 7
    %v2683 = vsub.s32 6, %v2682
    %v2684 = vrot.slane %v2655, %v2683
    %v2948 = vunpack.c.l.b16 %v2399
    %v2949 = vunpack.c.h.b16 %v2399
    %v2950 = vunpack.c.l.b16 %v2400
    %v2951 = vunpack.c.h.b16 %v2400
    %v2952 = vunpack.c.l.b16 %v2401
    %v2953 = vunpack.c.h.b16 %v2401
    %v2954 = vunpack.c.l.b16 %v2402
    %v2955 = vunpack.c.l.b16 %v2403
    %v2956 = vunpack.c.h.b16 %v2403
    %v2957 = vunpack.c.l.b16 %v2404
    %v2958 = vunpack.c.h.b16 %v2404
    %v2959 = vunpack.c.l.b16 %v2405
    %v2960 = vunpack.c.h.b16 %v2405
    %v2961 = vunpack.c.l.b16 %v2406
    %v2962 = vunpack.c.l.b16 %v2407
    %v2963 = vunpack.c.h.b16 %v2407
    %v2964 = vunpack.c.l.b16 %v2408
    %v2965 = vunpack.c.h.b16 %v2408
    %v2966 = vunpack.c.l.b16 %v2409
    %v2967 = vunpack.c.h.b16 %v2409
    %v2968 = vunpack.c.l.b16 %v2410
    %v2969 = vunpack.c.l.b16 %v2411
    %v2970 = vunpack.c.h.b16 %v2411
    %v2971 = vunpack.c.l.b16 %v2412
    %v2972 = vunpack.c.h.b16 %v2412
    %v2973 = vunpack.c.l.b16 %v2413
    %v2974 = vunpack.c.h.b16 %v2413
    %v2975 = vunpack.c.l.b16 %v2414
    %v2976 = vunpack.c.l.b16 %v2415
    %v2977 = vunpack.c.h.b16 %v2415
    %v2978 = vunpack.c.l.b16 %v2416
    %v2979 = vunpack.c.h.b16 %v2416
    %v2980 = vunpack.c.l.b16 %v2417
    %v2981 = vunpack.c.h.b16 %v2417
    %v2982 = vunpack.c.l.b16 %v2418
    %v2983 = vunpack.c.l.b16 %v2419
    %v2984 = vunpack.c.h.b16 %v2419
    %v2985 = vunpack.c.l.b16 %v2420
    %v2986 = vunpack.c.h.b16 %v2420
    %v2987 = vunpack.c.l.b16 %v2421
    %v2988 = vunpack.c.h.b16 %v2421
    %v2989 = vunpack.c.l.b16 %v2422
    %v2990 = vunpack.c.l.b16 %v2423
    %v2991 = vunpack.c.h.b16 %v2423
    %v2992 = vunpack.c.l.b16 %v2424
    %v2993 = vunpack.c.h.b16 %v2424
    %v2994 = vunpack.c.l.b16 %v2425
    %v2995 = vunpack.c.h.b16 %v2425
    %v2996 = vunpack.c.l.b16 %v2426
    %v2997 = vunpack.c.l.b16 %v2427
    %v2998 = vunpack.c.h.b16 %v2427
    %v2999 = vunpack.c.l.b16 %v2428
    %v3000 = vunpack.c.h.b16 %v2428
    %v3001 = vunpack.c.l.b16 %v2429
    %v3002 = vunpack.c.h.b16 %v2429
    %v3003 = vunpack.c.l.b16 %v2430
    %v3004 = vunpack.c.l.b16 %v2431
    %v3005 = vunpack.c.h.b16 %v2431
    %v3006 = vunpack.c.l.b16 %v2432
    %v3007 = vunpack.c.h.b16 %v2432
    %v3008 = vunpack.c.l.b16 %v2433
    %v3009 = vunpack.c.h.b16 %v2433
    %v3010 = vunpack.c.l.b16 %v2434
    %v3011 = vunpack.c.l.b16 %v2435
    %v3012 = vunpack.c.h.b16 %v2435
    %v3013 = vunpack.c.l.b16 %v2436
    %v3014 = vunpack.c.h.b16 %v2436
    %v3015 = vunpack.c.l.b16 %v2437
    %v3016 = vunpack.c.h.b16 %v2437
    %v3017 = vunpack.c.l.b16 %v2438
    %v3018 = vunpack.c.l.b16 %v2439
    %v3019 = vunpack.c.h.b16 %v2439
    %v3020 = vunpack.c.l.b16 %v2440
    %v3021 = vunpack.c.h.b16 %v2440
    %v3022 = vunpack.c.l.b16 %v2441
    %v3023 = vunpack.c.h.b16 %v2441
    %v3024 = vunpack.c.l.b16 %v2442
    %v3025 = vunpack.c.l.b16 %v2443
    %v3026 = vunpack.c.h.b16 %v2443
    %v3027 = vunpack.c.l.b16 %v2444
    %v3028 = vunpack.c.h.b16 %v2444
    %v3029 = vunpack.c.l.b16 %v2445
    %v3030 = vunpack.c.h.b16 %v2445
    %v3031 = vunpack.c.l.b16 %v2446
    %v3032 = vunpack.c.l.b16 %v2447
    %v3033 = vunpack.c.h.b16 %v2447
    %v3034 = vunpack.c.l.b16 %v2448
    %v3035 = vunpack.c.h.b16 %v2448
    %v3036 = vunpack.c.l.b16 %v2449
    %v3037 = vunpack.c.h.b16 %v2449
    %v3038 = vunpack.c.l.b16 %v2450
    %v3039 = vunpack.c.l.b16 %v2451
    %v3040 = vunpack.c.h.b16 %v2451
    %v3041 = vunpack.c.l.b16 %v2452
    %v3042 = vunpack.c.h.b16 %v2452
    %v3043 = vunpack.c.l.b16 %v2453
    %v3044 = vunpack.c.h.b16 %v2453
    %v3045 = vunpack.c.l.b16 %v2454
    %v3046 = vunpack.c.l.b16 %v2455
    %v3047 = vunpack.c.h.b16 %v2455
    %v3048 = vunpack.c.l.b16 %v2456
    %v3049 = vunpack.c.h.b16 %v2456
    %v3050 = vunpack.c.l.b16 %v2457
    %v3051 = vunpack.c.h.b16 %v2457
    %v3052 = vunpack.c.l.b16 %v2458
    %v3053 = vunpack.c.l.b16 %v2459
    %v3054 = vunpack.c.h.b16 %v2459
    %v3055 = vunpack.c.l.b16 %v2460
    %v3056 = vunpack.c.h.b16 %v2460
    %v3057 = vunpack.c.l.b16 %v2461
    %v3058 = vunpack.c.h.b16 %v2461
    %v3059 = vunpack.c.l.b16 %v2462
    %v3060 = vunpack.c.l.b16 %v2463
    %v3061 = vunpack.c.h.b16 %v2463
    %v3062 = vunpack.c.l.b16 %v2464
    %v3063 = vunpack.c.h.b16 %v2464
    %v3064 = vunpack.c.l.b16 %v2465
    %v3065 = vunpack.c.h.b16 %v2465
    %v3066 = vunpack.c.l.b16 %v2466
    %v3067 = vunpack.c.l.b16 %v2467
    %v3068 = vunpack.c.h.b16 %v2467
    %v3069 = vunpack.c.l.b16 %v2468
    %v3070 = vunpack.c.h.b16 %v2468
    %v3071 = vunpack.c.l.b16 %v2469
    %v3072 = vunpack.c.h.b16 %v2469
    %v3073 = vunpack.c.l.b16 %v2470
    %v3074 = vunpack.c.l.b16 %v2471
    %v3075 = vunpack.c.h.b16 %v2471
    %v3076 = vunpack.c.l.b16 %v2472
    %v3077 = vunpack.c.h.b16 %v2472
    %v3078 = vunpack.c.l.b16 %v2473
    %v3079 = vunpack.c.h.b16 %v2473
    %v3080 = vunpack.c.l.b16 %v2474
    %v3081 = vunpack.c.l.b16 %v2475
    %v3082 = vunpack.c.h.b16 %v2475
    %v3083 = vunpack.c.l.b16 %v2476
    %v3084 = vunpack.c.h.b16 %v2476
    %v3085 = vunpack.c.l.b16 %v2477
    %v3086 = vunpack.c.h.b16 %v2477
    %v3087 = vunpack.c.l.b16 %v2478
    %v3088 = vunpack.c.l.b16 %v2479
    %v3089 = vunpack.c.h.b16 %v2479
    %v3090 = vunpack.c.l.b16 %v2480
    %v3091 = vunpack.c.h.b16 %v2480
    %v3092 = vunpack.c.l.b16 %v2481
    %v3093 = vunpack.c.h.b16 %v2481
    %v3094 = vunpack.c.l.b16 %v2482
    %v3095 = vunpack.c.l.b16 %v2483
    %v3096 = vunpack.c.h.b16 %v2483
    %v3097 = vunpack.c.l.b16 %v2484
    %v3098 = vunpack.c.h.b16 %v2484
    %v3099 = vunpack.c.l.b16 %v2485
    %v3100 = vunpack.c.h.b16 %v2485
    %v3101 = vunpack.c.l.b16 %v2486
    %v3102 = vunpack.c.l.b16 %v2487
    %v3103 = vunpack.c.h.b16 %v2487
    %v3104 = vunpack.c.l.b16 %v2488
    %v3105 = vunpack.c.h.b16 %v2488
    %v3106 = vunpack.c.l.b16 %v2489
    %v3107 = vunpack.c.h.b16 %v2489
    %v3108 = vunpack.c.l.b16 %v2490
    %v3109 = vunpack.c.l.b16 %v2491
    %v3110 = vunpack.c.h.b16 %v2491
    %v3111 = vunpack.c.l.b16 %v2492
    %v3112 = vunpack.c.h.b16 %v2492
    %v3113 = vunpack.c.l.b16 %v2493
    %v3114 = vunpack.c.h.b16 %v2493
    %v3115 = vunpack.c.l.b16 %v2494
    %v3116 = vunpack.c.l.b16 %v2495
    %v3117 = vunpack.c.h.b16 %v2495
    %v3118 = vunpack.c.l.b16 %v2496
    %v3119 = vunpack.c.h.b16 %v2496
    %v3120 = vunpack.c.l.b16 %v2497
    %v3121 = vunpack.c.h.b16 %v2497
    %v3122 = vunpack.c.l.b16 %v2498
    %v3123 = vunpack.c.l.b16 %v2499
    %v3124 = vunpack.c.h.b16 %v2499
    %v3125 = vunpack.c.l.b16 %v2500
    %v3126 = vunpack.c.h.b16 %v2500
    %v3127 = vunpack.c.l.b16 %v2501
    %v3128 = vunpack.c.h.b16 %v2501
    %v3129 = vunpack.c.l.b16 %v2502
    %v3130 = vunpack.c.l.b16 %v2503
    %v3131 = vunpack.c.h.b16 %v2503
    %v3132 = vunpack.c.l.b16 %v2504
    %v3133 = vunpack.c.h.b16 %v2504
    %v3134 = vunpack.c.l.b16 %v2505
    %v3135 = vunpack.c.h.b16 %v2505
    %v3136 = vunpack.c.l.b16 %v2506
    %v3137 = vunpack.c.l.b16 %v2507
    %v3138 = vunpack.c.h.b16 %v2507
    %v3139 = vunpack.c.l.b16 %v2508
    %v3140 = vunpack.c.h.b16 %v2508
    %v3141 = vunpack.c.l.b16 %v2509
    %v3142 = vunpack.c.h.b16 %v2509
    %v3143 = vunpack.c.l.b16 %v2510
    %v3144 = vunpack.c.l.b16 %v2511
    %v3145 = vunpack.c.h.b16 %v2511
    %v3146 = vunpack.c.l.b16 %v2512
    %v3147 = vunpack.c.h.b16 %v2512
    %v3148 = vunpack.c.l.b16 %v2513
    %v3149 = vunpack.c.h.b16 %v2513
    %v3150 = vunpack.c.l.b16 %v2514
    %v3151 = vunpack.c.l.b16 %v2515
    %v3152 = vunpack.c.h.b16 %v2515
    %v3153 = vunpack.c.l.b16 %v2516
    %v3154 = vunpack.c.h.b16 %v2516
    %v3155 = vunpack.c.l.b16 %v2517
    %v3156 = vunpack.c.h.b16 %v2517
    %v3157 = vunpack.c.l.b16 %v2518
    %v3158 = vunpack.c.l.b16 %v2519
    %v3159 = vunpack.c.h.b16 %v2519
    %v3160 = vunpack.c.l.b16 %v2520
    %v3161 = vunpack.c.h.b16 %v2520
    %v3162 = vunpack.c.l.b16 %v2521
    %v3163 = vunpack.c.h.b16 %v2521
    %v3164 = vunpack.c.l.b16 %v2522
    %v3165 = vunpack.c.l.b16 %v2523
    %v3166 = vunpack.c.h.b16 %v2523
    %v3167 = vunpack.c.l.b16 %v2524
    %v3168 = vunpack.c.h.b16 %v2524
    %v3169 = vunpack.c.l.b16 %v2525
    %v3170 = vunpack.c.h.b16 %v2525
    %v3171 = vunpack.c.l.b16 %v2526
    %v3172 = vunpack.c.l.b16 %v2527
    %v3173 = vunpack.c.h.b16 %v2527
    %v3174 = vunpack.c.l.b16 %v2528
    %v3175 = vunpack.c.h.b16 %v2528
    %v3176 = vunpack.c.l.b16 %v2529
    %v3177 = vunpack.c.h.b16 %v2529
    %v3178 = vunpack.c.l.b16 %v2530
    %v3179 = vunpack.c.l.b16 %v2531
    %v3180 = vunpack.c.h.b16 %v2531
    %v3181 = vunpack.c.l.b16 %v2532
    %v3182 = vunpack.c.h.b16 %v2532
    %v3183 = vunpack.c.l.b16 %v2533
    %v3184 = vunpack.c.h.b16 %v2533
    %v3185 = vunpack.c.l.b16 %v2534
    %v3186 = vunpack.c.l.b16 %v2535
    %v3187 = vunpack.c.h.b16 %v2535
    %v3188 = vunpack.c.l.b16 %v2536
    %v3189 = vunpack.c.h.b16 %v2536
    %v3190 = vunpack.c.l.b16 %v2537
    %v3191 = vunpack.c.h.b16 %v2537
    %v3192 = vunpack.c.l.b16 %v2538
    %v3193 = vunpack.c.l.b16 %v2539
    %v3194 = vunpack.c.h.b16 %v2539
    %v3195 = vunpack.c.l.b16 %v2540
    %v3196 = vunpack.c.h.b16 %v2540
    %v3197 = vunpack.c.l.b16 %v2541
    %v3198 = vunpack.c.h.b16 %v2541
    %v3199 = vunpack.c.l.b16 %v2542
    %v3200 = vunpack.c.l.b16 %v2543
    %v3201 = vunpack.c.h.b16 %v2543
    %v3202 = vunpack.c.l.b16 %v2544
    %v3203 = vunpack.c.h.b16 %v2544
    %v3204 = vunpack.c.l.b16 %v2545
    %v3205 = vunpack.c.h.b16 %v2545
    %v3206 = vunpack.c.l.b16 %v2546
    %v3207 = vunpack.c.l.b16 %v2547
    %v3208 = vunpack.c.h.b16 %v2547
    %v3209 = vunpack.c.l.b16 %v2548
    %v3210 = vunpack.c.h.b16 %v2548
    %v3211 = vunpack.c.l.b16 %v2549
    %v3212 = vunpack.c.h.b16 %v2549
    %v3213 = vunpack.c.l.b16 %v2550
    %v3214 = vunpack.c.l.b16 %v2551
    %v3215 = vunpack.c.h.b16 %v2551
    %v3216 = vunpack.c.l.b16 %v2552
    %v3217 = vunpack.c.h.b16 %v2552
    %v3218 = vunpack.c.l.b16 %v2553
    %v3219 = vunpack.c.h.b16 %v2553
    %v3220 = vunpack.c.l.b16 %v2554
    %v3221 = vunpack.c.l.b16 %v2555
    %v3222 = vunpack.c.h.b16 %v2555
    %v3223 = vunpack.c.l.b16 %v2556
    %v3224 = vunpack.c.h.b16 %v2556
    %v3225 = vunpack.c.l.b16 %v2557
    %v3226 = vunpack.c.h.b16 %v2557
    %v3227 = vunpack.c.l.b16 %v2558
    %v3228 = vunpack.c.l.b16 %v2559
    %v3229 = vunpack.c.h.b16 %v2559
    %v3230 = vunpack.c.l.b16 %v2560
    %v3231 = vunpack.c.h.b16 %v2560
    %v3232 = vunpack.c.l.b16 %v2561
    %v3233 = vunpack.c.h.b16 %v2561
    %v3234 = vunpack.c.l.b16 %v2562
    %v3235 = vunpack.c.l.b16 %v2563
    %v3236 = vunpack.c.h.b16 %v2563
    %v3237 = vunpack.c.l.b16 %v2564
    %v3238 = vunpack.c.h.b16 %v2564
    %v3239 = vunpack.c.l.b16 %v2565
    %v3240 = vunpack.c.h.b16 %v2565
    %v3241 = vunpack.c.l.b16 %v2566
    %v3242 = vunpack.c.l.b16 %v2567
    %v3243 = vunpack.c.h.b16 %v2567
    %v3244 = vunpack.c.l.b16 %v2568
    %v3245 = vunpack.c.h.b16 %v2568
    %v3246 = vunpack.c.l.b16 %v2569
    %v3247 = vunpack.c.h.b16 %v2569
    %v3248 = vunpack.c.l.b16 %v2570
    %v3249 = vunpack.c.l.b16 %v2571
    %v3250 = vunpack.c.h.b16 %v2571
    %v3251 = vunpack.c.l.b16 %v2572
    %v3252 = vunpack.c.h.b16 %v2572
    %v3253 = vunpack.c.l.b16 %v2573
    %v3254 = vunpack.c.h.b16 %v2573
    %v3255 = vunpack.c.l.b16 %v2574
    %v3256 = vunpack.c.l.b16 %v2575
    %v3257 = vunpack.c.h.b16 %v2575
    %v3258 = vunpack.c.l.b16 %v2576
    %v3259 = vunpack.c.h.b16 %v2576
    %v3260 = vunpack.c.l.b16 %v2577
    %v3261 = vunpack.c.h.b16 %v2577
    %v3262 = vunpack.c.l.b16 %v2578
    %v3263 = vunpack.c.l.b16 %v2579
    %v3264 = vunpack.c.h.b16 %v2579
    %v3265 = vunpack.c.l.b16 %v2580
    %v3266 = vunpack.c.h.b16 %v2580
    %v3267 = vunpack.c.l.b16 %v2581
    %v3268 = vunpack.c.h.b16 %v2581
    %v3269 = vunpack.c.l.b16 %v2582
    %v3270 = vunpack.c.l.b16 %v2583
    %v3271 = vunpack.c.h.b16 %v2583
    %v3272 = vunpack.c.l.b16 %v2584
    %v3273 = vunpack.c.h.b16 %v2584
    %v3274 = vunpack.c.l.b16 %v2585
    %v3275 = vunpack.c.h.b16 %v2585
    %v3276 = vunpack.c.l.b16 %v2586
    %v3277 = vunpack.c.l.b16 %v2587
    %v3278 = vunpack.c.h.b16 %v2587
    %v3279 = vunpack.c.l.b16 %v2588
    %v3280 = vunpack.c.h.b16 %v2588
    %v3281 = vunpack.c.l.b16 %v2589
    %v3282 = vunpack.c.h.b16 %v2589
    %v3283 = vunpack.c.l.b16 %v2590
    %v3284 = vunpack.c.l.b16 %v2591
    %v3285 = vunpack.c.h.b16 %v2591
    %v3286 = vunpack.c.l.b16 %v2592
    %v3287 = vunpack.c.h.b16 %v2592
    %v3288 = vunpack.c.l.b16 %v2593
    %v3289 = vunpack.c.h.b16 %v2593
    %v3290 = vunpack.c.l.b16 %v2594
    %v3291 = vunpack.c.l.b16 %v2595
    %v3292 = vunpack.c.h.b16 %v2595
    %v3293 = vunpack.c.l.b16 %v2596
    %v3294 = vunpack.c.h.b16 %v2596
    %v3295 = vunpack.c.l.b16 %v2597
    %v3296 = vunpack.c.h.b16 %v2597
    %v3297 = vunpack.c.l.b16 %v2598
    %v3298 = vunpack.c.l.b16 %v2599
    %v3299 = vunpack.c.h.b16 %v2599
    %v3300 = vunpack.c.l.b16 %v2600
    %v3301 = vunpack.c.h.b16 %v2600
    %v3302 = vunpack.c.l.b16 %v2601
    %v3303 = vunpack.c.h.b16 %v2601
    %v3304 = vunpack.c.l.b16 %v2602
    %v3305 = vunpack.c.l.b16 %v2603
    %v3306 = vunpack.c.h.b16 %v2603
    %v3307 = vunpack.c.l.b16 %v2604
    %v3308 = vunpack.c.h.b16 %v2604
    %v3309 = vunpack.c.l.b16 %v2605
    %v3310 = vunpack.c.h.b16 %v2605
    %v3311 = vunpack.c.l.b16 %v2606
    %v3312 = vunpack.c.l.b16 %v2607
    %v3313 = vunpack.c.h.b16 %v2607
    %v3314 = vunpack.c.l.b16 %v2608
    %v3315 = vunpack.c.h.b16 %v2608
    %v3316 = vunpack.c.l.b16 %v2609
    %v3317 = vunpack.c.h.b16 %v2609
    %v3318 = vunpack.c.l.b16 %v2610
    %v3319 = vunpack.c.l.b16 %v2611
    %v3320 = vunpack.c.h.b16 %v2611
    %v3321 = vunpack.c.l.b16 %v2612
    %v3322 = vunpack.c.h.b16 %v2612
    %v3323 = vunpack.c.l.b16 %v2613
    %v3324 = vunpack.c.h.b16 %v2613
    %v3325 = vunpack.c.l.b16 %v2614
    %v3326 = vunpack.c.l.b16 %v2615
    %v3327 = vunpack.c.h.b16 %v2615
    %v3328 = vunpack.c.l.b16 %v2616
    %v3329 = vunpack.c.h.b16 %v2616
    %v3330 = vunpack.c.l.b16 %v2617
    %v3331 = vunpack.c.h.b16 %v2617
    %v3332 = vunpack.c.l.b16 %v2618
    %v3333 = vunpack.c.l.b16 %v2619
    %v3334 = vunpack.c.h.b16 %v2619
    %v3335 = vunpack.c.l.b16 %v2620
    %v3336 = vunpack.c.h.b16 %v2620
    %v3337 = vunpack.c.l.b16 %v2621
    %v3338 = vunpack.c.h.b16 %v2621
    %v3339 = vunpack.c.l.b16 %v2622
    %v3340 = vunpack.c.l.b16 %v2623
    %v3341 = vunpack.c.h.b16 %v2623
    %v3342 = vunpack.c.l.b16 %v2624
    %v3343 = vunpack.c.h.b16 %v2624
    %v3344 = vunpack.c.l.b16 %v2625
    %v3345 = vunpack.c.h.b16 %v2625
    %v3346 = vunpack.c.l.b16 %v2626
    %v3347 = vunpack.c.l.b16 %v2627
    %v3348 = vunpack.c.h.b16 %v2627
    %v3349 = vunpack.c.l.b16 %v2628
    %v3350 = vunpack.c.h.b16 %v2628
    %v3351 = vunpack.c.l.b16 %v2629
    %v3352 = vunpack.c.h.b16 %v2629
    %v3353 = vunpack.c.l.b16 %v2630
    %v3354 = vunpack.c.l.b16 %v2631
    %v3355 = vunpack.c.h.b16 %v2631
    %v3356 = vunpack.c.l.b16 %v2632
    %v3357 = vunpack.c.h.b16 %v2632
    %v3358 = vunpack.c.l.b16 %v2633
    %v3359 = vunpack.c.h.b16 %v2633
    %v3360 = vunpack.c.l.b16 %v2634
    %v3361 = vunpack.c.l.b16 %v2635
    %v3362 = vunpack.c.h.b16 %v2635
    %v3363 = vunpack.c.l.b16 %v2636
    %v3364 = vunpack.c.h.b16 %v2636
    %v3365 = vunpack.c.l.b16 %v2637
    %v3366 = vunpack.c.h.b16 %v2637
    %v3367 = vunpack.c.l.b16 %v2638
    %v3368 = vunpack.c.l.b16 %v2639
    %v3369 = vunpack.c.h.b16 %v2639
    %v3370 = vunpack.c.l.b16 %v2640
    %v3371 = vunpack.c.h.b16 %v2640
    %v3372 = vunpack.c.l.b16 %v2641
    %v3373 = vunpack.c.h.b16 %v2641
    %v3374 = vunpack.c.l.b16 %v2642
    %v3375 = vunpack.c.l.b16 %v2643
    %v3376 = vunpack.c.h.b16 %v2643
    %v3377 = vunpack.c.l.b16 %v2644
    %v3378 = vunpack.c.h.b16 %v2644
    %v3379 = vunpack.c.l.b16 %v2645
    %v3380 = vunpack.c.h.b16 %v2645
    %v3381 = vunpack.c.l.b16 %v2646
    %v3382 = vunpack.c.l.b16 %v2647
    %v3383 = vunpack.c.h.b16 %v2647
    %v3384 = vunpack.c.l.b16 %v2648
    %v3385 = vunpack.c.h.b16 %v2648
    %v3386 = vunpack.c.l.b16 %v2649
    %v3387 = vunpack.c.h.b16 %v2649
    %v3388 = vunpack.c.l.b16 %v2650
    %v3389 = vunpack.c.l.b16 %v2651
    %v3390 = vunpack.c.h.b16 %v2651
    %v3391 = vunpack.c.l.b16 %v2652
    %v3392 = vunpack.c.h.b16 %v2652
    %v3393 = vunpack.c.l.b16 %v2653
    %v3394 = vunpack.c.h.b16 %v2653
    %v3395 = vunpack.c.l.b16 %v2654
    %v3396 = vpack.c.b16 %v2955, %v2948
    %v3397 = vpack.c.b16 %v2956, %v2949
    %v3398 = vpack.c.b16 %v2957, %v2950
    %v3399 = vpack.c.b16 %v2958, %v2951
    %v3400 = vpack.c.b16 %v2959, %v2952
    %v3401 = vpack.c.b16 %v2960, %v2953
    %v3402 = vpack.c.b16 %v2961, %v2954
    %v3403 = vpack.c.b16 %v2969, %v2962
    %v3404 = vpack.c.b16 %v2970, %v2963
    %v3405 = vpack.c.b16 %v2971, %v2964
    %v3406 = vpack.c.b16 %v2972, %v2965
    %v3407 = vpack.c.b16 %v2973, %v2966
    %v3408 = vpack.c.b16 %v2974, %v2967
    %v3409 = vpack.c.b16 %v2975, %v2968
    %v3410 = vpack.c.b16 %v2983, %v2976
    %v3411 = vpack.c.b16 %v2984, %v2977
    %v3412 = vpack.c.b16 %v2985, %v2978
    %v3413 = vpack.c.b16 %v2986, %v2979
    %v3414 = vpack.c.b16 %v2987, %v2980
    %v3415 = vpack.c.b16 %v2988, %v2981
    %v3416 = vpack.c.b16 %v2989, %v2982
    %v3417 = vpack.c.b16 %v2997, %v2990
    %v3418 = vpack.c.b16 %v2998, %v2991
    %v3419 = vpack.c.b16 %v2999, %v2992
    %v3420 = vpack.c.b16 %v3000, %v2993
    %v3421 = vpack.c.b16 %v3001, %v2994
    %v3422 = vpack.c.b16 %v3002, %v2995
    %v3423 = vpack.c.b16 %v3003, %v2996
    %v3424 = vpack.c.b16 %v3011, %v3004
    %v3425 = vpack.c.b16 %v3012, %v3005
    %v3426 = vpack.c.b16 %v3013, %v3006
    %v3427 = vpack.c.b16 %v3014, %v3007
    %v3428 = vpack.c.b16 %v3015, %v3008
    %v3429 = vpack.c.b16 %v3016, %v3009
    %v3430 = vpack.c.b16 %v3017, %v3010
    %v3431 = vpack.c.b16 %v3025, %v3018
    %v3432 = vpack.c.b16 %v3026, %v3019
    %v3433 = vpack.c.b16 %v3027, %v3020
    %v3434 = vpack.c.b16 %v3028, %v3021
    %v3435 = vpack.c.b16 %v3029, %v3022
    %v3436 = vpack.c.b16 %v3030, %v3023
    %v3437 = vpack.c.b16 %v3031, %v3024
    %v3438 = vpack.c.b16 %v3039, %v3032
    %v3439 = vpack.c.b16 %v3040, %v3033
    %v3440 = vpack.c.b16 %v3041, %v3034
    %v3441 = vpack.c.b16 %v3042, %v3035
    %v3442 = vpack.c.b16 %v3043, %v3036
    %v3443 = vpack.c.b16 %v3044, %v3037
    %v3444 = vpack.c.b16 %v3045, %v3038
    %v3445 = vpack.c.b16 %v3053, %v3046
    %v3446 = vpack.c.b16 %v3054, %v3047
    %v3447 = vpack.c.b16 %v3055, %v3048
    %v3448 = vpack.c.b16 %v3056, %v3049
    %v3449 = vpack.c.b16 %v3057, %v3050
    %v3450 = vpack.c.b16 %v3058, %v3051
    %v3451 = vpack.c.b16 %v3059, %v3052
    %v3452 = vpack.c.b16 %v3067, %v3060
    %v3453 = vpack.c.b16 %v3068, %v3061
    %v3454 = vpack.c.b16 %v3069, %v3062
    %v3455 = vpack.c.b16 %v3070, %v3063
    %v3456 = vpack.c.b16 %v3071, %v3064
    %v3457 = vpack.c.b16 %v3072, %v3065
    %v3458 = vpack.c.b16 %v3073, %v3066
    %v3459 = vpack.c.b16 %v3081, %v3074
    %v3460 = vpack.c.b16 %v3082, %v3075
    %v3461 = vpack.c.b16 %v3083, %v3076
    %v3462 = vpack.c.b16 %v3084, %v3077
    %v3463 = vpack.c.b16 %v3085, %v3078
    %v3464 = vpack.c.b16 %v3086, %v3079
    %v3465 = vpack.c.b16 %v3087, %v3080
    %v3466 = vpack.c.b16 %v3095, %v3088
    %v3467 = vpack.c.b16 %v3096, %v3089
    %v3468 = vpack.c.b16 %v3097, %v3090
    %v3469 = vpack.c.b16 %v3098, %v3091
    %v3470 = vpack.c.b16 %v3099, %v3092
    %v3471 = vpack.c.b16 %v3100, %v3093
    %v3472 = vpack.c.b16 %v3101, %v3094
    %v3473 = vpack.c.b16 %v3109, %v3102
    %v3474 = vpack.c.b16 %v3110, %v3103
    %v3475 = vpack.c.b16 %v3111, %v3104
    %v3476 = vpack.c.b16 %v3112, %v3105
    %v3477 = vpack.c.b16 %v3113, %v3106
    %v3478 = vpack.c.b16 %v3114, %v3107
    %v3479 = vpack.c.b16 %v3115, %v3108
    %v3480 = vpack.c.b16 %v3123, %v3116
    %v3481 = vpack.c.b16 %v3124, %v3117
    %v3482 = vpack.c.b16 %v3125, %v3118
    %v3483 = vpack.c.b16 %v3126, %v3119
    %v3484 = vpack.c.b16 %v3127, %v3120
    %v3485 = vpack.c.b16 %v3128, %v3121
    %v3486 = vpack.c.b16 %v3129, %v3122
    %v3487 = vpack.c.b16 %v3137, %v3130
    %v3488 = vpack.c.b16 %v3138, %v3131
    %v3489 = vpack.c.b16 %v3139, %v3132
    %v3490 = vpack.c.b16 %v3140, %v3133
    %v3491 = vpack.c.b16 %v3141, %v3134
    %v3492 = vpack.c.b16 %v3142, %v3135
    %v3493 = vpack.c.b16 %v3143, %v3136
    %v3494 = vpack.c.b16 %v3151, %v3144
    %v3495 = vpack.c.b16 %v3152, %v3145
    %v3496 = vpack.c.b16 %v3153, %v3146
    %v3497 = vpack.c.b16 %v3154, %v3147
    %v3498 = vpack.c.b16 %v3155, %v3148
    %v3499 = vpack.c.b16 %v3156, %v3149
    %v3500 = vpack.c.b16 %v3157, %v3150
    %v3501 = vpack.c.b16 %v3165, %v3158
    %v3502 = vpack.c.b16 %v3166, %v3159
    %v3503 = vpack.c.b16 %v3167, %v3160
    %v3504 = vpack.c.b16 %v3168, %v3161
    %v3505 = vpack.c.b16 %v3169, %v3162
    %v3506 = vpack.c.b16 %v3170, %v3163
    %v3507 = vpack.c.b16 %v3171, %v3164
    %v3508 = vpack.c.b16 %v3179, %v3172
    %v3509 = vpack.c.b16 %v3180, %v3173
    %v3510 = vpack.c.b16 %v3181, %v3174
    %v3511 = vpack.c.b16 %v3182, %v3175
    %v3512 = vpack.c.b16 %v3183, %v3176
    %v3513 = vpack.c.b16 %v3184, %v3177
    %v3514 = vpack.c.b16 %v3185, %v3178
    %v3515 = vpack.c.b16 %v3193, %v3186
    %v3516 = vpack.c.b16 %v3194, %v3187
    %v3517 = vpack.c.b16 %v3195, %v3188
    %v3518 = vpack.c.b16 %v3196, %v3189
    %v3519 = vpack.c.b16 %v3197, %v3190
    %v3520 = vpack.c.b16 %v3198, %v3191
    %v3521 = vpack.c.b16 %v3199, %v3192
    %v3522 = vpack.c.b16 %v3207, %v3200
    %v3523 = vpack.c.b16 %v3208, %v3201
    %v3524 = vpack.c.b16 %v3209, %v3202
    %v3525 = vpack.c.b16 %v3210, %v3203
    %v3526 = vpack.c.b16 %v3211, %v3204
    %v3527 = vpack.c.b16 %v3212, %v3205
    %v3528 = vpack.c.b16 %v3213, %v3206
    %v3529 = vpack.c.b16 %v3221, %v3214
    %v3530 = vpack.c.b16 %v3222, %v3215
    %v3531 = vpack.c.b16 %v3223, %v3216
    %v3532 = vpack.c.b16 %v3224, %v3217
    %v3533 = vpack.c.b16 %v3225, %v3218
    %v3534 = vpack.c.b16 %v3226, %v3219
    %v3535 = vpack.c.b16 %v3227, %v3220
    %v3536 = vpack.c.b16 %v3235, %v3228
    %v3537 = vpack.c.b16 %v3236, %v3229
    %v3538 = vpack.c.b16 %v3237, %v3230
    %v3539 = vpack.c.b16 %v3238, %v3231
    %v3540 = vpack.c.b16 %v3239, %v3232
    %v3541 = vpack.c.b16 %v3240, %v3233
    %v3542 = vpack.c.b16 %v3241, %v3234
    %v3543 = vpack.c.b16 %v3249, %v3242
    %v3544 = vpack.c.b16 %v3250, %v3243
    %v3545 = vpack.c.b16 %v3251, %v3244
    %v3546 = vpack.c.b16 %v3252, %v3245
    %v3547 = vpack.c.b16 %v3253, %v3246
    %v3548 = vpack.c.b16 %v3254, %v3247
    %v3549 = vpack.c.b16 %v3255, %v3248
    %v3550 = vpack.c.b16 %v3263, %v3256
    %v3551 = vpack.c.b16 %v3264, %v3257
    %v3552 = vpack.c.b16 %v3265, %v3258
    %v3553 = vpack.c.b16 %v3266, %v3259
    %v3554 = vpack.c.b16 %v3267, %v3260
    %v3555 = vpack.c.b16 %v3268, %v3261
    %v3556 = vpack.c.b16 %v3269, %v3262
    %v3557 = vpack.c.b16 %v3277, %v3270
    %v3558 = vpack.c.b16 %v3278, %v3271
    %v3559 = vpack.c.b16 %v3279, %v3272
    %v3560 = vpack.c.b16 %v3280, %v3273
    %v3561 = vpack.c.b16 %v3281, %v3274
    %v3562 = vpack.c.b16 %v3282, %v3275
    %v3563 = vpack.c.b16 %v3283, %v3276
    %v3564 = vpack.c.b16 %v3291, %v3284
    %v3565 = vpack.c.b16 %v3292, %v3285
    %v3566 = vpack.c.b16 %v3293, %v3286
    %v3567 = vpack.c.b16 %v3294, %v3287
    %v3568 = vpack.c.b16 %v3295, %v3288
    %v3569 = vpack.c.b16 %v3296, %v3289
    %v3570 = vpack.c.b16 %v3297, %v3290
    %v3571 = vpack.c.b16 %v3305, %v3298
    %v3572 = vpack.c.b16 %v3306, %v3299
    %v3573 = vpack.c.b16 %v3307, %v3300
    %v3574 = vpack.c.b16 %v3308, %v3301
    %v3575 = vpack.c.b16 %v3309, %v3302
    %v3576 = vpack.c.b16 %v3310, %v3303
    %v3577 = vpack.c.b16 %v3311, %v3304
    %v3578 = vpack.c.b16 %v3319, %v3312
    %v3579 = vpack.c.b16 %v3320, %v3313
    %v3580 = vpack.c.b16 %v3321, %v3314
    %v3581 = vpack.c.b16 %v3322, %v3315
    %v3582 = vpack.c.b16 %v3323, %v3316
    %v3583 = vpack.c.b16 %v3324, %v3317
    %v3584 = vpack.c.b16 %v3325, %v3318
    %v3585 = vpack.c.b16 %v3333, %v3326
    %v3586 = vpack.c.b16 %v3334, %v3327
    %v3587 = vpack.c.b16 %v3335, %v3328
    %v3588 = vpack.c.b16 %v3336, %v3329
    %v3589 = vpack.c.b16 %v3337, %v3330
    %v3590 = vpack.c.b16 %v3338, %v3331
    %v3591 = vpack.c.b16 %v3339, %v3332
    %v3592 = vpack.c.b16 %v3347, %v3340
    %v3593 = vpack.c.b16 %v3348, %v3341
    %v3594 = vpack.c.b16 %v3349, %v3342
    %v3595 = vpack.c.b16 %v3350, %v3343
    %v3596 = vpack.c.b16 %v3351, %v3344
    %v3597 = vpack.c.b16 %v3352, %v3345
    %v3598 = vpack.c.b16 %v3353, %v3346
    %v3599 = vpack.c.b16 %v3361, %v3354
    %v3600 = vpack.c.b16 %v3362, %v3355
    %v3601 = vpack.c.b16 %v3363, %v3356
    %v3602 = vpack.c.b16 %v3364, %v3357
    %v3603 = vpack.c.b16 %v3365, %v3358
    %v3604 = vpack.c.b16 %v3366, %v3359
    %v3605 = vpack.c.b16 %v3367, %v3360
    %v3606 = vpack.c.b16 %v3375, %v3368
    %v3607 = vpack.c.b16 %v3376, %v3369
    %v3608 = vpack.c.b16 %v3377, %v3370
    %v3609 = vpack.c.b16 %v3378, %v3371
    %v3610 = vpack.c.b16 %v3379, %v3372
    %v3611 = vpack.c.b16 %v3380, %v3373
    %v3612 = vpack.c.b16 %v3381, %v3374
    %v3613 = vpack.c.b16 %v3389, %v3382
    %v3614 = vpack.c.b16 %v3390, %v3383
    %v3615 = vpack.c.b16 %v3391, %v3384
    %v3616 = vpack.c.b16 %v3392, %v3385
    %v3617 = vpack.c.b16 %v3393, %v3386
    %v3618 = vpack.c.b16 %v3394, %v3387
    %v3619 = vpack.c.b16 %v3395, %v3388
    %3844 = vmatprep.subr.bf16.mxu0 %v3397
    %3845 = vmatpush1.bf16.msra.mxu0 %v3396
    %3846 = vmatprep.subr.bf16.mxu0 %v3404
    %3847 = vmatpush1.bf16.msra.mxu0 %v3403
    %3848 = vmatprep.subr.bf16.mxu0 %v3411
    %3849 = vmatpush1.bf16.msra.mxu0 %v3410
    %3850 = vmatprep.subr.bf16.mxu0 %v3418
    %3851 = vmatpush1.bf16.msra.mxu0 %v3417
    %3852 = vmatprep.subr.bf16.mxu0 %v3425
    %3853 = vmatpush1.bf16.msra.mxu0 %v3424
    %3854 = vmatprep.subr.bf16.mxu0 %v3432
    %3855 = vmatpush1.bf16.msra.mxu0 %v3431
    %3856 = vmatprep.subr.bf16.mxu0 %v3439
    %3857 = vmatpush1.bf16.msra.mxu0 %v3438
    %3858 = vmatprep.subr.bf16.mxu0 %v3446
    %3859 = vmatpush1.bf16.msra.mxu0 %v3445
    %3860 = vmatprep.subr.bf16.mxu0 %v3453
    %3861 = vmatpush1.bf16.msra.mxu0 %v3452
    %3862 = vmatprep.subr.bf16.mxu0 %v3460
    %3863 = vmatpush1.bf16.msra.mxu0 %v3459
    %3864 = vmatprep.subr.bf16.mxu0 %v3467
    %3865 = vmatpush1.bf16.msra.mxu0 %v3466
    %3866 = vmatprep.subr.bf16.mxu0 %v3474
    %3867 = vmatpush1.bf16.msra.mxu0 %v3473
    %3868 = vmatprep.subr.bf16.mxu0 %v3481
    %3869 = vmatpush1.bf16.msra.mxu0 %v3480
    %3870 = vmatprep.subr.bf16.mxu0 %v3488
    %3871 = vmatpush1.bf16.msra.mxu0 %v3487
    %3872 = vmatprep.subr.bf16.mxu0 %v3495
    %3873 = vmatpush1.bf16.msra.mxu0 %v3494
    %3874 = vmatprep.subr.bf16.mxu0 %v3502
    %3875 = vmatpush1.bf16.msra.mxu0 %v3501
    %3876 = vmatprep.mubr.bf16.mxu0 %v2396
    %3877 = vmatmul.mubr.bf16.gmra.mrb[0].mxu0 %v2395
    %v3878 = vpop.f32.mrb[0].mxu0
    %v3879 = vadd.f32 %v2660, %v3878
    %v3880 = vpop.f32.mrb[0].mxu0
    %v3881 = vadd.f32 %v2664, %v3880
    %v3882 = vpop.f32.mrb[0].mxu0
    %v3883 = vadd.f32 %v2660, %v3882
    %v3884 = vpop.f32.mrb[0].mxu0
    %v3885 = vadd.f32 %v2664, %v3884
    %3886 = vdwg.mxu0
    %3887 = vmatprep.subr.bf16.mxu0 %v3509
    %3888 = vmatpush1.bf16.msra.mxu0 %v3508
    %3889 = vmatprep.subr.bf16.mxu0 %v3516
    %3890 = vmatpush1.bf16.msra.mxu0 %v3515
    %3891 = vmatprep.subr.bf16.mxu0 %v3523
    %3892 = vmatpush1.bf16.msra.mxu0 %v3522
    %3893 = vmatprep.subr.bf16.mxu0 %v3530
    %3894 = vmatpush1.bf16.msra.mxu0 %v3529
    %3895 = vmatprep.subr.bf16.mxu0 %v3537
    %3896 = vmatpush1.bf16.msra.mxu0 %v3536
    %3897 = vmatprep.subr.bf16.mxu0 %v3544
    %3898 = vmatpush1.bf16.msra.mxu0 %v3543
    %3899 = vmatprep.subr.bf16.mxu0 %v3551
    %3900 = vmatpush1.bf16.msra.mxu0 %v3550
    %3901 = vmatprep.subr.bf16.mxu0 %v3558
    %3902 = vmatpush1.bf16.msra.mxu0 %v3557
    %3903 = vmatprep.subr.bf16.mxu0 %v3565
    %3904 = vmatpush1.bf16.msra.mxu0 %v3564
    %3905 = vmatprep.subr.bf16.mxu0 %v3572
    %3906 = vmatpush1.bf16.msra.mxu0 %v3571
    %3907 = vmatprep.subr.bf16.mxu0 %v3579
    %3908 = vmatpush1.bf16.msra.mxu0 %v3578
    %3909 = vmatprep.subr.bf16.mxu0 %v3586
    %3910 = vmatpush1.bf16.msra.mxu0 %v3585
    %3911 = vmatprep.subr.bf16.mxu0 %v3593
    %3912 = vmatpush1.bf16.msra.mxu0 %v3592
    %3913 = vmatprep.subr.bf16.mxu0 %v3600
    %3914 = vmatpush1.bf16.msra.mxu0 %v3599
    %3915 = vmatprep.subr.bf16.mxu0 %v3607
    %3916 = vmatpush1.bf16.msra.mxu0 %v3606
    %3917 = vmatprep.subr.bf16.mxu0 %v3614
    %3918 = vmatpush1.bf16.msra.mxu0 %v3613
    %3919 = vmatprep.mubr.bf16.mxu0 %v2398
    %3920 = vmatmul.mubr.bf16.gmra.mrb[0].mxu0 %v2397
    %v3921 = vpop.f32.mrb[0].mxu0
    %v3922 = vadd.f32 %v3879, %v3921
    %v3923 = vpop.f32.mrb[0].mxu0
    %v3924 = vadd.f32 %v3881, %v3923
    %v3925 = vpop.f32.mrb[0].mxu0
    %v3926 = vadd.f32 %v3883, %v3925
    %v3927 = vpop.f32.mrb[0].mxu0
    %v3928 = vadd.f32 %v3885, %v3927
    %3929 = vdwg.mxu0
    %3930 = vmatprep.subr.bf16.mxu0 %v3399
    %3931 = vmatpush1.bf16.msra.mxu0 %v3398
    %3932 = vmatprep.subr.bf16.mxu0 %v3406
    %3933 = vmatpush1.bf16.msra.mxu0 %v3405
    %3934 = vmatprep.subr.bf16.mxu0 %v3413
    %3935 = vmatpush1.bf16.msra.mxu0 %v3412
    %3936 = vmatprep.subr.bf16.mxu0 %v3420
    %3937 = vmatpush1.bf16.msra.mxu0 %v3419
    %3938 = vmatprep.subr.bf16.mxu0 %v3427
    %3939 = vmatpush1.bf16.msra.mxu0 %v3426
    %3940 = vmatprep.subr.bf16.mxu0 %v3434
    %3941 = vmatpush1.bf16.msra.mxu0 %v3433
    %3942 = vmatprep.subr.bf16.mxu0 %v3441
    %3943 = vmatpush1.bf16.msra.mxu0 %v3440
    %3944 = vmatprep.subr.bf16.mxu0 %v3448
    %3945 = vmatpush1.bf16.msra.mxu0 %v3447
    %3946 = vmatprep.subr.bf16.mxu0 %v3455
    %3947 = vmatpush1.bf16.msra.mxu0 %v3454
    %3948 = vmatprep.subr.bf16.mxu0 %v3462
    %3949 = vmatpush1.bf16.msra.mxu0 %v3461
    %3950 = vmatprep.subr.bf16.mxu0 %v3469
    %3951 = vmatpush1.bf16.msra.mxu0 %v3468
    %3952 = vmatprep.subr.bf16.mxu0 %v3476
    %3953 = vmatpush1.bf16.msra.mxu0 %v3475
    %3954 = vmatprep.subr.bf16.mxu0 %v3483
    %3955 = vmatpush1.bf16.msra.mxu0 %v3482
    %3956 = vmatprep.subr.bf16.mxu0 %v3490
    %3957 = vmatpush1.bf16.msra.mxu0 %v3489
    %3958 = vmatprep.subr.bf16.mxu0 %v3497
    %3959 = vmatpush1.bf16.msra.mxu0 %v3496
    %3960 = vmatprep.subr.bf16.mxu0 %v3504
    %3961 = vmatpush1.bf16.msra.mxu0 %v3503
    %3962 = vmatprep.mubr.bf16.mxu0 %v2396
    %3963 = vmatmul.mubr.bf16.gmra.mrb[0].mxu0 %v2395
    %v3964 = vpop.f32.mrb[0].mxu0
    %v3965 = vadd.f32 %v2668, %v3964
    %v3966 = vpop.f32.mrb[0].mxu0
    %v3967 = vadd.f32 %v2672, %v3966
    %v3968 = vpop.f32.mrb[0].mxu0
    %v3969 = vadd.f32 %v2668, %v3968
    %v3970 = vpop.f32.mrb[0].mxu0
    %v3971 = vadd.f32 %v2672, %v3970
    %3972 = vdwg.mxu0
    %3973 = vmatprep.subr.bf16.mxu0 %v3511
    %3974 = vmatpush1.bf16.msra.mxu0 %v3510
    %3975 = vmatprep.subr.bf16.mxu0 %v3518
    %3976 = vmatpush1.bf16.msra.mxu0 %v3517
    %3977 = vmatprep.subr.bf16.mxu0 %v3525
    %3978 = vmatpush1.bf16.msra.mxu0 %v3524
    %3979 = vmatprep.subr.bf16.mxu0 %v3532
    %3980 = vmatpush1.bf16.msra.mxu0 %v3531
    %3981 = vmatprep.subr.bf16.mxu0 %v3539
    %3982 = vmatpush1.bf16.msra.mxu0 %v3538
    %3983 = vmatprep.subr.bf16.mxu0 %v3546
    %3984 = vmatpush1.bf16.msra.mxu0 %v3545
    %3985 = vmatprep.subr.bf16.mxu0 %v3553
    %3986 = vmatpush1.bf16.msra.mxu0 %v3552
    %3987 = vmatprep.subr.bf16.mxu0 %v3560
    %3988 = vmatpush1.bf16.msra.mxu0 %v3559
    %3989 = vmatprep.subr.bf16.mxu0 %v3567
    %3990 = vmatpush1.bf16.msra.mxu0 %v3566
    %3991 = vmatprep.subr.bf16.mxu0 %v3574
    %3992 = vmatpush1.bf16.msra.mxu0 %v3573
    %3993 = vmatprep.subr.bf16.mxu0 %v3581
    %3994 = vmatpush1.bf16.msra.mxu0 %v3580
    %3995 = vmatprep.subr.bf16.mxu0 %v3588
    %3996 = vmatpush1.bf16.msra.mxu0 %v3587
    %3997 = vmatprep.subr.bf16.mxu0 %v3595
    %3998 = vmatpush1.bf16.msra.mxu0 %v3594
    %3999 = vmatprep.subr.bf16.mxu0 %v3602
    %4000 = vmatpush1.bf16.msra.mxu0 %v3601
    %4001 = vmatprep.subr.bf16.mxu0 %v3609
    %4002 = vmatpush1.bf16.msra.mxu0 %v3608
    %4003 = vmatprep.subr.bf16.mxu0 %v3616
    %4004 = vmatpush1.bf16.msra.mxu0 %v3615
    %4005 = vmatprep.mubr.bf16.mxu0 %v2398
    %4006 = vmatmul.mubr.bf16.gmra.mrb[0].mxu0 %v2397
    %v4007 = vpop.f32.mrb[0].mxu0
    %v4008 = vadd.f32 %v3965, %v4007
    %v4009 = vpop.f32.mrb[0].mxu0
    %v4010 = vadd.f32 %v3967, %v4009
    %v4011 = vpop.f32.mrb[0].mxu0
    %v4012 = vadd.f32 %v3969, %v4011
    %v4013 = vpop.f32.mrb[0].mxu0
    %v4014 = vadd.f32 %v3971, %v4013
    %4015 = vdwg.mxu0
    %4016 = vmatprep.subr.bf16.mxu0 %v3401
    %4017 = vmatpush1.bf16.msra.mxu0 %v3400
    %4018 = vmatprep.subr.bf16.mxu0 %v3408
    %4019 = vmatpush1.bf16.msra.mxu0 %v3407
    %4020 = vmatprep.subr.bf16.mxu0 %v3415
    %4021 = vmatpush1.bf16.msra.mxu0 %v3414
    %4022 = vmatprep.subr.bf16.mxu0 %v3422
    %4023 = vmatpush1.bf16.msra.mxu0 %v3421
    %4024 = vmatprep.subr.bf16.mxu0 %v3429
    %4025 = vmatpush1.bf16.msra.mxu0 %v3428
    %4026 = vmatprep.subr.bf16.mxu0 %v3436
    %4027 = vmatpush1.bf16.msra.mxu0 %v3435
    %4028 = vmatprep.subr.bf16.mxu0 %v3443
    %4029 = vmatpush1.bf16.msra.mxu0 %v3442
    %4030 = vmatprep.subr.bf16.mxu0 %v3450
    %4031 = vmatpush1.bf16.msra.mxu0 %v3449
    %4032 = vmatprep.subr.bf16.mxu0 %v3457
    %4033 = vmatpush1.bf16.msra.mxu0 %v3456
    %4034 = vmatprep.subr.bf16.mxu0 %v3464
    %4035 = vmatpush1.bf16.msra.mxu0 %v3463
    %4036 = vmatprep.subr.bf16.mxu0 %v3471
    %4037 = vmatpush1.bf16.msra.mxu0 %v3470
    %4038 = vmatprep.subr.bf16.mxu0 %v3478
    %4039 = vmatpush1.bf16.msra.mxu0 %v3477
    %4040 = vmatprep.subr.bf16.mxu0 %v3485
    %4041 = vmatpush1.bf16.msra.mxu0 %v3484
    %4042 = vmatprep.subr.bf16.mxu0 %v3492
    %4043 = vmatpush1.bf16.msra.mxu0 %v3491
    %4044 = vmatprep.subr.bf16.mxu0 %v3499
    %4045 = vmatpush1.bf16.msra.mxu0 %v3498
    %4046 = vmatprep.subr.bf16.mxu0 %v3506
    %4047 = vmatpush1.bf16.msra.mxu0 %v3505
    %4048 = vmatprep.mubr.bf16.mxu0 %v2396
    %4049 = vmatmul.mubr.bf16.gmra.mrb[0].mxu0 %v2395
    %v4050 = vpop.f32.mrb[0].mxu0
    %v4051 = vadd.f32 %v2676, %v4050
    %v4052 = vpop.f32.mrb[0].mxu0
    %v4053 = vadd.f32 %v2680, %v4052
    %v4054 = vpop.f32.mrb[0].mxu0
    %v4055 = vadd.f32 %v2676, %v4054
    %v4056 = vpop.f32.mrb[0].mxu0
    %v4057 = vadd.f32 %v2680, %v4056
    %4058 = vdwg.mxu0
    %4059 = vmatprep.subr.bf16.mxu0 %v3513
    %4060 = vmatpush1.bf16.msra.mxu0 %v3512
    %4061 = vmatprep.subr.bf16.mxu0 %v3520
    %4062 = vmatpush1.bf16.msra.mxu0 %v3519
    %4063 = vmatprep.subr.bf16.mxu0 %v3527
    %4064 = vmatpush1.bf16.msra.mxu0 %v3526
    %4065 = vmatprep.subr.bf16.mxu0 %v3534
    %4066 = vmatpush1.bf16.msra.mxu0 %v3533
    %4067 = vmatprep.subr.bf16.mxu0 %v3541
    %4068 = vmatpush1.bf16.msra.mxu0 %v3540
    %4069 = vmatprep.subr.bf16.mxu0 %v3548
    %4070 = vmatpush1.bf16.msra.mxu0 %v3547
    %4071 = vmatprep.subr.bf16.mxu0 %v3555
    %4072 = vmatpush1.bf16.msra.mxu0 %v3554
    %4073 = vmatprep.subr.bf16.mxu0 %v3562
    %4074 = vmatpush1.bf16.msra.mxu0 %v3561
    %4075 = vmatprep.subr.bf16.mxu0 %v3569
    %4076 = vmatpush1.bf16.msra.mxu0 %v3568
    %4077 = vmatprep.subr.bf16.mxu0 %v3576
    %4078 = vmatpush1.bf16.msra.mxu0 %v3575
    %4079 = vmatprep.subr.bf16.mxu0 %v3583
    %4080 = vmatpush1.bf16.msra.mxu0 %v3582
    %4081 = vmatprep.subr.bf16.mxu0 %v3590
    %4082 = vmatpush1.bf16.msra.mxu0 %v3589
    %4083 = vmatprep.subr.bf16.mxu0 %v3597
    %4084 = vmatpush1.bf16.msra.mxu0 %v3596
    %4085 = vmatprep.subr.bf16.mxu0 %v3604
    %4086 = vmatpush1.bf16.msra.mxu0 %v3603
    %4087 = vmatprep.subr.bf16.mxu0 %v3611
    %4088 = vmatpush1.bf16.msra.mxu0 %v3610
    %4089 = vmatprep.subr.bf16.mxu0 %v3618
    %4090 = vmatpush1.bf16.msra.mxu0 %v3617
    %4091 = vmatprep.mubr.bf16.mxu0 %v2398
    %4092 = vmatmul.mubr.bf16.gmra.mrb[0].mxu0 %v2397
    %v4093 = vpop.f32.mrb[0].mxu0
    %v4094 = vadd.f32 %v4051, %v4093
    %v4095 = vpop.f32.mrb[0].mxu0
    %v4096 = vadd.f32 %v4053, %v4095
    %v4097 = vpop.f32.mrb[0].mxu0
    %v4098 = vadd.f32 %v4055, %v4097
    %v4099 = vpop.f32.mrb[0].mxu0
    %v4100 = vadd.f32 %v4057, %v4099
    %4101 = vdwg.mxu0
    %4102 = vmatprep.subr.bf16.mxu0 0
    %4103 = vmatpush1.bf16.msra.mxu0 %v3402
    %4104 = vmatprep.subr.bf16.mxu0 0
    %4105 = vmatpush1.bf16.msra.mxu0 %v3409
    %4106 = vmatprep.subr.bf16.mxu0 0
    %4107 = vmatpush1.bf16.msra.mxu0 %v3416
    %4108 = vmatprep.subr.bf16.mxu0 0
    %4109 = vmatpush1.bf16.msra.mxu0 %v3423
    %4110 = vmatprep.subr.bf16.mxu0 0
    %4111 = vmatpush1.bf16.msra.mxu0 %v3430
    %4112 = vmatprep.subr.bf16.mxu0 0
    %4113 = vmatpush1.bf16.msra.mxu0 %v3437
    %4114 = vmatprep.subr.bf16.mxu0 0
    %4115 = vmatpush1.bf16.msra.mxu0 %v3444
    %4116 = vmatprep.subr.bf16.mxu0 0
    %4117 = vmatpush1.bf16.msra.mxu0 %v3451
    %4118 = vmatprep.subr.bf16.mxu0 0
    %4119 = vmatpush1.bf16.msra.mxu0 %v3458
    %4120 = vmatprep.subr.bf16.mxu0 0
    %4121 = vmatpush1.bf16.msra.mxu0 %v3465
    %4122 = vmatprep.subr.bf16.mxu0 0
    %4123 = vmatpush1.bf16.msra.mxu0 %v3472
    %4124 = vmatprep.subr.bf16.mxu0 0
    %4125 = vmatpush1.bf16.msra.mxu0 %v3479
    %4126 = vmatprep.subr.bf16.mxu0 0
    %4127 = vmatpush1.bf16.msra.mxu0 %v3486
    %4128 = vmatprep.subr.bf16.mxu0 0
    %4129 = vmatpush1.bf16.msra.mxu0 %v3493
    %4130 = vmatprep.subr.bf16.mxu0 0
    %4131 = vmatpush1.bf16.msra.mxu0 %v3500
    %4132 = vmatprep.subr.bf16.mxu0 0
    %4133 = vmatpush1.bf16.msra.mxu0 %v3507
    %4134 = vmatprep.mubr.bf16.mxu0 %v2396
    %4135 = vmatmul.mubr.bf16.gmra.mrb[0].mxu0 %v2395
    %v4136 = vpop.f32.mrb[0].mxu0
    %v4137 = vadd.f32 %v2684, %v4136
    %v4138 = vpop.f32.mrb[0].mxu0
    %v4139 = vpop.f32.mrb[0].mxu0
    %v4140 = vadd.f32 %v2684, %v4139
    %v4141 = vpop.f32.mrb[0].mxu0
    %4142 = vdwg.mxu0
    %4143 = vmatprep.subr.bf16.mxu0 0
    %4144 = vmatpush1.bf16.msra.mxu0 %v3514
    %4145 = vmatprep.subr.bf16.mxu0 0
    %4146 = vmatpush1.bf16.msra.mxu0 %v3521
    %4147 = vmatprep.subr.bf16.mxu0 0
    %4148 = vmatpush1.bf16.msra.mxu0 %v3528
    %4149 = vmatprep.subr.bf16.mxu0 0
    %4150 = vmatpush1.bf16.msra.mxu0 %v3535
    %4151 = vmatprep.subr.bf16.mxu0 0
    %4152 = vmatpush1.bf16.msra.mxu0 %v3542
    %4153 = vmatprep.subr.bf16.mxu0 0
    %4154 = vmatpush1.bf16.msra.mxu0 %v3549
    %4155 = vmatprep.subr.bf16.mxu0 0
    %4156 = vmatpush1.bf16.msra.mxu0 %v3556
    %4157 = vmatprep.subr.bf16.mxu0 0
    %4158 = vmatpush1.bf16.msra.mxu0 %v3563
    %4159 = vmatprep.subr.bf16.mxu0 0
    %4160 = vmatpush1.bf16.msra.mxu0 %v3570
    %4161 = vmatprep.subr.bf16.mxu0 0
    %4162 = vmatpush1.bf16.msra.mxu0 %v3577
    %4163 = vmatprep.subr.bf16.mxu0 0
    %4164 = vmatpush1.bf16.msra.mxu0 %v3584
    %4165 = vmatprep.subr.bf16.mxu0 0
    %4166 = vmatpush1.bf16.msra.mxu0 %v3591
    %4167 = vmatprep.subr.bf16.mxu0 0
    %4168 = vmatpush1.bf16.msra.mxu0 %v3598
    %4169 = vmatprep.subr.bf16.mxu0 0
    %4170 = vmatpush1.bf16.msra.mxu0 %v3605
    %4171 = vmatprep.subr.bf16.mxu0 0
    %4172 = vmatpush1.bf16.msra.mxu0 %v3612
    %4173 = vmatprep.subr.bf16.mxu0 0
    %4174 = vmatpush1.bf16.msra.mxu0 %v3619
    %4175 = vmatprep.mubr.bf16.mxu0 %v2398
    %4176 = vmatmul.mubr.bf16.gmra.mrb[0].mxu0 %v2397
    %v4177 = vpop.f32.mrb[0].mxu0
    %v4178 = vadd.f32 %v4137, %v4177
    %v4179 = vpop.f32.mrb[0].mxu0
    %v4180 = vpop.f32.mrb[0].mxu0
    %v4181 = vadd.f32 %v4140, %v4180
    %v4182 = vpop.f32.mrb[0].mxu0
    %4183 = vdwg.mxu0
    %v4184 = vsub.f32 0.0, %v3922
    %v4185 = vsub.f32 0.0, %v3924
    %v4186 = vsub.f32 0.0, %v4008
    %v4187 = vsub.f32 0.0, %v4010
    %v4188 = vsub.f32 0.0, %v4094
    %v4189 = vsub.f32 0.0, %v4096
    %v4190 = vsub.f32 0.0, %v4178
    %v4191 = vsub.f32 0.0, %v3926
    %v4192 = vsub.f32 0.0, %v3928
    %v4193 = vsub.f32 0.0, %v4012
    %v4194 = vsub.f32 0.0, %v4014
    %v4195 = vsub.f32 0.0, %v4098
    %v4196 = vsub.f32 0.0, %v4100
    %v4197 = vsub.f32 0.0, %v4181
    %v4198 = vmul.f32 %v4184, 1.442695
    %v4199 = vpow.pop %v4198
    %v4200 = vmul.f32 %v4185, 1.442695
    %v4201 = vpow.pop %v4200
    %v4202 = vmul.f32 %v4186, 1.442695
    %v4203 = vpow.pop %v4202
    %v4204 = vmul.f32 %v4187, 1.442695
    %v4205 = vpow.pop %v4204
    %v4206 = vmul.f32 %v4188, 1.442695
    %v4207 = vpow.pop %v4206
    %v4208 = vmul.f32 %v4189, 1.442695
    %v4209 = vpow.pop %v4208
    %v4210 = vmul.f32 %v4190, 1.442695
    %v4211 = vpow.pop %v4210
    %v4212 = vmul.f32 %v4191, 1.442695
    %v4213 = vpow.pop %v4212
    %v4214 = vmul.f32 %v4192, 1.442695
    %v4215 = vpow.pop %v4214
    %v4216 = vmul.f32 %v4193, 1.442695
    %v4217 = vpow.pop %v4216
    %v4218 = vmul.f32 %v4194, 1.442695
    %v4219 = vpow.pop %v4218
    %v4220 = vmul.f32 %v4195, 1.442695
    %v4221 = vpow.pop %v4220
    %v4222 = vmul.f32 %v4196, 1.442695
    %v4223 = vpow.pop %v4222
    %v4224 = vmul.f32 %v4197, 1.442695
    %v4225 = vpow.pop %v4224
    %v4226 = vadd.f32 %v4199, 1.0
    %v4227 = vadd.f32 %v4201, 1.0
    %v4228 = vadd.f32 %v4203, 1.0
    %v4229 = vadd.f32 %v4205, 1.0
    %v4230 = vadd.f32 %v4207, 1.0
    %v4231 = vadd.f32 %v4209, 1.0
    %v4232 = vadd.f32 %v4211, 1.0
    %v4233 = vadd.f32 %v4213, 1.0
    %v4234 = vadd.f32 %v4215, 1.0
    %v4235 = vadd.f32 %v4217, 1.0
    %v4236 = vadd.f32 %v4219, 1.0
    %v4237 = vadd.f32 %v4221, 1.0
    %v4238 = vadd.f32 %v4223, 1.0
    %v4239 = vadd.f32 %v4225, 1.0
    %v4240 = vrcp.pop %v4226
    %v4241 = vrcp.pop %v4227
    %v4242 = vrcp.pop %v4228
    %v4243 = vrcp.pop %v4229
    %v4244 = vrcp.pop %v4230
    %v4245 = vrcp.pop %v4231
    %v4246 = vrcp.pop %v4232
    %v4247 = vrcp.pop %v4233
    %v4248 = vrcp.pop %v4234
    %v4249 = vrcp.pop %v4235
    %v4250 = vrcp.pop %v4236
    %v4251 = vrcp.pop %v4237
    %v4252 = vrcp.pop %v4238
    %v4253 = vrcp.pop %v4239
    %4254 = vst [vmem:[#allocation13] sm:$0xff] %v4240
    %4255 = vst [vmem:[#allocation13 + $0x8] sm:$0xff] %v4241
    %4256 = vst [vmem:[#allocation13 + $0x10] sm:$0xff] %v4242
    %4257 = vst [vmem:[#allocation13 + $0x18] sm:$0xff] %v4243
    %4258 = vst [vmem:[#allocation13 + $0x20] sm:$0xff] %v4244
    %4259 = vst [vmem:[#allocation13 + $0x28] sm:$0xff] %v4245
    %4260 = vst [vmem:[#allocation13 + $0x30] sm:$0xff] %v4246
    %4261 = vst [vmem:[#allocation13 + $0x38] sm:$0xff] %v4247
    %4262 = vst [vmem:[#allocation13 + $0x40] sm:$0xff] %v4248
    %4263 = vst [vmem:[#allocation13 + $0x48] sm:$0xff] %v4249
    %4264 = vst [vmem:[#allocation13 + $0x50] sm:$0xff] %v4250
    %4265 = vst [vmem:[#allocation13 + $0x58] sm:$0xff] %v4251
    %4266 = vst [vmem:[#allocation13 + $0x60] sm:$0xff] %v4252
    %4267 = vst [vmem:[#allocation13 + $0x68] sm:$0xff] %v4253
    // Predicated region
    $region66: #{tpu_custom_call.1} parent=1 // pred_check
      _
    $region67: #{tpu_custom_call.1} parent=1 // pred_check_branch
      %4269 = sbr.rel (0) target = $region69
    $region68: #{tpu_custom_call.1} parent=1 // pred_region
      %s4271 = ssub.s32 1792, 1792
      %4272 = vsyncadd [#allocation4], %s4271
      %s4273 = sshll.u32 [#allocation13], 4
      %s4274 = int_to_ptr.vmem [resolvable:$true] %s4273
      %4279 = dma.vmem_to_hbm [thread:$0]  %s4274, 1792, %s10, [#allocation4], 896, 896, 56
    $region69: #{tpu_custom_call.1} parent=1 // pred_fallthru
      _
    // Predicated region
    $region70: #{tpu_custom_call.1} parent=1 // pred_check
      _
    $region71: #{tpu_custom_call.1} parent=1 // pred_check_branch
      %4281 = sbr.rel (0) target = $region73
    $region72: #{tpu_custom_call.1} parent=1 // pred_region
      %s4283 = ssub.s32 256, 256
      %4284 = vsyncadd [#allocation15], %s4283
      %s4285 = sshll.u32 [#allocation14], 4
      %s4286 = int_to_ptr.vmem [resolvable:$true] %s4285
      %4291 = dma.vmem_to_hbm [thread:$0]  %s4286, 256, %s11, [#allocation15], 128, 128, 8
    $region73: #{tpu_custom_call.1} parent=1 // pred_fallthru
      _
    // Predicated region
    $region74: #{tpu_custom_call.1} parent=1 // pred_check
      _
    $region75: #{tpu_custom_call.1} parent=1 // pred_check_branch
      %4293 = sbr.rel (0) target = $region77
    $region76: #{tpu_custom_call.1} parent=1 // pred_region
      %4294 = dma.done [#allocation4], 1792
    $region77: #{tpu_custom_call.1} parent=1 // pred_fallthru
      _
    // Predicated region
    $region78: #{tpu_custom_call.1} parent=1 // pred_check
      _
    $region79: #{tpu_custom_call.1} parent=1 // pred_check_branch
      %4296 = sbr.rel (0) target = $region81
    $region80: #{tpu_custom_call.1} parent=1 // pred_region
      %4297 = dma.done [#allocation15], 256
    $region81: #{tpu_custom_call.1} parent=1 // pred_fallthru
      _
    %4298 = vsyncpa [#allocation3], 1
    %4299 = vsyncpa [#allocation6], 1
    %4300 = vsyncpa [#allocation9], 1
    %4301 = vsyncpa [#allocation12], 1
    %4302 = vsyncpa [#allocation4], 1
    %4303 = vsyncpa [#allocation15], 1

</llo_original>
